<compile_context>
chip_gen: v7x
topology: tpu7x:2x2x1
jax: 0.10.0
libtpu: 0.0.40
codegen_flags: <defaults>
</compile_context>

<pallas_src>
import functools
import math

import jax
import jax.numpy as jnp
from jax.experimental import pallas as pl
from jax.experimental.pallas import tpu as pltpu

_LANE = 128        # vreg lane width
_SUBLANE = 8       # vreg sublane count
_TCHUNK_MAX = 64   # max timesteps resident per grid step


def _round_up(n, m):
    return (n + m - 1) // m * m


# ----------------------------------------------------------------------------
# Hardware queries (best effort, with safe fallbacks)
# ----------------------------------------------------------------------------
def _physical_vmem_bytes():
    try:
        return int(pltpu.get_tpu_info().vmem_capacity_bytes)
    except Exception:
        return 64 << 20            # v7x per-TC size: safe lower bound everywhere


def _num_tensorcores():
    """2 for megacore-style parts (v4 / v5p / v7x), 1 for v5e / v6e."""
    try:
        kind = jax.devices()[0].device_kind.lower()
    except Exception:
        return 1
    return 2 if ("v4" in kind or "v5p" in kind or "v7" in kind) else 1


# ----------------------------------------------------------------------------
# Kernels
# ----------------------------------------------------------------------------
def _lstm_chunk_scan(x_ref, wih_ref, whh_ref, b_ref, xproj_ref, h_ref, c_ref,
                     *, seq_len, t_chunk, unroll, mask_tail, hseq_ref=None):
    """Run one LSTM layer over one (Tc, Bb, Din) time chunk.

    x_ref:       (Tc, Bb, Din)   bf16 time-major input chunk
    wih_ref:     (Din, 4*Hs)     bf16 W_ih.T, gate g in lanes [g*Hs, g*Hs+H)
    whh_ref:     (Hs,  4*Hs)     bf16 W_hh.T, same gate layout
    b_ref:       (1,   4*Hs)     f32  b_ih + b_hh
    xproj_ref:   (Tc, Bb, 4*Hs)  f32  scratch: hoisted input projection
    h_ref/c_ref: (Bb, Hs)        f32  recurrent state carried across chunks
    hseq_ref:    (Tc, Bb, Hs)    optional bf16 per-timestep hidden output
    Returns the hidden state after this chunk, (Bb, Hs) f32.
    """
    t_blk = pl.program_id(1)
    Tc, Bb, Din = x_ref.shape
    Hs = whh_ref.shape[0]

    @pl.when(t_blk == 0)
    def _():
        h_ref[...] = jnp.zeros_like(h_ref)
        c_ref[...] = jnp.zeros_like(c_ref)

    # Hoisted input projection for the whole chunk: one big MXU matmul, bias
    # added once (outside the serial recurrence).
    xproj_ref[...] = (
        jnp.dot(x_ref[...].reshape(Tc * Bb, Din), wih_ref[...],
                preferred_element_type=jnp.float32)
        + b_ref[...]
    ).reshape(Tc, Bb, 4 * Hs)

    t0 = t_blk * t_chunk

    def step(tl, carry):
        h, c = carry
        # Serial dependence only carries the small h @ W_hh matmul.
        gates = xproj_ref[tl] + jnp.dot(h.astype(whh_ref.dtype), whh_ref[...],
                                        preferred_element_type=jnp.float32)
        # Lane-packed gate slices (PyTorch order i, f, g, o).
        i = jax.nn.sigmoid(gates[:, 0 * Hs:1 * Hs])
        f = jax.nn.sigmoid(gates[:, 1 * Hs:2 * Hs])
        g = jnp.tanh(gates[:, 2 * Hs:3 * Hs])
        o = jax.nn.sigmoid(gates[:, 3 * Hs:4 * Hs])
        c_new = f * c + i * g
        h_new = o * jnp.tanh(c_new)
        if mask_tail:
            # Tail-padded timesteps (t >= seq_len) must not advance the state.
            m = ((t0 + tl) < seq_len).astype(jnp.float32)
            h_new = h + m * (h_new - h)
            c_new = c + m * (c_new - c)
        if hseq_ref is not None:
            hseq_ref[tl] = h_new.astype(hseq_ref.dtype)
        return h_new, c_new

    h, c = jax.lax.fori_loop(0, Tc, step, (h_ref[...], c_ref[...]),
                             unroll=unroll)
    h_ref[...] = h
    c_ref[...] = c
    return h


def _lstm_seq_kernel(x_ref, wih_ref, whh_ref, b_ref, hseq_ref,
                     xproj_ref, h_ref, c_ref, *, seq_len, t_chunk, unroll,
                     mask_tail):
    """Intermediate LSTM layer: emits this chunk of the hidden-state sequence."""
    _lstm_chunk_scan(x_ref, wih_ref, whh_ref, b_ref, xproj_ref, h_ref, c_ref,
                     seq_len=seq_len, t_chunk=t_chunk, unroll=unroll,
                     mask_tail=mask_tail, hseq_ref=hseq_ref)


def _lstm_last_fc_kernel(x_ref, wih_ref, whh_ref, b_ref, fcw_ref, fcb_ref,
                         out_ref, xproj_ref, h_ref, c_ref, *, seq_len, t_chunk,
                         unroll, mask_tail):
    """Last LSTM layer fused with the Linear on the final hidden state."""
    h_last = _lstm_chunk_scan(x_ref, wih_ref, whh_ref, b_ref, xproj_ref,
                              h_ref, c_ref, seq_len=seq_len, t_chunk=t_chunk,
                              unroll=unroll, mask_tail=mask_tail)

    @pl.when(pl.program_id(1) == pl.num_programs(1) - 1)
    def _():
        out_ref[...] = (jnp.dot(h_last.astype(fcw_ref.dtype), fcw_ref[...],
                                preferred_element_type=jnp.float32)
                        + fcb_ref[...])


# ----------------------------------------------------------------------------
# Tiling policy
# ----------------------------------------------------------------------------
def _choose_tiles(batch, seq_len, din0_p, Hs, Op, n_layers, n_tc, vmem_budget,
                  t_chunk):
    """Pick (Bp, bb, Tc) so the per-step VMEM footprint fits the budget."""
    Bp = _round_up(max(batch, 1), _SUBLANE)
    if n_tc >= 2 and Bp >= 2 * _SUBLANE:
        # 2 TensorCores: force >= 2 batch tiles so the "parallel" axis uses both.
        bb = _round_up(pl.cdiv(Bp, n_tc), _SUBLANE)
    else:
        # 1 TensorCore: grid steps are serial, keep one large batch tile.
        bb = Bp
    if t_chunk is None:
        Tc = min(seq_len, _TCHUNK_MAX)
    else:
        Tc = max(1, min(t_chunk, seq_len))

    def footprint(bb_, tc_):
        fp = 2 * tc_ * bb_ * din0_p * 2              # x chunk (bf16), dbl-buffered
        fp += tc_ * bb_ * 4 * Hs * 4                 # xproj scratch (f32)
        fp += 2 * bb_ * Hs * 4                       # h / c scratch (f32)
        fp += (din0_p + Hs) * 4 * Hs * 2             # W_ih + W_hh (bf16, 1 buffer)
        fp += 4 * Hs * 4                             # fused bias (f32)
        fp += Hs * Op * 2 + Op * 4                   # FC weight (bf16) + bias
        fp += 2 * bb_ * Op * 4                       # out block (f32), dbl-buffered
        if n_layers > 1:
            fp += 2 * tc_ * bb_ * Hs * 2             # hseq chunk (bf16), dbl-buffered
        return fp

    while bb > _SUBLANE and footprint(bb, Tc) > vmem_budget:
        bb = _round_up(max(_SUBLANE, bb // 2), _SUBLANE)
    while Tc > 1 and footprint(bb, Tc) > vmem_budget:
        Tc = max(1, Tc // 2)

    Bp = _round_up(Bp, bb)
    return Bp, bb, Tc, footprint(bb, Tc)


# ----------------------------------------------------------------------------
# Wrapper
# ----------------------------------------------------------------------------
def net_forward(x, layer_params, fc_w_p, fc_b_p, output_dim, *,
                t_chunk=None, single_buffer_weights=True):
    """x: (B, T, D) float32 (batch_first, like PyTorch). Returns (B, output_dim)."""
    B, T, D = x.shape
    Hs = layer_params[0][1].shape[0]
    Op = fc_w_p.shape[1]
    din0_p = layer_params[0][0].shape[0]
    n_layers = len(layer_params)

    n_tc = _num_tensorcores()
    phys_vmem = _physical_vmem_bytes()
    Bp, bb, Tc, fp = _choose_tiles(B, T, din0_p, Hs, Op, n_layers, n_tc,
                                   int(0.5 * phys_vmem), t_chunk)
    Tp = _round_up(T, Tc)
    grid = (Bp // bb, Tp // Tc)
    unroll = int(min(Tc, 8))
    mask_tail = Tp != T

    # Scoped VMEM limit sized to the real resident footprint (plus headroom),
    # capped below the chip's physical VMEM.
    vmem_limit = int(min(phys_vmem * 0.9, max(2 * fp + (4 << 20), 16 << 20)))
    cparams = pltpu.CompilerParams(
        dimension_semantics=("parallel", "arbitrary"),
        vmem_limit_bytes=vmem_limit)

    # Time-major, zero-padded bf16 input: (Tp, Bp, Din0_p).
    x_tm = jnp.zeros((Tp, Bp, din0_p), jnp.bfloat16)
    x_tm = x_tm.at[:T, :B, :D].set(
        jnp.transpose(x, (1, 0, 2)).astype(jnp.bfloat16))

    def weight_spec(shape):
        index_map = lambda b, t: (0,) * len(shape)
        if single_buffer_weights:
            # Grid-invariant operand: the second pipeline buffer is pure VMEM waste.
            return pl.BlockSpec(shape, index_map, pipeline_mode=pl.Buffered(1))
        return pl.BlockSpec(shape, index_map)

    h_seq = x_tm
    out_padded = None
    for li, (wih_p, whh_p, b_p) in enumerate(layer_params):
        din_l = wih_p.shape[0]
        in_specs = [
            pl.BlockSpec((Tc, bb, din_l), lambda b, t: (t, b, 0)),
            weight_spec((din_l, 4 * Hs)),
            weight_spec((Hs, 4 * Hs)),
            weight_spec((1, 4 * Hs)),
        ]
        scratch = [pltpu.VMEM((Tc, bb, 4 * Hs), jnp.float32),   # xproj
                   pltpu.VMEM((bb, Hs), jnp.float32),           # h carry
                   pltpu.VMEM((bb, Hs), jnp.float32)]           # c carry
        static = dict(seq_len=T, t_chunk=Tc, unroll=unroll, mask_tail=mask_tail)

        if li < n_layers - 1:
            # Intermediate layer: write this chunk of the hidden sequence (bf16
            # halves the HBM round trip).  Further fusion of stacked layers into
            # one pallas_call (hseq ping-pong in VMEM) is possible but kept as
            # separate calls for clarity.
            h_seq = pl.pallas_call(
                functools.partial(_lstm_seq_kernel, **static),
                out_shape=jax.ShapeDtypeStruct((Tp, Bp, Hs), jnp.bfloat16),
                grid=grid,
                in_specs=in_specs,
                out_specs=pl.BlockSpec((Tc, bb, Hs), lambda b, t: (t, b, 0)),
                scratch_shapes=scratch,
                compiler_params=cparams,
            )(h_seq, wih_p, whh_p, b_p)
        else:
            # Last layer: fused FC on h_T, no hseq HBM round trip.
            out_padded = pl.pallas_call(
                functools.partial(_lstm_last_fc_kernel, **static),
                out_shape=jax.ShapeDtypeStruct((Bp, Op), jnp.float32),
                grid=grid,
                in_specs=in_specs + [weight_spec((Hs, Op)),
                                     weight_spec((1, Op))],
                out_specs=pl.BlockSpec((bb, Op), lambda b, t: (b, 0)),
                scratch_shapes=scratch,
                compiler_params=cparams,
            )(h_seq, wih_p, whh_p, b_p, fc_w_p, fc_b_p)

    return out_padded[:B, :output_dim]


# ----------------------------------------------------------------------------
# Parameters (PyTorch-shaped raw params -> packed, lane-aligned kernel layout)
# ----------------------------------------------------------------------------
def init_params(key, input_dim, hidden_dim, output_dim, layers):
    """Deterministic synthetic init mirroring PyTorch LSTM/Linear shapes."""
    k = 1.0 / math.sqrt(hidden_dim)
    raw_layers = []
    for layer in range(layers):
        din = input_dim if layer == 0 else hidden_dim
        key, k1, k2, k3, k4 = jax.random.split(key, 5)
        w_ih = jax.random.uniform(k1, (4 * hidden_dim, din), jnp.float32, -k, k)
        w_hh = jax.random.uniform(k2, (4 * hidden_dim, hidden_dim), jnp.float32, -k, k)
        b_ih = jax.random.uniform(k3, (4 * hidden_dim,), jnp.float32, -k, k)
        b_hh = jax.random.uniform(k4, (4 * hidden_dim,), jnp.float32, -k, k)
        raw_layers.append((w_ih, w_hh, b_ih, b_hh))
    key, k5, k6 = jax.random.split(key, 3)
    fc_w = jax.random.uniform(k5, (output_dim, hidden_dim), jnp.float32, -k, k)
    fc_b = jax.random.uniform(k6, (output_dim,), jnp.float32, -k, k)
    return raw_layers, fc_w, fc_b


def pad_params(raw_layers, fc_w, fc_b, input_dim, hidden_dim, output_dim):
    """Transpose + zero-pad params into a packed gate layout: gate g occupies
    lanes [g*Hs, g*Hs + H) where Hs = round_up(H, 32) (so the gate axis is only
    4*Hs lanes — 128 for H<=32 — instead of 4*round_up(H,128)).  Zero padding
    keeps padded hidden lanes exactly 0 through the recurrence, so results
    match the unpadded math.  Matmul operands are stored in bf16."""
    H = hidden_dim
    Hs = _round_up(H, 32) if H <= _LANE else _round_up(H, _LANE)
    Op = _round_up(output_dim, _LANE)
    layer_params = []
    for li, (w_ih, w_hh, b_ih, b_hh) in enumerate(raw_layers):
        din = input_dim if li == 0 else hidden_dim
        din_p = _round_up(din, _LANE) if li == 0 else Hs
        wih_t = w_ih.T            # (din, 4H)
        whh_t = w_hh.T            # (H,   4H)
        bias = b_ih + b_hh        # (4H,)
        wih_p = jnp.zeros((din_p, 4 * Hs), jnp.float32)
        whh_p = jnp.zeros((Hs, 4 * Hs), jnp.float32)
        b_p = jnp.zeros((1, 4 * Hs), jnp.float32)
        for g in range(4):        # PyTorch gate order: i, f, g, o
            wih_p = wih_p.at[:din, g * Hs:g * Hs + H].set(wih_t[:, g * H:(g + 1) * H])
            whh_p = whh_p.at[:H, g * Hs:g * Hs + H].set(whh_t[:, g * H:(g + 1) * H])
            b_p = b_p.at[:, g * Hs:g * Hs + H].set(bias[None, g * H:(g + 1) * H])
        layer_params.append((wih_p.astype(jnp.bfloat16),
                             whh_p.astype(jnp.bfloat16),
                             b_p))
    fc_w_p = (jnp.zeros((Hs, Op), jnp.float32)
              .at[:H, :output_dim].set(fc_w.T).astype(jnp.bfloat16))
    fc_b_p = jnp.zeros((1, Op), jnp.float32).at[:, :output_dim].set(fc_b[None, :])
    return layer_params, fc_w_p, fc_b_p


# ----------------------------------------------------------------------------
# Pure-JAX reference (PyTorch semantics) for a correctness sanity check
# ----------------------------------------------------------------------------
def _reference_forward(x, raw_layers, fc_w, fc_b, hidden_dim):
    B, T, _ = x.shape
    H = hidden_dim
    hi = jax.lax.Precision.HIGHEST
    h_seq = x
    for (w_ih, w_hh, b_ih, b_hh) in raw_layers:
        h = jnp.zeros((B, H), jnp.float32)
        c = jnp.zeros((B, H), jnp.float32)
        outs = []
        for t in range(T):
            gates = (jnp.dot(h_seq[:, t, :], w_ih.T, precision=hi)
                     + jnp.dot(h, w_hh.T, precision=hi) + b_ih + b_hh)
            i = jax.nn.sigmoid(gates[:, 0 * H:1 * H])
            f = jax.nn.sigmoid(gates[:, 1 * H:2 * H])
            g = jnp.tanh(gates[:, 2 * H:3 * H])
            o = jax.nn.sigmoid(gates[:, 3 * H:4 * H])
            c = f * c + i * g
            h = o * jnp.tanh(c)
            outs.append(h)
        h_seq = jnp.stack(outs, axis=1)
    return jnp.dot(h_seq[:, -1, :], fc_w.T, precision=hi) + fc_b


if __name__ == "__main__":
    # Shapes implied by the lab: 5 input features, hidden_dim=10, output_dim=1,
    # num_layers=1; small batch / sequence for the demo.
    batch, seq_len = 2, 8
    input_dim, hidden_dim, output_dim = 5, 10, 1

    key = jax.random.PRNGKey(0)
    key, xkey = jax.random.split(key)
    x = jax.random.normal(xkey, (batch, seq_len, input_dim), jnp.float32)

    def run_and_check(layers, **kwargs):
        raw_layers, fc_w, fc_b = init_params(jax.random.PRNGKey(layers),
                                             input_dim, hidden_dim,
                                             output_dim, layers)
        lp, fw, fb = pad_params(raw_layers, fc_w, fc_b, input_dim, hidden_dim,
                                output_dim)
        out = net_forward(x, lp, fw, fb, output_dim, **kwargs)
        out = jax.block_until_ready(out)
        assert out.shape == (batch, output_dim), out.shape
        ref = _reference_forward(x, raw_layers, fc_w, fc_b, hidden_dim)
        assert jnp.allclose(out, ref, atol=2e-2, rtol=2e-2), (out, ref)

    # Primary lab config: 1 LSTM layer + Linear on the last timestep.
    try:
        run_and_check(layers=1, single_buffer_weights=True)
        sbw = True
    except Exception:
        # Fallback in case this JAX build rejects single-buffered
        # (pl.Buffered(1)) weight operands.
        run_and_check(layers=1, single_buffer_weights=False)
        sbw = False

    # Exercise the time-chunked grid path (tail-chunk masking, h/c carried in
    # scratch across chunks) and the stacked-layer (hseq-emitting) kernel.
    run_and_check(layers=1, t_chunk=3, single_buffer_weights=sbw)
    run_and_check(layers=2, single_buffer_weights=sbw)

    print("KERNEL_OK")
</pallas_src>

<mosaic_0001>
module attributes {stable_mosaic.version = 11 : i64} {
  func.func @_lstm_last_fc_kernel(%arg0: i32, %arg1: i32, %arg2: memref<8x8x128xbf16, #tpu.memory_space<vmem>>, %arg3: memref<128x128xbf16, #tpu.memory_space<vmem>>, %arg4: memref<32x128xbf16, #tpu.memory_space<vmem>>, %arg5: memref<1x128xf32, #tpu.memory_space<vmem>>, %arg6: memref<32x128xbf16, #tpu.memory_space<vmem>>, %arg7: memref<1x128xf32, #tpu.memory_space<vmem>>, %arg8: memref<8x128xf32, #tpu.memory_space<vmem>>, %arg9: memref<8x8x128xf32, #tpu.memory_space<vmem>>, %arg10: memref<8x32xf32, #tpu.memory_space<vmem>>, %arg11: memref<8x32xf32, #tpu.memory_space<vmem>>) attributes {dimension_semantics = [#tpu.dimension_semantics<parallel>, #tpu.dimension_semantics<arbitrary>], iteration_bounds = array<i64: 1, 1>, scalar_prefetch = 0 : i64, scratch_operands = 3 : i64, tpu.core_type = #tpu.core_type<tc>, window_params = [{transform_indices = @transform_0, window_bounds = array<i64: 8, 8, 128>}, {pipeline_mode = #tpu.pipeline_mode<synchronous>, transform_indices = @transform_1, window_bounds = array<i64: 128, 128>}, {pipeline_mode = #tpu.pipeline_mode<synchronous>, transform_indices = @transform_2, window_bounds = array<i64: 32, 128>}, {pipeline_mode = #tpu.pipeline_mode<synchronous>, transform_indices = @transform_3, window_bounds = array<i64: 1, 128>}, {pipeline_mode = #tpu.pipeline_mode<synchronous>, transform_indices = @transform_4, window_bounds = array<i64: 32, 128>}, {pipeline_mode = #tpu.pipeline_mode<synchronous>, transform_indices = @transform_5, window_bounds = array<i64: 1, 128>}, {transform_indices = @transform_6, window_bounds = array<i64: 8, 128>}]} {
    %c0_i32 = arith.constant 0 : i32
    %0 = arith.cmpi eq, %arg1, %c0_i32 : i32
    %1 = arith.extui %0 : i1 to i32
    %c0_i32_0 = arith.constant 0 : i32
    %2 = arith.cmpi ne, %1, %c0_i32_0 : i32
    scf.if %2 {
      %cst_85 = arith.constant 0.000000e+00 : f32
      %275 = vector.broadcast %cst_85 : f32 to vector<8x32xf32>
      %c0_86 = arith.constant 0 : index
      %c0_87 = arith.constant 0 : index
      %276 = vector.load %arg10[%c0_86, %c0_87] : memref<8x32xf32, #tpu.memory_space<vmem>>, vector<8x32xf32>
      tpu.vector_store %arg10[%c0_86, %c0_87], %275 {strides = array<i32>} : memref<8x32xf32, #tpu.memory_space<vmem>>, vector<8x32xf32>,
      %cst_88 = arith.constant 0.000000e+00 : f32
      %277 = vector.broadcast %cst_88 : f32 to vector<8x32xf32>
      %c0_89 = arith.constant 0 : index
      %c0_90 = arith.constant 0 : index
      %278 = vector.load %arg11[%c0_89, %c0_90] : memref<8x32xf32, #tpu.memory_space<vmem>>, vector<8x32xf32>
      tpu.vector_store %arg11[%c0_89, %c0_90], %277 {strides = array<i32>} : memref<8x32xf32, #tpu.memory_space<vmem>>, vector<8x32xf32>,
    } else {
    }
    %c0 = arith.constant 0 : index
    %c0_1 = arith.constant 0 : index
    %c0_2 = arith.constant 0 : index
    %3 = vector.load %arg2[%c0, %c0_1, %c0_2] : memref<8x8x128xbf16, #tpu.memory_space<vmem>>, vector<8x8x128xbf16>
    %4 = vector.shape_cast %3 : vector<8x8x128xbf16> to vector<64x128xbf16>
    %c0_3 = arith.constant 0 : index
    %c0_4 = arith.constant 0 : index
    %5 = vector.load %arg3[%c0_3, %c0_4] : memref<128x128xbf16, #tpu.memory_space<vmem>>, vector<128x128xbf16>
    %cst = arith.constant dense<0.000000e+00> : vector<64x128xf32>
    %6 = tpu.matmul %4, %5, %cst {dimension_numbers = #tpu.dot_dimension_numbers<[1], [0], [0], [1], [0, 0, 1, 1], [], []>} : vector<64x128xbf16>, vector<128x128xbf16>, vector<64x128xf32> -> vector<64x128xf32>
    %c0_5 = arith.constant 0 : index
    %c0_6 = arith.constant 0 : index
    %7 = vector.load %arg5[%c0_5, %c0_6] : memref<1x128xf32, #tpu.memory_space<vmem>>, vector<1x128xf32>
    %8 = vector.broadcast %7 : vector<1x128xf32> to vector<64x128xf32>
    %9 = arith.addf %6, %8 : vector<64x128xf32>
    %10 = vector.shape_cast %9 : vector<64x128xf32> to vector<8x8x128xf32>
    %c0_7 = arith.constant 0 : index
    %c0_8 = arith.constant 0 : index
    %c0_9 = arith.constant 0 : index
    %11 = vector.load %arg9[%c0_7, %c0_8, %c0_9] : memref<8x8x128xf32, #tpu.memory_space<vmem>>, vector<8x8x128xf32>
    tpu.vector_store %arg9[%c0_7, %c0_8, %c0_9], %10 {strides = array<i32>} : memref<8x8x128xf32, #tpu.memory_space<vmem>>, vector<8x8x128xf32>,
    %c0_10 = arith.constant 0 : index
    %c0_11 = arith.constant 0 : index
    %12 = vector.load %arg10[%c0_10, %c0_11] : memref<8x32xf32, #tpu.memory_space<vmem>>, vector<8x32xf32>
    %c0_12 = arith.constant 0 : index
    %c0_13 = arith.constant 0 : index
    %13 = vector.load %arg11[%c0_12, %c0_13] : memref<8x32xf32, #tpu.memory_space<vmem>>, vector<8x32xf32>
    %c0_i32_14 = arith.constant 0 : i32
    %14 = arith.index_cast %c0_i32_14 : i32 to index
    %c0_15 = arith.constant 0 : index
    %c0_16 = arith.constant 0 : index
    %15 = vector.load %arg9[%14, %c0_15, %c0_16] : memref<8x8x128xf32, #tpu.memory_space<vmem>>, vector<1x8x128xf32>
    %16 = vector.shape_cast %15 : vector<1x8x128xf32> to vector<8x128xf32>
    %17 = arith.truncf %12 : vector<8x32xf32> to vector<8x32xbf16>
    %c0_17 = arith.constant 0 : index
    %c0_18 = arith.constant 0 : index
    %18 = vector.load %arg4[%c0_17, %c0_18] : memref<32x128xbf16, #tpu.memory_space<vmem>>, vector<32x128xbf16>
    %cst_19 = arith.constant dense<0.000000e+00> : vector<8x128xf32>
    %19 = tpu.matmul %17, %18, %cst_19 {dimension_numbers = #tpu.dot_dimension_numbers<[1], [0], [0], [1], [0, 0, 1, 1], [], []>} : vector<8x32xbf16>, vector<32x128xbf16>, vector<8x128xf32> -> vector<8x128xf32>
    %20 = arith.addf %16, %19 : vector<8x128xf32>
    %21 = vector.extract_strided_slice %20 {offsets = [0, 0], sizes = [8, 32], strides = [1, 1]} : vector<8x128xf32> to vector<8x32xf32>
    %22 = arith.negf %21 : vector<8x32xf32>
    %23 = math.exp %22 : vector<8x32xf32>
    %cst_20 = arith.constant 1.000000e+00 : f32
    %24 = vector.broadcast %cst_20 : f32 to vector<8x32xf32>
    %25 = arith.addf %24, %23 : vector<8x32xf32>
    %26 = arith.divf %24, %25 : vector<8x32xf32>
    %27 = vector.extract_strided_slice %20 {offsets = [0, 32], sizes = [8, 32], strides = [1, 1]} : vector<8x128xf32> to vector<8x32xf32>
    %28 = arith.negf %27 : vector<8x32xf32>
    %29 = math.exp %28 : vector<8x32xf32>
    %cst_21 = arith.constant 1.000000e+00 : f32
    %30 = vector.broadcast %cst_21 : f32 to vector<8x32xf32>
    %31 = arith.addf %30, %29 : vector<8x32xf32>
    %32 = arith.divf %30, %31 : vector<8x32xf32>
    %33 = vector.extract_strided_slice %20 {offsets = [0, 64], sizes = [8, 32], strides = [1, 1]} : vector<8x128xf32> to vector<8x32xf32>
    %34 = math.tanh %33 : vector<8x32xf32>
    %35 = vector.extract_strided_slice %20 {offsets = [0, 96], sizes = [8, 32], strides = [1, 1]} : vector<8x128xf32> to vector<8x32xf32>
    %36 = arith.negf %35 : vector<8x32xf32>
    %37 = math.exp %36 : vector<8x32xf32>
    %cst_22 = arith.constant 1.000000e+00 : f32
    %38 = vector.broadcast %cst_22 : f32 to vector<8x32xf32>
    %39 = arith.addf %38, %37 : vector<8x32xf32>
    %40 = arith.divf %38, %39 : vector<8x32xf32>
    %41 = arith.mulf %32, %13 : vector<8x32xf32>
    %42 = arith.mulf %26, %34 : vector<8x32xf32>
    %43 = arith.addf %41, %42 : vector<8x32xf32>
    %44 = math.tanh %43 : vector<8x32xf32>
    %45 = arith.mulf %40, %44 : vector<8x32xf32>
    %c1_i32 = arith.constant 1 : i32
    %46 = arith.index_cast %c1_i32 : i32 to index
    %c0_23 = arith.constant 0 : index
    %c0_24 = arith.constant 0 : index
    %47 = vector.load %arg9[%46, %c0_23, %c0_24] : memref<8x8x128xf32, #tpu.memory_space<vmem>>, vector<1x8x128xf32>
    %48 = vector.shape_cast %47 : vector<1x8x128xf32> to vector<8x128xf32>
    %49 = arith.truncf %45 : vector<8x32xf32> to vector<8x32xbf16>
    %c0_25 = arith.constant 0 : index
    %c0_26 = arith.constant 0 : index
    %50 = vector.load %arg4[%c0_25, %c0_26] : memref<32x128xbf16, #tpu.memory_space<vmem>>, vector<32x128xbf16>
    %cst_27 = arith.constant dense<0.000000e+00> : vector<8x128xf32>
    %51 = tpu.matmul %49, %50, %cst_27 {dimension_numbers = #tpu.dot_dimension_numbers<[1], [0], [0], [1], [0, 0, 1, 1], [], []>} : vector<8x32xbf16>, vector<32x128xbf16>, vector<8x128xf32> -> vector<8x128xf32>
    %52 = arith.addf %48, %51 : vector<8x128xf32>
    %53 = vector.extract_strided_slice %52 {offsets = [0, 0], sizes = [8, 32], strides = [1, 1]} : vector<8x128xf32> to vector<8x32xf32>
    %54 = arith.negf %53 : vector<8x32xf32>
    %55 = math.exp %54 : vector<8x32xf32>
    %cst_28 = arith.constant 1.000000e+00 : f32
    %56 = vector.broadcast %cst_28 : f32 to vector<8x32xf32>
    %57 = arith.addf %56, %55 : vector<8x32xf32>
    %58 = arith.divf %56, %57 : vector<8x32xf32>
    %59 = vector.extract_strided_slice %52 {offsets = [0, 32], sizes = [8, 32], strides = [1, 1]} : vector<8x128xf32> to vector<8x32xf32>
    %60 = arith.negf %59 : vector<8x32xf32>
    %61 = math.exp %60 : vector<8x32xf32>
    %cst_29 = arith.constant 1.000000e+00 : f32
    %62 = vector.broadcast %cst_29 : f32 to vector<8x32xf32>
    %63 = arith.addf %62, %61 : vector<8x32xf32>
    %64 = arith.divf %62, %63 : vector<8x32xf32>
    %65 = vector.extract_strided_slice %52 {offsets = [0, 64], sizes = [8, 32], strides = [1, 1]} : vector<8x128xf32> to vector<8x32xf32>
    %66 = math.tanh %65 : vector<8x32xf32>
    %67 = vector.extract_strided_slice %52 {offsets = [0, 96], sizes = [8, 32], strides = [1, 1]} : vector<8x128xf32> to vector<8x32xf32>
    %68 = arith.negf %67 : vector<8x32xf32>
    %69 = math.exp %68 : vector<8x32xf32>
    %cst_30 = arith.constant 1.000000e+00 : f32
    %70 = vector.broadcast %cst_30 : f32 to vector<8x32xf32>
    %71 = arith.addf %70, %69 : vector<8x32xf32>
    %72 = arith.divf %70, %71 : vector<8x32xf32>
    %73 = arith.mulf %64, %43 : vector<8x32xf32>
    %74 = arith.mulf %58, %66 : vector<8x32xf32>
    %75 = arith.addf %73, %74 : vector<8x32xf32>
    %76 = math.tanh %75 : vector<8x32xf32>
    %77 = arith.mulf %72, %76 : vector<8x32xf32>
    %c2_i32 = arith.constant 2 : i32
    %78 = arith.index_cast %c2_i32 : i32 to index
    %c0_31 = arith.constant 0 : index
    %c0_32 = arith.constant 0 : index
    %79 = vector.load %arg9[%78, %c0_31, %c0_32] : memref<8x8x128xf32, #tpu.memory_space<vmem>>, vector<1x8x128xf32>
    %80 = vector.shape_cast %79 : vector<1x8x128xf32> to vector<8x128xf32>
    %81 = arith.truncf %77 : vector<8x32xf32> to vector<8x32xbf16>
    %c0_33 = arith.constant 0 : index
    %c0_34 = arith.constant 0 : index
    %82 = vector.load %arg4[%c0_33, %c0_34] : memref<32x128xbf16, #tpu.memory_space<vmem>>, vector<32x128xbf16>
    %cst_35 = arith.constant dense<0.000000e+00> : vector<8x128xf32>
    %83 = tpu.matmul %81, %82, %cst_35 {dimension_numbers = #tpu.dot_dimension_numbers<[1], [0], [0], [1], [0, 0, 1, 1], [], []>} : vector<8x32xbf16>, vector<32x128xbf16>, vector<8x128xf32> -> vector<8x128xf32>
    %84 = arith.addf %80, %83 : vector<8x128xf32>
    %85 = vector.extract_strided_slice %84 {offsets = [0, 0], sizes = [8, 32], strides = [1, 1]} : vector<8x128xf32> to vector<8x32xf32>
    %86 = arith.negf %85 : vector<8x32xf32>
    %87 = math.exp %86 : vector<8x32xf32>
    %cst_36 = arith.constant 1.000000e+00 : f32
    %88 = vector.broadcast %cst_36 : f32 to vector<8x32xf32>
    %89 = arith.addf %88, %87 : vector<8x32xf32>
    %90 = arith.divf %88, %89 : vector<8x32xf32>
    %91 = vector.extract_strided_slice %84 {offsets = [0, 32], sizes = [8, 32], strides = [1, 1]} : vector<8x128xf32> to vector<8x32xf32>
    %92 = arith.negf %91 : vector<8x32xf32>
    %93 = math.exp %92 : vector<8x32xf32>
    %cst_37 = arith.constant 1.000000e+00 : f32
    %94 = vector.broadcast %cst_37 : f32 to vector<8x32xf32>
    %95 = arith.addf %94, %93 : vector<8x32xf32>
    %96 = arith.divf %94, %95 : vector<8x32xf32>
    %97 = vector.extract_strided_slice %84 {offsets = [0, 64], sizes = [8, 32], strides = [1, 1]} : vector<8x128xf32> to vector<8x32xf32>
    %98 = math.tanh %97 : vector<8x32xf32>
    %99 = vector.extract_strided_slice %84 {offsets = [0, 96], sizes = [8, 32], strides = [1, 1]} : vector<8x128xf32> to vector<8x32xf32>
    %100 = arith.negf %99 : vector<8x32xf32>
    %101 = math.exp %100 : vector<8x32xf32>
    %cst_38 = arith.constant 1.000000e+00 : f32
    %102 = vector.broadcast %cst_38 : f32 to vector<8x32xf32>
    %103 = arith.addf %102, %101 : vector<8x32xf32>
    %104 = arith.divf %102, %103 : vector<8x32xf32>
    %105 = arith.mulf %96, %75 : vector<8x32xf32>
    %106 = arith.mulf %90, %98 : vector<8x32xf32>
    %107 = arith.addf %105, %106 : vector<8x32xf32>
    %108 = math.tanh %107 : vector<8x32xf32>
    %109 = arith.mulf %104, %108 : vector<8x32xf32>
    %c3_i32 = arith.constant 3 : i32
    %110 = arith.index_cast %c3_i32 : i32 to index
    %c0_39 = arith.constant 0 : index
    %c0_40 = arith.constant 0 : index
    %111 = vector.load %arg9[%110, %c0_39, %c0_40] : memref<8x8x128xf32, #tpu.memory_space<vmem>>, vector<1x8x128xf32>
    %112 = vector.shape_cast %111 : vector<1x8x128xf32> to vector<8x128xf32>
    %113 = arith.truncf %109 : vector<8x32xf32> to vector<8x32xbf16>
    %c0_41 = arith.constant 0 : index
    %c0_42 = arith.constant 0 : index
    %114 = vector.load %arg4[%c0_41, %c0_42] : memref<32x128xbf16, #tpu.memory_space<vmem>>, vector<32x128xbf16>
    %cst_43 = arith.constant dense<0.000000e+00> : vector<8x128xf32>
    %115 = tpu.matmul %113, %114, %cst_43 {dimension_numbers = #tpu.dot_dimension_numbers<[1], [0], [0], [1], [0, 0, 1, 1], [], []>} : vector<8x32xbf16>, vector<32x128xbf16>, vector<8x128xf32> -> vector<8x128xf32>
    %116 = arith.addf %112, %115 : vector<8x128xf32>
    %117 = vector.extract_strided_slice %116 {offsets = [0, 0], sizes = [8, 32], strides = [1, 1]} : vector<8x128xf32> to vector<8x32xf32>
    %118 = arith.negf %117 : vector<8x32xf32>
    %119 = math.exp %118 : vector<8x32xf32>
    %cst_44 = arith.constant 1.000000e+00 : f32
    %120 = vector.broadcast %cst_44 : f32 to vector<8x32xf32>
    %121 = arith.addf %120, %119 : vector<8x32xf32>
    %122 = arith.divf %120, %121 : vector<8x32xf32>
    %123 = vector.extract_strided_slice %116 {offsets = [0, 32], sizes = [8, 32], strides = [1, 1]} : vector<8x128xf32> to vector<8x32xf32>
    %124 = arith.negf %123 : vector<8x32xf32>
    %125 = math.exp %124 : vector<8x32xf32>
    %cst_45 = arith.constant 1.000000e+00 : f32
    %126 = vector.broadcast %cst_45 : f32 to vector<8x32xf32>
    %127 = arith.addf %126, %125 : vector<8x32xf32>
    %128 = arith.divf %126, %127 : vector<8x32xf32>
    %129 = vector.extract_strided_slice %116 {offsets = [0, 64], sizes = [8, 32], strides = [1, 1]} : vector<8x128xf32> to vector<8x32xf32>
    %130 = math.tanh %129 : vector<8x32xf32>
    %131 = vector.extract_strided_slice %116 {offsets = [0, 96], sizes = [8, 32], strides = [1, 1]} : vector<8x128xf32> to vector<8x32xf32>
    %132 = arith.negf %131 : vector<8x32xf32>
    %133 = math.exp %132 : vector<8x32xf32>
    %cst_46 = arith.constant 1.000000e+00 : f32
    %134 = vector.broadcast %cst_46 : f32 to vector<8x32xf32>
    %135 = arith.addf %134, %133 : vector<8x32xf32>
    %136 = arith.divf %134, %135 : vector<8x32xf32>
    %137 = arith.mulf %128, %107 : vector<8x32xf32>
    %138 = arith.mulf %122, %130 : vector<8x32xf32>
    %139 = arith.addf %137, %138 : vector<8x32xf32>
    %140 = math.tanh %139 : vector<8x32xf32>
    %141 = arith.mulf %136, %140 : vector<8x32xf32>
    %c4_i32 = arith.constant 4 : i32
    %142 = arith.index_cast %c4_i32 : i32 to index
    %c0_47 = arith.constant 0 : index
    %c0_48 = arith.constant 0 : index
    %143 = vector.load %arg9[%142, %c0_47, %c0_48] : memref<8x8x128xf32, #tpu.memory_space<vmem>>, vector<1x8x128xf32>
    %144 = vector.shape_cast %143 : vector<1x8x128xf32> to vector<8x128xf32>
    %145 = arith.truncf %141 : vector<8x32xf32> to vector<8x32xbf16>
    %c0_49 = arith.constant 0 : index
    %c0_50 = arith.constant 0 : index
    %146 = vector.load %arg4[%c0_49, %c0_50] : memref<32x128xbf16, #tpu.memory_space<vmem>>, vector<32x128xbf16>
    %cst_51 = arith.constant dense<0.000000e+00> : vector<8x128xf32>
    %147 = tpu.matmul %145, %146, %cst_51 {dimension_numbers = #tpu.dot_dimension_numbers<[1], [0], [0], [1], [0, 0, 1, 1], [], []>} : vector<8x32xbf16>, vector<32x128xbf16>, vector<8x128xf32> -> vector<8x128xf32>
    %148 = arith.addf %144, %147 : vector<8x128xf32>
    %149 = vector.extract_strided_slice %148 {offsets = [0, 0], sizes = [8, 32], strides = [1, 1]} : vector<8x128xf32> to vector<8x32xf32>
    %150 = arith.negf %149 : vector<8x32xf32>
    %151 = math.exp %150 : vector<8x32xf32>
    %cst_52 = arith.constant 1.000000e+00 : f32
    %152 = vector.broadcast %cst_52 : f32 to vector<8x32xf32>
    %153 = arith.addf %152, %151 : vector<8x32xf32>
    %154 = arith.divf %152, %153 : vector<8x32xf32>
    %155 = vector.extract_strided_slice %148 {offsets = [0, 32], sizes = [8, 32], strides = [1, 1]} : vector<8x128xf32> to vector<8x32xf32>
    %156 = arith.negf %155 : vector<8x32xf32>
    %157 = math.exp %156 : vector<8x32xf32>
    %cst_53 = arith.constant 1.000000e+00 : f32
    %158 = vector.broadcast %cst_53 : f32 to vector<8x32xf32>
    %159 = arith.addf %158, %157 : vector<8x32xf32>
    %160 = arith.divf %158, %159 : vector<8x32xf32>
    %161 = vector.extract_strided_slice %148 {offsets = [0, 64], sizes = [8, 32], strides = [1, 1]} : vector<8x128xf32> to vector<8x32xf32>
    %162 = math.tanh %161 : vector<8x32xf32>
    %163 = vector.extract_strided_slice %148 {offsets = [0, 96], sizes = [8, 32], strides = [1, 1]} : vector<8x128xf32> to vector<8x32xf32>
    %164 = arith.negf %163 : vector<8x32xf32>
    %165 = math.exp %164 : vector<8x32xf32>
    %cst_54 = arith.constant 1.000000e+00 : f32
    %166 = vector.broadcast %cst_54 : f32 to vector<8x32xf32>
    %167 = arith.addf %166, %165 : vector<8x32xf32>
    %168 = arith.divf %166, %167 : vector<8x32xf32>
    %169 = arith.mulf %160, %139 : vector<8x32xf32>
    %170 = arith.mulf %154, %162 : vector<8x32xf32>
    %171 = arith.addf %169, %170 : vector<8x32xf32>
    %172 = math.tanh %171 : vector<8x32xf32>
    %173 = arith.mulf %168, %172 : vector<8x32xf32>
    %c5_i32 = arith.constant 5 : i32
    %174 = arith.index_cast %c5_i32 : i32 to index
    %c0_55 = arith.constant 0 : index
    %c0_56 = arith.constant 0 : index
    %175 = vector.load %arg9[%174, %c0_55, %c0_56] : memref<8x8x128xf32, #tpu.memory_space<vmem>>, vector<1x8x128xf32>
    %176 = vector.shape_cast %175 : vector<1x8x128xf32> to vector<8x128xf32>
    %177 = arith.truncf %173 : vector<8x32xf32> to vector<8x32xbf16>
    %c0_57 = arith.constant 0 : index
    %c0_58 = arith.constant 0 : index
    %178 = vector.load %arg4[%c0_57, %c0_58] : memref<32x128xbf16, #tpu.memory_space<vmem>>, vector<32x128xbf16>
    %cst_59 = arith.constant dense<0.000000e+00> : vector<8x128xf32>
    %179 = tpu.matmul %177, %178, %cst_59 {dimension_numbers = #tpu.dot_dimension_numbers<[1], [0], [0], [1], [0, 0, 1, 1], [], []>} : vector<8x32xbf16>, vector<32x128xbf16>, vector<8x128xf32> -> vector<8x128xf32>
    %180 = arith.addf %176, %179 : vector<8x128xf32>
    %181 = vector.extract_strided_slice %180 {offsets = [0, 0], sizes = [8, 32], strides = [1, 1]} : vector<8x128xf32> to vector<8x32xf32>
    %182 = arith.negf %181 : vector<8x32xf32>
    %183 = math.exp %182 : vector<8x32xf32>
    %cst_60 = arith.constant 1.000000e+00 : f32
    %184 = vector.broadcast %cst_60 : f32 to vector<8x32xf32>
    %185 = arith.addf %184, %183 : vector<8x32xf32>
    %186 = arith.divf %184, %185 : vector<8x32xf32>
    %187 = vector.extract_strided_slice %180 {offsets = [0, 32], sizes = [8, 32], strides = [1, 1]} : vector<8x128xf32> to vector<8x32xf32>
    %188 = arith.negf %187 : vector<8x32xf32>
    %189 = math.exp %188 : vector<8x32xf32>
    %cst_61 = arith.constant 1.000000e+00 : f32
    %190 = vector.broadcast %cst_61 : f32 to vector<8x32xf32>
    %191 = arith.addf %190, %189 : vector<8x32xf32>
    %192 = arith.divf %190, %191 : vector<8x32xf32>
    %193 = vector.extract_strided_slice %180 {offsets = [0, 64], sizes = [8, 32], strides = [1, 1]} : vector<8x128xf32> to vector<8x32xf32>
    %194 = math.tanh %193 : vector<8x32xf32>
    %195 = vector.extract_strided_slice %180 {offsets = [0, 96], sizes = [8, 32], strides = [1, 1]} : vector<8x128xf32> to vector<8x32xf32>
    %196 = arith.negf %195 : vector<8x32xf32>
    %197 = math.exp %196 : vector<8x32xf32>
    %cst_62 = arith.constant 1.000000e+00 : f32
    %198 = vector.broadcast %cst_62 : f32 to vector<8x32xf32>
    %199 = arith.addf %198, %197 : vector<8x32xf32>
    %200 = arith.divf %198, %199 : vector<8x32xf32>
    %201 = arith.mulf %192, %171 : vector<8x32xf32>
    %202 = arith.mulf %186, %194 : vector<8x32xf32>
    %203 = arith.addf %201, %202 : vector<8x32xf32>
    %204 = math.tanh %203 : vector<8x32xf32>
    %205 = arith.mulf %200, %204 : vector<8x32xf32>
    %c6_i32 = arith.constant 6 : i32
    %206 = arith.index_cast %c6_i32 : i32 to index
    %c0_63 = arith.constant 0 : index
    %c0_64 = arith.constant 0 : index
    %207 = vector.load %arg9[%206, %c0_63, %c0_64] : memref<8x8x128xf32, #tpu.memory_space<vmem>>, vector<1x8x128xf32>
    %208 = vector.shape_cast %207 : vector<1x8x128xf32> to vector<8x128xf32>
    %209 = arith.truncf %205 : vector<8x32xf32> to vector<8x32xbf16>
    %c0_65 = arith.constant 0 : index
    %c0_66 = arith.constant 0 : index
    %210 = vector.load %arg4[%c0_65, %c0_66] : memref<32x128xbf16, #tpu.memory_space<vmem>>, vector<32x128xbf16>
    %cst_67 = arith.constant dense<0.000000e+00> : vector<8x128xf32>
    %211 = tpu.matmul %209, %210, %cst_67 {dimension_numbers = #tpu.dot_dimension_numbers<[1], [0], [0], [1], [0, 0, 1, 1], [], []>} : vector<8x32xbf16>, vector<32x128xbf16>, vector<8x128xf32> -> vector<8x128xf32>
    %212 = arith.addf %208, %211 : vector<8x128xf32>
    %213 = vector.extract_strided_slice %212 {offsets = [0, 0], sizes = [8, 32], strides = [1, 1]} : vector<8x128xf32> to vector<8x32xf32>
    %214 = arith.negf %213 : vector<8x32xf32>
    %215 = math.exp %214 : vector<8x32xf32>
    %cst_68 = arith.constant 1.000000e+00 : f32
    %216 = vector.broadcast %cst_68 : f32 to vector<8x32xf32>
    %217 = arith.addf %216, %215 : vector<8x32xf32>
    %218 = arith.divf %216, %217 : vector<8x32xf32>
    %219 = vector.extract_strided_slice %212 {offsets = [0, 32], sizes = [8, 32], strides = [1, 1]} : vector<8x128xf32> to vector<8x32xf32>
    %220 = arith.negf %219 : vector<8x32xf32>
    %221 = math.exp %220 : vector<8x32xf32>
    %cst_69 = arith.constant 1.000000e+00 : f32
    %222 = vector.broadcast %cst_69 : f32 to vector<8x32xf32>
    %223 = arith.addf %222, %221 : vector<8x32xf32>
    %224 = arith.divf %222, %223 : vector<8x32xf32>
    %225 = vector.extract_strided_slice %212 {offsets = [0, 64], sizes = [8, 32], strides = [1, 1]} : vector<8x128xf32> to vector<8x32xf32>
    %226 = math.tanh %225 : vector<8x32xf32>
    %227 = vector.extract_strided_slice %212 {offsets = [0, 96], sizes = [8, 32], strides = [1, 1]} : vector<8x128xf32> to vector<8x32xf32>
    %228 = arith.negf %227 : vector<8x32xf32>
    %229 = math.exp %228 : vector<8x32xf32>
    %cst_70 = arith.constant 1.000000e+00 : f32
    %230 = vector.broadcast %cst_70 : f32 to vector<8x32xf32>
    %231 = arith.addf %230, %229 : vector<8x32xf32>
    %232 = arith.divf %230, %231 : vector<8x32xf32>
    %233 = arith.mulf %224, %203 : vector<8x32xf32>
    %234 = arith.mulf %218, %226 : vector<8x32xf32>
    %235 = arith.addf %233, %234 : vector<8x32xf32>
    %236 = math.tanh %235 : vector<8x32xf32>
    %237 = arith.mulf %232, %236 : vector<8x32xf32>
    %c7_i32 = arith.constant 7 : i32
    %238 = arith.index_cast %c7_i32 : i32 to index
    %c0_71 = arith.constant 0 : index
    %c0_72 = arith.constant 0 : index
    %239 = vector.load %arg9[%238, %c0_71, %c0_72] : memref<8x8x128xf32, #tpu.memory_space<vmem>>, vector<1x8x128xf32>
    %240 = vector.shape_cast %239 : vector<1x8x128xf32> to vector<8x128xf32>
    %241 = arith.truncf %237 : vector<8x32xf32> to vector<8x32xbf16>
    %c0_73 = arith.constant 0 : index
    %c0_74 = arith.constant 0 : index
    %242 = vector.load %arg4[%c0_73, %c0_74] : memref<32x128xbf16, #tpu.memory_space<vmem>>, vector<32x128xbf16>
    %cst_75 = arith.constant dense<0.000000e+00> : vector<8x128xf32>
    %243 = tpu.matmul %241, %242, %cst_75 {dimension_numbers = #tpu.dot_dimension_numbers<[1], [0], [0], [1], [0, 0, 1, 1], [], []>} : vector<8x32xbf16>, vector<32x128xbf16>, vector<8x128xf32> -> vector<8x128xf32>
    %244 = arith.addf %240, %243 : vector<8x128xf32>
    %245 = vector.extract_strided_slice %244 {offsets = [0, 0], sizes = [8, 32], strides = [1, 1]} : vector<8x128xf32> to vector<8x32xf32>
    %246 = arith.negf %245 : vector<8x32xf32>
    %247 = math.exp %246 : vector<8x32xf32>
    %cst_76 = arith.constant 1.000000e+00 : f32
    %248 = vector.broadcast %cst_76 : f32 to vector<8x32xf32>
    %249 = arith.addf %248, %247 : vector<8x32xf32>
    %250 = arith.divf %248, %249 : vector<8x32xf32>
    %251 = vector.extract_strided_slice %244 {offsets = [0, 32], sizes = [8, 32], strides = [1, 1]} : vector<8x128xf32> to vector<8x32xf32>
    %252 = arith.negf %251 : vector<8x32xf32>
    %253 = math.exp %252 : vector<8x32xf32>
    %cst_77 = arith.constant 1.000000e+00 : f32
    %254 = vector.broadcast %cst_77 : f32 to vector<8x32xf32>
    %255 = arith.addf %254, %253 : vector<8x32xf32>
    %256 = arith.divf %254, %255 : vector<8x32xf32>
    %257 = vector.extract_strided_slice %244 {offsets = [0, 64], sizes = [8, 32], strides = [1, 1]} : vector<8x128xf32> to vector<8x32xf32>
    %258 = math.tanh %257 : vector<8x32xf32>
    %259 = vector.extract_strided_slice %244 {offsets = [0, 96], sizes = [8, 32], strides = [1, 1]} : vector<8x128xf32> to vector<8x32xf32>
    %260 = arith.negf %259 : vector<8x32xf32>
    %261 = math.exp %260 : vector<8x32xf32>
    %cst_78 = arith.constant 1.000000e+00 : f32
    %262 = vector.broadcast %cst_78 : f32 to vector<8x32xf32>
    %263 = arith.addf %262, %261 : vector<8x32xf32>
    %264 = arith.divf %262, %263 : vector<8x32xf32>
    %265 = arith.mulf %256, %235 : vector<8x32xf32>
    %266 = arith.mulf %250, %258 : vector<8x32xf32>
    %267 = arith.addf %265, %266 : vector<8x32xf32>
    %268 = math.tanh %267 : vector<8x32xf32>
    %269 = arith.mulf %264, %268 : vector<8x32xf32>
    %c8_i32 = arith.constant 8 : i32
    %c0_79 = arith.constant 0 : index
    %c0_80 = arith.constant 0 : index
    %270 = vector.load %arg10[%c0_79, %c0_80] : memref<8x32xf32, #tpu.memory_space<vmem>>, vector<8x32xf32>
    tpu.vector_store %arg10[%c0_79, %c0_80], %269 {strides = array<i32>} : memref<8x32xf32, #tpu.memory_space<vmem>>, vector<8x32xf32>,
    %c0_81 = arith.constant 0 : index
    %c0_82 = arith.constant 0 : index
    %271 = vector.load %arg11[%c0_81, %c0_82] : memref<8x32xf32, #tpu.memory_space<vmem>>, vector<8x32xf32>
    tpu.vector_store %arg11[%c0_81, %c0_82], %267 {strides = array<i32>} : memref<8x32xf32, #tpu.memory_space<vmem>>, vector<8x32xf32>,
    %c0_i32_83 = arith.constant 0 : i32
    %272 = arith.cmpi eq, %arg1, %c0_i32_83 : i32
    %273 = arith.extui %272 : i1 to i32
    %c0_i32_84 = arith.constant 0 : i32
    %274 = arith.cmpi ne, %273, %c0_i32_84 : i32
    scf.if %274 {
      %275 = arith.truncf %269 : vector<8x32xf32> to vector<8x32xbf16>
      %c0_85 = arith.constant 0 : index
      %c0_86 = arith.constant 0 : index
      %276 = vector.load %arg6[%c0_85, %c0_86] : memref<32x128xbf16, #tpu.memory_space<vmem>>, vector<32x128xbf16>
      %cst_87 = arith.constant dense<0.000000e+00> : vector<8x128xf32>
      %277 = tpu.matmul %275, %276, %cst_87 {dimension_numbers = #tpu.dot_dimension_numbers<[1], [0], [0], [1], [0, 0, 1, 1], [], []>} : vector<8x32xbf16>, vector<32x128xbf16>, vector<8x128xf32> -> vector<8x128xf32>
      %c0_88 = arith.constant 0 : index
      %c0_89 = arith.constant 0 : index
      %278 = vector.load %arg7[%c0_88, %c0_89] : memref<1x128xf32, #tpu.memory_space<vmem>>, vector<1x128xf32>
      %279 = vector.broadcast %278 : vector<1x128xf32> to vector<8x128xf32>
      %280 = arith.addf %277, %279 : vector<8x128xf32>
      %c0_90 = arith.constant 0 : index
      %c0_91 = arith.constant 0 : index
      %281 = vector.load %arg8[%c0_90, %c0_91] : memref<8x128xf32, #tpu.memory_space<vmem>>, vector<8x128xf32>
      tpu.vector_store %arg8[%c0_90, %c0_91], %280 {strides = array<i32>} : memref<8x128xf32, #tpu.memory_space<vmem>>, vector<8x128xf32>,
    } else {
    }
    return
  }
  func.func @transform_0(%arg0: i32, %arg1: i32) -> (i32, i32, i32) {
    %c0_i32 = arith.constant 0 : i32
    %c0_i32_0 = arith.constant 0 : i32
    return %arg1, %arg0, %c0_i32 : i32, i32, i32
  }
  func.func @transform_1(%arg0: i32, %arg1: i32) -> (i32, i32) {
    %c0_i32 = arith.constant 0 : i32
    %c0_i32_0 = arith.constant 0 : i32
    %c0_i32_1 = arith.constant 0 : i32
    return %c0_i32, %c0_i32_0 : i32, i32
  }
  func.func @transform_2(%arg0: i32, %arg1: i32) -> (i32, i32) {
    %c0_i32 = arith.constant 0 : i32
    %c0_i32_0 = arith.constant 0 : i32
    %c0_i32_1 = arith.constant 0 : i32
    return %c0_i32, %c0_i32_0 : i32, i32
  }
  func.func @transform_3(%arg0: i32, %arg1: i32) -> (i32, i32) {
    %c0_i32 = arith.constant 0 : i32
    %c0_i32_0 = arith.constant 0 : i32
    %c0_i32_1 = arith.constant 0 : i32
    return %c0_i32, %c0_i32_0 : i32, i32
  }
  func.func @transform_4(%arg0: i32, %arg1: i32) -> (i32, i32) {
    %c0_i32 = arith.constant 0 : i32
    %c0_i32_0 = arith.constant 0 : i32
    %c0_i32_1 = arith.constant 0 : i32
    return %c0_i32, %c0_i32_0 : i32, i32
  }
  func.func @transform_5(%arg0: i32, %arg1: i32) -> (i32, i32) {
    %c0_i32 = arith.constant 0 : i32
    %c0_i32_0 = arith.constant 0 : i32
    %c0_i32_1 = arith.constant 0 : i32
    return %c0_i32, %c0_i32_0 : i32, i32
  }
  func.func @transform_6(%arg0: i32, %arg1: i32) -> (i32, i32) {
    %c0_i32 = arith.constant 0 : i32
    %c0_i32_0 = arith.constant 0 : i32
    return %arg0, %c0_i32 : i32, i32
  }
}

module attributes {stable_mosaic.version = 11 : i64} {
  func.func @_lstm_last_fc_kernel(%arg0: i32, %arg1: i32, %arg2: memref<8x8x128xbf16, #tpu.memory_space<vmem>>, %arg3: memref<128x128xbf16, #tpu.memory_space<vmem>>, %arg4: memref<32x128xbf16, #tpu.memory_space<vmem>>, %arg5: memref<1x128xf32, #tpu.memory_space<vmem>>, %arg6: memref<32x128xbf16, #tpu.memory_space<vmem>>, %arg7: memref<1x128xf32, #tpu.memory_space<vmem>>, %arg8: memref<8x128xf32, #tpu.memory_space<vmem>>, %arg9: memref<8x8x128xf32, #tpu.memory_space<vmem>>, %arg10: memref<8x32xf32, #tpu.memory_space<vmem>>, %arg11: memref<8x32xf32, #tpu.memory_space<vmem>>) attributes {dimension_semantics = [#tpu.dimension_semantics<parallel>, #tpu.dimension_semantics<arbitrary>], iteration_bounds = array<i64: 1, 1>, scalar_prefetch = 0 : i64, scratch_operands = 3 : i64, tpu.core_type = #tpu.core_type<tc>, window_params = [{transform_indices = @transform_0, window_bounds = array<i64: 8, 8, 128>}, {pipeline_mode = #tpu.pipeline_mode<synchronous>, transform_indices = @transform_1, window_bounds = array<i64: 128, 128>}, {pipeline_mode = #tpu.pipeline_mode<synchronous>, transform_indices = @transform_2, window_bounds = array<i64: 32, 128>}, {pipeline_mode = #tpu.pipeline_mode<synchronous>, transform_indices = @transform_3, window_bounds = array<i64: 1, 128>}, {pipeline_mode = #tpu.pipeline_mode<synchronous>, transform_indices = @transform_4, window_bounds = array<i64: 32, 128>}, {pipeline_mode = #tpu.pipeline_mode<synchronous>, transform_indices = @transform_5, window_bounds = array<i64: 1, 128>}, {transform_indices = @transform_6, window_bounds = array<i64: 8, 128>}]} {
    %c0_i32 = arith.constant 0 : i32
    %0 = arith.cmpi eq, %arg1, %c0_i32 : i32
    %1 = arith.extui %0 : i1 to i32
    %c0_i32_0 = arith.constant 0 : i32
    %2 = arith.cmpi ne, %1, %c0_i32_0 : i32
    scf.if %2 {
      %cst_85 = arith.constant 0.000000e+00 : f32
      %275 = vector.broadcast %cst_85 : f32 to vector<8x32xf32>
      %c0_86 = arith.constant 0 : index
      %c0_87 = arith.constant 0 : index
      %276 = vector.load %arg10[%c0_86, %c0_87] : memref<8x32xf32, #tpu.memory_space<vmem>>, vector<8x32xf32>
      tpu.vector_store %arg10[%c0_86, %c0_87], %275 {strides = array<i32>} : memref<8x32xf32, #tpu.memory_space<vmem>>, vector<8x32xf32>,
      %cst_88 = arith.constant 0.000000e+00 : f32
      %277 = vector.broadcast %cst_88 : f32 to vector<8x32xf32>
      %c0_89 = arith.constant 0 : index
      %c0_90 = arith.constant 0 : index
      %278 = vector.load %arg11[%c0_89, %c0_90] : memref<8x32xf32, #tpu.memory_space<vmem>>, vector<8x32xf32>
      tpu.vector_store %arg11[%c0_89, %c0_90], %277 {strides = array<i32>} : memref<8x32xf32, #tpu.memory_space<vmem>>, vector<8x32xf32>,
    } else {
    }
    %c0 = arith.constant 0 : index
    %c0_1 = arith.constant 0 : index
    %c0_2 = arith.constant 0 : index
    %3 = vector.load %arg2[%c0, %c0_1, %c0_2] : memref<8x8x128xbf16, #tpu.memory_space<vmem>>, vector<8x8x128xbf16>
    %4 = vector.shape_cast %3 : vector<8x8x128xbf16> to vector<64x128xbf16>
    %c0_3 = arith.constant 0 : index
    %c0_4 = arith.constant 0 : index
    %5 = vector.load %arg3[%c0_3, %c0_4] : memref<128x128xbf16, #tpu.memory_space<vmem>>, vector<128x128xbf16>
    %cst = arith.constant dense<0.000000e+00> : vector<64x128xf32>
    %6 = tpu.matmul %4, %5, %cst {dimension_numbers = #tpu.dot_dimension_numbers<[1], [0], [0], [1], [0, 0, 1, 1], [], []>} : vector<64x128xbf16>, vector<128x128xbf16>, vector<64x128xf32> -> vector<64x128xf32>
    %c0_5 = arith.constant 0 : index
    %c0_6 = arith.constant 0 : index
    %7 = vector.load %arg5[%c0_5, %c0_6] : memref<1x128xf32, #tpu.memory_space<vmem>>, vector<1x128xf32>
    %8 = vector.broadcast %7 : vector<1x128xf32> to vector<64x128xf32>
    %9 = arith.addf %6, %8 : vector<64x128xf32>
    %10 = vector.shape_cast %9 : vector<64x128xf32> to vector<8x8x128xf32>
    %c0_7 = arith.constant 0 : index
    %c0_8 = arith.constant 0 : index
    %c0_9 = arith.constant 0 : index
    %11 = vector.load %arg9[%c0_7, %c0_8, %c0_9] : memref<8x8x128xf32, #tpu.memory_space<vmem>>, vector<8x8x128xf32>
    tpu.vector_store %arg9[%c0_7, %c0_8, %c0_9], %10 {strides = array<i32>} : memref<8x8x128xf32, #tpu.memory_space<vmem>>, vector<8x8x128xf32>,
    %c0_10 = arith.constant 0 : index
    %c0_11 = arith.constant 0 : index
    %12 = vector.load %arg10[%c0_10, %c0_11] : memref<8x32xf32, #tpu.memory_space<vmem>>, vector<8x32xf32>
    %c0_12 = arith.constant 0 : index
    %c0_13 = arith.constant 0 : index
    %13 = vector.load %arg11[%c0_12, %c0_13] : memref<8x32xf32, #tpu.memory_space<vmem>>, vector<8x32xf32>
    %c0_i32_14 = arith.constant 0 : i32
    %14 = arith.index_cast %c0_i32_14 : i32 to index
    %c0_15 = arith.constant 0 : index
    %c0_16 = arith.constant 0 : index
    %15 = vector.load %arg9[%14, %c0_15, %c0_16] : memref<8x8x128xf32, #tpu.memory_space<vmem>>, vector<1x8x128xf32>
    %16 = vector.shape_cast %15 : vector<1x8x128xf32> to vector<8x128xf32>
    %17 = arith.truncf %12 : vector<8x32xf32> to vector<8x32xbf16>
    %c0_17 = arith.constant 0 : index
    %c0_18 = arith.constant 0 : index
    %18 = vector.load %arg4[%c0_17, %c0_18] : memref<32x128xbf16, #tpu.memory_space<vmem>>, vector<32x128xbf16>
    %cst_19 = arith.constant dense<0.000000e+00> : vector<8x128xf32>
    %19 = tpu.matmul %17, %18, %cst_19 {dimension_numbers = #tpu.dot_dimension_numbers<[1], [0], [0], [1], [0, 0, 1, 1], [], []>} : vector<8x32xbf16>, vector<32x128xbf16>, vector<8x128xf32> -> vector<8x128xf32>
    %20 = arith.addf %16, %19 : vector<8x128xf32>
    %21 = vector.extract_strided_slice %20 {offsets = [0, 0], sizes = [8, 32], strides = [1, 1]} : vector<8x128xf32> to vector<8x32xf32>
    %22 = arith.negf %21 : vector<8x32xf32>
    %23 = math.exp %22 : vector<8x32xf32>
    %cst_20 = arith.constant 1.000000e+00 : f32
    %24 = vector.broadcast %cst_20 : f32 to vector<8x32xf32>
    %25 = arith.addf %24, %23 : vector<8x32xf32>
    %26 = arith.divf %24, %25 : vector<8x32xf32>
    %27 = vector.extract_strided_slice %20 {offsets = [0, 32], sizes = [8, 32], strides = [1, 1]} : vector<8x128xf32> to vector<8x32xf32>
    %28 = arith.negf %27 : vector<8x32xf32>
    %29 = math.exp %28 : vector<8x32xf32>
    %cst_21 = arith.constant 1.000000e+00 : f32
    %30 = vector.broadcast %cst_21 : f32 to vector<8x32xf32>
    %31 = arith.addf %30, %29 : vector<8x32xf32>
    %32 = arith.divf %30, %31 : vector<8x32xf32>
    %33 = vector.extract_strided_slice %20 {offsets = [0, 64], sizes = [8, 32], strides = [1, 1]} : vector<8x128xf32> to vector<8x32xf32>
    %34 = math.tanh %33 : vector<8x32xf32>
    %35 = vector.extract_strided_slice %20 {offsets = [0, 96], sizes = [8, 32], strides = [1, 1]} : vector<8x128xf32> to vector<8x32xf32>
    %36 = arith.negf %35 : vector<8x32xf32>
    %37 = math.exp %36 : vector<8x32xf32>
    %cst_22 = arith.constant 1.000000e+00 : f32
    %38 = vector.broadcast %cst_22 : f32 to vector<8x32xf32>
    %39 = arith.addf %38, %37 : vector<8x32xf32>
    %40 = arith.divf %38, %39 : vector<8x32xf32>
    %41 = arith.mulf %32, %13 : vector<8x32xf32>
    %42 = arith.mulf %26, %34 : vector<8x32xf32>
    %43 = arith.addf %41, %42 : vector<8x32xf32>
    %44 = math.tanh %43 : vector<8x32xf32>
    %45 = arith.mulf %40, %44 : vector<8x32xf32>
    %c1_i32 = arith.constant 1 : i32
    %46 = arith.index_cast %c1_i32 : i32 to index
    %c0_23 = arith.constant 0 : index
    %c0_24 = arith.constant 0 : index
    %47 = vector.load %arg9[%46, %c0_23, %c0_24] : memref<8x8x128xf32, #tpu.memory_space<vmem>>, vector<1x8x128xf32>
    %48 = vector.shape_cast %47 : vector<1x8x128xf32> to vector<8x128xf32>
    %49 = arith.truncf %45 : vector<8x32xf32> to vector<8x32xbf16>
    %c0_25 = arith.constant 0 : index
    %c0_26 = arith.constant 0 : index
    %50 = vector.load %arg4[%c0_25, %c0_26] : memref<32x128xbf16, #tpu.memory_space<vmem>>, vector<32x128xbf16>
    %cst_27 = arith.constant dense<0.000000e+00> : vector<8x128xf32>
    %51 = tpu.matmul %49, %50, %cst_27 {dimension_numbers = #tpu.dot_dimension_numbers<[1], [0], [0], [1], [0, 0, 1, 1], [], []>} : vector<8x32xbf16>, vector<32x128xbf16>, vector<8x128xf32> -> vector<8x128xf32>
    %52 = arith.addf %48, %51 : vector<8x128xf32>
    %53 = vector.extract_strided_slice %52 {offsets = [0, 0], sizes = [8, 32], strides = [1, 1]} : vector<8x128xf32> to vector<8x32xf32>
    %54 = arith.negf %53 : vector<8x32xf32>
    %55 = math.exp %54 : vector<8x32xf32>
    %cst_28 = arith.constant 1.000000e+00 : f32
    %56 = vector.broadcast %cst_28 : f32 to vector<8x32xf32>
    %57 = arith.addf %56, %55 : vector<8x32xf32>
    %58 = arith.divf %56, %57 : vector<8x32xf32>
    %59 = vector.extract_strided_slice %52 {offsets = [0, 32], sizes = [8, 32], strides = [1, 1]} : vector<8x128xf32> to vector<8x32xf32>
    %60 = arith.negf %59 : vector<8x32xf32>
    %61 = math.exp %60 : vector<8x32xf32>
    %cst_29 = arith.constant 1.000000e+00 : f32
    %62 = vector.broadcast %cst_29 : f32 to vector<8x32xf32>
    %63 = arith.addf %62, %61 : vector<8x32xf32>
    %64 = arith.divf %62, %63 : vector<8x32xf32>
    %65 = vector.extract_strided_slice %52 {offsets = [0, 64], sizes = [8, 32], strides = [1, 1]} : vector<8x128xf32> to vector<8x32xf32>
    %66 = math.tanh %65 : vector<8x32xf32>
    %67 = vector.extract_strided_slice %52 {offsets = [0, 96], sizes = [8, 32], strides = [1, 1]} : vector<8x128xf32> to vector<8x32xf32>
    %68 = arith.negf %67 : vector<8x32xf32>
    %69 = math.exp %68 : vector<8x32xf32>
    %cst_30 = arith.constant 1.000000e+00 : f32
    %70 = vector.broadcast %cst_30 : f32 to vector<8x32xf32>
    %71 = arith.addf %70, %69 : vector<8x32xf32>
    %72 = arith.divf %70, %71 : vector<8x32xf32>
    %73 = arith.mulf %64, %43 : vector<8x32xf32>
    %74 = arith.mulf %58, %66 : vector<8x32xf32>
    %75 = arith.addf %73, %74 : vector<8x32xf32>
    %76 = math.tanh %75 : vector<8x32xf32>
    %77 = arith.mulf %72, %76 : vector<8x32xf32>
    %c2_i32 = arith.constant 2 : i32
    %78 = arith.index_cast %c2_i32 : i32 to index
    %c0_31 = arith.constant 0 : index
    %c0_32 = arith.constant 0 : index
    %79 = vector.load %arg9[%78, %c0_31, %c0_32] : memref<8x8x128xf32, #tpu.memory_space<vmem>>, vector<1x8x128xf32>
    %80 = vector.shape_cast %79 : vector<1x8x128xf32> to vector<8x128xf32>
    %81 = arith.truncf %77 : vector<8x32xf32> to vector<8x32xbf16>
    %c0_33 = arith.constant 0 : index
    %c0_34 = arith.constant 0 : index
    %82 = vector.load %arg4[%c0_33, %c0_34] : memref<32x128xbf16, #tpu.memory_space<vmem>>, vector<32x128xbf16>
    %cst_35 = arith.constant dense<0.000000e+00> : vector<8x128xf32>
    %83 = tpu.matmul %81, %82, %cst_35 {dimension_numbers = #tpu.dot_dimension_numbers<[1], [0], [0], [1], [0, 0, 1, 1], [], []>} : vector<8x32xbf16>, vector<32x128xbf16>, vector<8x128xf32> -> vector<8x128xf32>
    %84 = arith.addf %80, %83 : vector<8x128xf32>
    %85 = vector.extract_strided_slice %84 {offsets = [0, 0], sizes = [8, 32], strides = [1, 1]} : vector<8x128xf32> to vector<8x32xf32>
    %86 = arith.negf %85 : vector<8x32xf32>
    %87 = math.exp %86 : vector<8x32xf32>
    %cst_36 = arith.constant 1.000000e+00 : f32
    %88 = vector.broadcast %cst_36 : f32 to vector<8x32xf32>
    %89 = arith.addf %88, %87 : vector<8x32xf32>
    %90 = arith.divf %88, %89 : vector<8x32xf32>
    %91 = vector.extract_strided_slice %84 {offsets = [0, 32], sizes = [8, 32], strides = [1, 1]} : vector<8x128xf32> to vector<8x32xf32>
    %92 = arith.negf %91 : vector<8x32xf32>
    %93 = math.exp %92 : vector<8x32xf32>
    %cst_37 = arith.constant 1.000000e+00 : f32
    %94 = vector.broadcast %cst_37 : f32 to vector<8x32xf32>
    %95 = arith.addf %94, %93 : vector<8x32xf32>
    %96 = arith.divf %94, %95 : vector<8x32xf32>
    %97 = vector.extract_strided_slice %84 {offsets = [0, 64], sizes = [8, 32], strides = [1, 1]} : vector<8x128xf32> to vector<8x32xf32>
    %98 = math.tanh %97 : vector<8x32xf32>
    %99 = vector.extract_strided_slice %84 {offsets = [0, 96], sizes = [8, 32], strides = [1, 1]} : vector<8x128xf32> to vector<8x32xf32>
    %100 = arith.negf %99 : vector<8x32xf32>
    %101 = math.exp %100 : vector<8x32xf32>
    %cst_38 = arith.constant 1.000000e+00 : f32
    %102 = vector.broadcast %cst_38 : f32 to vector<8x32xf32>
    %103 = arith.addf %102, %101 : vector<8x32xf32>
    %104 = arith.divf %102, %103 : vector<8x32xf32>
    %105 = arith.mulf %96, %75 : vector<8x32xf32>
    %106 = arith.mulf %90, %98 : vector<8x32xf32>
    %107 = arith.addf %105, %106 : vector<8x32xf32>
    %108 = math.tanh %107 : vector<8x32xf32>
    %109 = arith.mulf %104, %108 : vector<8x32xf32>
    %c3_i32 = arith.constant 3 : i32
    %110 = arith.index_cast %c3_i32 : i32 to index
    %c0_39 = arith.constant 0 : index
    %c0_40 = arith.constant 0 : index
    %111 = vector.load %arg9[%110, %c0_39, %c0_40] : memref<8x8x128xf32, #tpu.memory_space<vmem>>, vector<1x8x128xf32>
    %112 = vector.shape_cast %111 : vector<1x8x128xf32> to vector<8x128xf32>
    %113 = arith.truncf %109 : vector<8x32xf32> to vector<8x32xbf16>
    %c0_41 = arith.constant 0 : index
    %c0_42 = arith.constant 0 : index
    %114 = vector.load %arg4[%c0_41, %c0_42] : memref<32x128xbf16, #tpu.memory_space<vmem>>, vector<32x128xbf16>
    %cst_43 = arith.constant dense<0.000000e+00> : vector<8x128xf32>
    %115 = tpu.matmul %113, %114, %cst_43 {dimension_numbers = #tpu.dot_dimension_numbers<[1], [0], [0], [1], [0, 0, 1, 1], [], []>} : vector<8x32xbf16>, vector<32x128xbf16>, vector<8x128xf32> -> vector<8x128xf32>
    %116 = arith.addf %112, %115 : vector<8x128xf32>
    %117 = vector.extract_strided_slice %116 {offsets = [0, 0], sizes = [8, 32], strides = [1, 1]} : vector<8x128xf32> to vector<8x32xf32>
    %118 = arith.negf %117 : vector<8x32xf32>
    %119 = math.exp %118 : vector<8x32xf32>
    %cst_44 = arith.constant 1.000000e+00 : f32
    %120 = vector.broadcast %cst_44 : f32 to vector<8x32xf32>
    %121 = arith.addf %120, %119 : vector<8x32xf32>
    %122 = arith.divf %120, %121 : vector<8x32xf32>
    %123 = vector.extract_strided_slice %116 {offsets = [0, 32], sizes = [8, 32], strides = [1, 1]} : vector<8x128xf32> to vector<8x32xf32>
    %124 = arith.negf %123 : vector<8x32xf32>
    %125 = math.exp %124 : vector<8x32xf32>
    %cst_45 = arith.constant 1.000000e+00 : f32
    %126 = vector.broadcast %cst_45 : f32 to vector<8x32xf32>
    %127 = arith.addf %126, %125 : vector<8x32xf32>
    %128 = arith.divf %126, %127 : vector<8x32xf32>
    %129 = vector.extract_strided_slice %116 {offsets = [0, 64], sizes = [8, 32], strides = [1, 1]} : vector<8x128xf32> to vector<8x32xf32>
    %130 = math.tanh %129 : vector<8x32xf32>
    %131 = vector.extract_strided_slice %116 {offsets = [0, 96], sizes = [8, 32], strides = [1, 1]} : vector<8x128xf32> to vector<8x32xf32>
    %132 = arith.negf %131 : vector<8x32xf32>
    %133 = math.exp %132 : vector<8x32xf32>
    %cst_46 = arith.constant 1.000000e+00 : f32
    %134 = vector.broadcast %cst_46 : f32 to vector<8x32xf32>
    %135 = arith.addf %134, %133 : vector<8x32xf32>
    %136 = arith.divf %134, %135 : vector<8x32xf32>
    %137 = arith.mulf %128, %107 : vector<8x32xf32>
    %138 = arith.mulf %122, %130 : vector<8x32xf32>
    %139 = arith.addf %137, %138 : vector<8x32xf32>
    %140 = math.tanh %139 : vector<8x32xf32>
    %141 = arith.mulf %136, %140 : vector<8x32xf32>
    %c4_i32 = arith.constant 4 : i32
    %142 = arith.index_cast %c4_i32 : i32 to index
    %c0_47 = arith.constant 0 : index
    %c0_48 = arith.constant 0 : index
    %143 = vector.load %arg9[%142, %c0_47, %c0_48] : memref<8x8x128xf32, #tpu.memory_space<vmem>>, vector<1x8x128xf32>
    %144 = vector.shape_cast %143 : vector<1x8x128xf32> to vector<8x128xf32>
    %145 = arith.truncf %141 : vector<8x32xf32> to vector<8x32xbf16>
    %c0_49 = arith.constant 0 : index
    %c0_50 = arith.constant 0 : index
    %146 = vector.load %arg4[%c0_49, %c0_50] : memref<32x128xbf16, #tpu.memory_space<vmem>>, vector<32x128xbf16>
    %cst_51 = arith.constant dense<0.000000e+00> : vector<8x128xf32>
    %147 = tpu.matmul %145, %146, %cst_51 {dimension_numbers = #tpu.dot_dimension_numbers<[1], [0], [0], [1], [0, 0, 1, 1], [], []>} : vector<8x32xbf16>, vector<32x128xbf16>, vector<8x128xf32> -> vector<8x128xf32>
    %148 = arith.addf %144, %147 : vector<8x128xf32>
    %149 = vector.extract_strided_slice %148 {offsets = [0, 0], sizes = [8, 32], strides = [1, 1]} : vector<8x128xf32> to vector<8x32xf32>
    %150 = arith.negf %149 : vector<8x32xf32>
    %151 = math.exp %150 : vector<8x32xf32>
    %cst_52 = arith.constant 1.000000e+00 : f32
    %152 = vector.broadcast %cst_52 : f32 to vector<8x32xf32>
    %153 = arith.addf %152, %151 : vector<8x32xf32>
    %154 = arith.divf %152, %153 : vector<8x32xf32>
    %155 = vector.extract_strided_slice %148 {offsets = [0, 32], sizes = [8, 32], strides = [1, 1]} : vector<8x128xf32> to vector<8x32xf32>
    %156 = arith.negf %155 : vector<8x32xf32>
    %157 = math.exp %156 : vector<8x32xf32>
    %cst_53 = arith.constant 1.000000e+00 : f32
    %158 = vector.broadcast %cst_53 : f32 to vector<8x32xf32>
    %159 = arith.addf %158, %157 : vector<8x32xf32>
    %160 = arith.divf %158, %159 : vector<8x32xf32>
    %161 = vector.extract_strided_slice %148 {offsets = [0, 64], sizes = [8, 32], strides = [1, 1]} : vector<8x128xf32> to vector<8x32xf32>
    %162 = math.tanh %161 : vector<8x32xf32>
    %163 = vector.extract_strided_slice %148 {offsets = [0, 96], sizes = [8, 32], strides = [1, 1]} : vector<8x128xf32> to vector<8x32xf32>
    %164 = arith.negf %163 : vector<8x32xf32>
    %165 = math.exp %164 : vector<8x32xf32>
    %cst_54 = arith.constant 1.000000e+00 : f32
    %166 = vector.broadcast %cst_54 : f32 to vector<8x32xf32>
    %167 = arith.addf %166, %165 : vector<8x32xf32>
    %168 = arith.divf %166, %167 : vector<8x32xf32>
    %169 = arith.mulf %160, %139 : vector<8x32xf32>
    %170 = arith.mulf %154, %162 : vector<8x32xf32>
    %171 = arith.addf %169, %170 : vector<8x32xf32>
    %172 = math.tanh %171 : vector<8x32xf32>
    %173 = arith.mulf %168, %172 : vector<8x32xf32>
    %c5_i32 = arith.constant 5 : i32
    %174 = arith.index_cast %c5_i32 : i32 to index
    %c0_55 = arith.constant 0 : index
    %c0_56 = arith.constant 0 : index
    %175 = vector.load %arg9[%174, %c0_55, %c0_56] : memref<8x8x128xf32, #tpu.memory_space<vmem>>, vector<1x8x128xf32>
    %176 = vector.shape_cast %175 : vector<1x8x128xf32> to vector<8x128xf32>
    %177 = arith.truncf %173 : vector<8x32xf32> to vector<8x32xbf16>
    %c0_57 = arith.constant 0 : index
    %c0_58 = arith.constant 0 : index
    %178 = vector.load %arg4[%c0_57, %c0_58] : memref<32x128xbf16, #tpu.memory_space<vmem>>, vector<32x128xbf16>
    %cst_59 = arith.constant dense<0.000000e+00> : vector<8x128xf32>
    %179 = tpu.matmul %177, %178, %cst_59 {dimension_numbers = #tpu.dot_dimension_numbers<[1], [0], [0], [1], [0, 0, 1, 1], [], []>} : vector<8x32xbf16>, vector<32x128xbf16>, vector<8x128xf32> -> vector<8x128xf32>
    %180 = arith.addf %176, %179 : vector<8x128xf32>
    %181 = vector.extract_strided_slice %180 {offsets = [0, 0], sizes = [8, 32], strides = [1, 1]} : vector<8x128xf32> to vector<8x32xf32>
    %182 = arith.negf %181 : vector<8x32xf32>
    %183 = math.exp %182 : vector<8x32xf32>
    %cst_60 = arith.constant 1.000000e+00 : f32
    %184 = vector.broadcast %cst_60 : f32 to vector<8x32xf32>
    %185 = arith.addf %184, %183 : vector<8x32xf32>
    %186 = arith.divf %184, %185 : vector<8x32xf32>
    %187 = vector.extract_strided_slice %180 {offsets = [0, 32], sizes = [8, 32], strides = [1, 1]} : vector<8x128xf32> to vector<8x32xf32>
    %188 = arith.negf %187 : vector<8x32xf32>
    %189 = math.exp %188 : vector<8x32xf32>
    %cst_61 = arith.constant 1.000000e+00 : f32
    %190 = vector.broadcast %cst_61 : f32 to vector<8x32xf32>
    %191 = arith.addf %190, %189 : vector<8x32xf32>
    %192 = arith.divf %190, %191 : vector<8x32xf32>
    %193 = vector.extract_strided_slice %180 {offsets = [0, 64], sizes = [8, 32], strides = [1, 1]} : vector<8x128xf32> to vector<8x32xf32>
    %194 = math.tanh %193 : vector<8x32xf32>
    %195 = vector.extract_strided_slice %180 {offsets = [0, 96], sizes = [8, 32], strides = [1, 1]} : vector<8x128xf32> to vector<8x32xf32>
    %196 = arith.negf %195 : vector<8x32xf32>
    %197 = math.exp %196 : vector<8x32xf32>
    %cst_62 = arith.constant 1.000000e+00 : f32
    %198 = vector.broadcast %cst_62 : f32 to vector<8x32xf32>
    %199 = arith.addf %198, %197 : vector<8x32xf32>
    %200 = arith.divf %198, %199 : vector<8x32xf32>
    %201 = arith.mulf %192, %171 : vector<8x32xf32>
    %202 = arith.mulf %186, %194 : vector<8x32xf32>
    %203 = arith.addf %201, %202 : vector<8x32xf32>
    %204 = math.tanh %203 : vector<8x32xf32>
    %205 = arith.mulf %200, %204 : vector<8x32xf32>
    %c6_i32 = arith.constant 6 : i32
    %206 = arith.index_cast %c6_i32 : i32 to index
    %c0_63 = arith.constant 0 : index
    %c0_64 = arith.constant 0 : index
    %207 = vector.load %arg9[%206, %c0_63, %c0_64] : memref<8x8x128xf32, #tpu.memory_space<vmem>>, vector<1x8x128xf32>
    %208 = vector.shape_cast %207 : vector<1x8x128xf32> to vector<8x128xf32>
    %209 = arith.truncf %205 : vector<8x32xf32> to vector<8x32xbf16>
    %c0_65 = arith.constant 0 : index
    %c0_66 = arith.constant 0 : index
    %210 = vector.load %arg4[%c0_65, %c0_66] : memref<32x128xbf16, #tpu.memory_space<vmem>>, vector<32x128xbf16>
    %cst_67 = arith.constant dense<0.000000e+00> : vector<8x128xf32>
    %211 = tpu.matmul %209, %210, %cst_67 {dimension_numbers = #tpu.dot_dimension_numbers<[1], [0], [0], [1], [0, 0, 1, 1], [], []>} : vector<8x32xbf16>, vector<32x128xbf16>, vector<8x128xf32> -> vector<8x128xf32>
    %212 = arith.addf %208, %211 : vector<8x128xf32>
    %213 = vector.extract_strided_slice %212 {offsets = [0, 0], sizes = [8, 32], strides = [1, 1]} : vector<8x128xf32> to vector<8x32xf32>
    %214 = arith.negf %213 : vector<8x32xf32>
    %215 = math.exp %214 : vector<8x32xf32>
    %cst_68 = arith.constant 1.000000e+00 : f32
    %216 = vector.broadcast %cst_68 : f32 to vector<8x32xf32>
    %217 = arith.addf %216, %215 : vector<8x32xf32>
    %218 = arith.divf %216, %217 : vector<8x32xf32>
    %219 = vector.extract_strided_slice %212 {offsets = [0, 32], sizes = [8, 32], strides = [1, 1]} : vector<8x128xf32> to vector<8x32xf32>
    %220 = arith.negf %219 : vector<8x32xf32>
    %221 = math.exp %220 : vector<8x32xf32>
    %cst_69 = arith.constant 1.000000e+00 : f32
    %222 = vector.broadcast %cst_69 : f32 to vector<8x32xf32>
    %223 = arith.addf %222, %221 : vector<8x32xf32>
    %224 = arith.divf %222, %223 : vector<8x32xf32>
    %225 = vector.extract_strided_slice %212 {offsets = [0, 64], sizes = [8, 32], strides = [1, 1]} : vector<8x128xf32> to vector<8x32xf32>
    %226 = math.tanh %225 : vector<8x32xf32>
    %227 = vector.extract_strided_slice %212 {offsets = [0, 96], sizes = [8, 32], strides = [1, 1]} : vector<8x128xf32> to vector<8x32xf32>
    %228 = arith.negf %227 : vector<8x32xf32>
    %229 = math.exp %228 : vector<8x32xf32>
    %cst_70 = arith.constant 1.000000e+00 : f32
    %230 = vector.broadcast %cst_70 : f32 to vector<8x32xf32>
    %231 = arith.addf %230, %229 : vector<8x32xf32>
    %232 = arith.divf %230, %231 : vector<8x32xf32>
    %233 = arith.mulf %224, %203 : vector<8x32xf32>
    %234 = arith.mulf %218, %226 : vector<8x32xf32>
    %235 = arith.addf %233, %234 : vector<8x32xf32>
    %236 = math.tanh %235 : vector<8x32xf32>
    %237 = arith.mulf %232, %236 : vector<8x32xf32>
    %c7_i32 = arith.constant 7 : i32
    %238 = arith.index_cast %c7_i32 : i32 to index
    %c0_71 = arith.constant 0 : index
    %c0_72 = arith.constant 0 : index
    %239 = vector.load %arg9[%238, %c0_71, %c0_72] : memref<8x8x128xf32, #tpu.memory_space<vmem>>, vector<1x8x128xf32>
    %240 = vector.shape_cast %239 : vector<1x8x128xf32> to vector<8x128xf32>
    %241 = arith.truncf %237 : vector<8x32xf32> to vector<8x32xbf16>
    %c0_73 = arith.constant 0 : index
    %c0_74 = arith.constant 0 : index
    %242 = vector.load %arg4[%c0_73, %c0_74] : memref<32x128xbf16, #tpu.memory_space<vmem>>, vector<32x128xbf16>
    %cst_75 = arith.constant dense<0.000000e+00> : vector<8x128xf32>
    %243 = tpu.matmul %241, %242, %cst_75 {dimension_numbers = #tpu.dot_dimension_numbers<[1], [0], [0], [1], [0, 0, 1, 1], [], []>} : vector<8x32xbf16>, vector<32x128xbf16>, vector<8x128xf32> -> vector<8x128xf32>
    %244 = arith.addf %240, %243 : vector<8x128xf32>
    %245 = vector.extract_strided_slice %244 {offsets = [0, 0], sizes = [8, 32], strides = [1, 1]} : vector<8x128xf32> to vector<8x32xf32>
    %246 = arith.negf %245 : vector<8x32xf32>
    %247 = math.exp %246 : vector<8x32xf32>
    %cst_76 = arith.constant 1.000000e+00 : f32
    %248 = vector.broadcast %cst_76 : f32 to vector<8x32xf32>
    %249 = arith.addf %248, %247 : vector<8x32xf32>
    %250 = arith.divf %248, %249 : vector<8x32xf32>
    %251 = vector.extract_strided_slice %244 {offsets = [0, 32], sizes = [8, 32], strides = [1, 1]} : vector<8x128xf32> to vector<8x32xf32>
    %252 = arith.negf %251 : vector<8x32xf32>
    %253 = math.exp %252 : vector<8x32xf32>
    %cst_77 = arith.constant 1.000000e+00 : f32
    %254 = vector.broadcast %cst_77 : f32 to vector<8x32xf32>
    %255 = arith.addf %254, %253 : vector<8x32xf32>
    %256 = arith.divf %254, %255 : vector<8x32xf32>
    %257 = vector.extract_strided_slice %244 {offsets = [0, 64], sizes = [8, 32], strides = [1, 1]} : vector<8x128xf32> to vector<8x32xf32>
    %258 = math.tanh %257 : vector<8x32xf32>
    %259 = vector.extract_strided_slice %244 {offsets = [0, 96], sizes = [8, 32], strides = [1, 1]} : vector<8x128xf32> to vector<8x32xf32>
    %260 = arith.negf %259 : vector<8x32xf32>
    %261 = math.exp %260 : vector<8x32xf32>
    %cst_78 = arith.constant 1.000000e+00 : f32
    %262 = vector.broadcast %cst_78 : f32 to vector<8x32xf32>
    %263 = arith.addf %262, %261 : vector<8x32xf32>
    %264 = arith.divf %262, %263 : vector<8x32xf32>
    %265 = arith.mulf %256, %235 : vector<8x32xf32>
    %266 = arith.mulf %250, %258 : vector<8x32xf32>
    %267 = arith.addf %265, %266 : vector<8x32xf32>
    %268 = math.tanh %267 : vector<8x32xf32>
    %269 = arith.mulf %264, %268 : vector<8x32xf32>
    %c8_i32 = arith.constant 8 : i32
    %c0_79 = arith.constant 0 : index
    %c0_80 = arith.constant 0 : index
    %270 = vector.load %arg10[%c0_79, %c0_80] : memref<8x32xf32, #tpu.memory_space<vmem>>, vector<8x32xf32>
    tpu.vector_store %arg10[%c0_79, %c0_80], %269 {strides = array<i32>} : memref<8x32xf32, #tpu.memory_space<vmem>>, vector<8x32xf32>,
    %c0_81 = arith.constant 0 : index
    %c0_82 = arith.constant 0 : index
    %271 = vector.load %arg11[%c0_81, %c0_82] : memref<8x32xf32, #tpu.memory_space<vmem>>, vector<8x32xf32>
    tpu.vector_store %arg11[%c0_81, %c0_82], %267 {strides = array<i32>} : memref<8x32xf32, #tpu.memory_space<vmem>>, vector<8x32xf32>,
    %c0_i32_83 = arith.constant 0 : i32
    %272 = arith.cmpi eq, %arg1, %c0_i32_83 : i32
    %273 = arith.extui %272 : i1 to i32
    %c0_i32_84 = arith.constant 0 : i32
    %274 = arith.cmpi ne, %273, %c0_i32_84 : i32
    scf.if %274 {
      %275 = arith.truncf %269 : vector<8x32xf32> to vector<8x32xbf16>
      %c0_85 = arith.constant 0 : index
      %c0_86 = arith.constant 0 : index
      %276 = vector.load %arg6[%c0_85, %c0_86] : memref<32x128xbf16, #tpu.memory_space<vmem>>, vector<32x128xbf16>
      %cst_87 = arith.constant dense<0.000000e+00> : vector<8x128xf32>
      %277 = tpu.matmul %275, %276, %cst_87 {dimension_numbers = #tpu.dot_dimension_numbers<[1], [0], [0], [1], [0, 0, 1, 1], [], []>} : vector<8x32xbf16>, vector<32x128xbf16>, vector<8x128xf32> -> vector<8x128xf32>
      %c0_88 = arith.constant 0 : index
      %c0_89 = arith.constant 0 : index
      %278 = vector.load %arg7[%c0_88, %c0_89] : memref<1x128xf32, #tpu.memory_space<vmem>>, vector<1x128xf32>
      %279 = vector.broadcast %278 : vector<1x128xf32> to vector<8x128xf32>
      %280 = arith.addf %277, %279 : vector<8x128xf32>
      %c0_90 = arith.constant 0 : index
      %c0_91 = arith.constant 0 : index
      %281 = vector.load %arg8[%c0_90, %c0_91] : memref<8x128xf32, #tpu.memory_space<vmem>>, vector<8x128xf32>
      tpu.vector_store %arg8[%c0_90, %c0_91], %280 {strides = array<i32>} : memref<8x128xf32, #tpu.memory_space<vmem>>, vector<8x128xf32>,
    } else {
    }
    return
  }
  func.func @transform_0(%arg0: i32, %arg1: i32) -> (i32, i32, i32) {
    %c0_i32 = arith.constant 0 : i32
    %c0_i32_0 = arith.constant 0 : i32
    return %arg1, %arg0, %c0_i32 : i32, i32, i32
  }
  func.func @transform_1(%arg0: i32, %arg1: i32) -> (i32, i32) {
    %c0_i32 = arith.constant 0 : i32
    %c0_i32_0 = arith.constant 0 : i32
    %c0_i32_1 = arith.constant 0 : i32
    return %c0_i32, %c0_i32_0 : i32, i32
  }
  func.func @transform_2(%arg0: i32, %arg1: i32) -> (i32, i32) {
    %c0_i32 = arith.constant 0 : i32
    %c0_i32_0 = arith.constant 0 : i32
    %c0_i32_1 = arith.constant 0 : i32
    return %c0_i32, %c0_i32_0 : i32, i32
  }
  func.func @transform_3(%arg0: i32, %arg1: i32) -> (i32, i32) {
    %c0_i32 = arith.constant 0 : i32
    %c0_i32_0 = arith.constant 0 : i32
    %c0_i32_1 = arith.constant 0 : i32
    return %c0_i32, %c0_i32_0 : i32, i32
  }
  func.func @transform_4(%arg0: i32, %arg1: i32) -> (i32, i32) {
    %c0_i32 = arith.constant 0 : i32
    %c0_i32_0 = arith.constant 0 : i32
    %c0_i32_1 = arith.constant 0 : i32
    return %c0_i32, %c0_i32_0 : i32, i32
  }
  func.func @transform_5(%arg0: i32, %arg1: i32) -> (i32, i32) {
    %c0_i32 = arith.constant 0 : i32
    %c0_i32_0 = arith.constant 0 : i32
    %c0_i32_1 = arith.constant 0 : i32
    return %c0_i32, %c0_i32_0 : i32, i32
  }
  func.func @transform_6(%arg0: i32, %arg1: i32) -> (i32, i32) {
    %c0_i32 = arith.constant 0 : i32
    %c0_i32_0 = arith.constant 0 : i32
    return %arg0, %c0_i32 : i32, i32
  }
}

</mosaic_0001>

<llo_original>
// kernel: tpu_custom_call.1
$region0: #{tpu_custom_call.1}
  #allocation0 [shape = 'u32[]', space=smem, size = 0x4, offset = 0x4, fixed_abs, tag = 'smem constant byte address 0x4 - core index']
  #allocation1 [shape = 'u32[144,128]{1,0:T(1,128)}', space=vmem, size = 0x12000, scoped, tag = 'internal scratch']
  #allocation2 [shape = 'f32[8,8,128]{2,1,0:T(8,128)}', space=vmem, size = 0x8000, scoped, tag = 'scratch operand']
  #allocation3 [shape = 'f32[8,32]{1,0:T(8,128)}', space=vmem, size = 0x1000, scoped, tag = 'scratch operand']
  #allocation4 [shape = 'f32[8,32]{1,0:T(8,128)}', space=vmem, size = 0x1000, scoped, tag = 'scratch operand']
  %s0 = inlined_call_operand.hbm [shape: bf16[8,8,128], index: 0, kind: input, shape index: {}]
  %s1 = inlined_call_operand.hbm [shape: bf16[128,128], index: 1, kind: input, shape index: {}]
  %s2 = inlined_call_operand.hbm [shape: bf16[32,128], index: 2, kind: input, shape index: {}]
  %s3 = inlined_call_operand.vmem [shape: f32[1,128], index: 3, kind: input, shape index: {}]
  %s4 = inlined_call_operand.hbm [shape: bf16[32,128], index: 4, kind: input, shape index: {}]
  %s5 = inlined_call_operand.vmem [shape: f32[1,128], index: 5, kind: input, shape index: {}]
  %s6 = inlined_call_operand.hbm [shape: f32[8,128], index: 6, kind: output, shape index: {}]
  %s7 = sld [smem:[#allocation0]]
  $region58: #{tpu_custom_call.1} parent=0
    _
  %s9 = ssub.s32 1, %s7
  %s10 = scalar_select 0, %s9, %s7
  $region1: #{tpu_custom_call.1} parent=0
    #allocation5 [shape = 'u8[16384]{0}', space=vmem, size = 0x4000, scoped, tag = 'input window, operand 0, single buffered']
    #allocation6 [shape = 's32[1]{0}', space=sflag, size = 0x4, scoped, tag = 'scoped memory for tpu_custom_call.1']
    #allocation7 [shape = 's32[1]{0}', space=sflag, size = 0x4, scoped, tag = 'scoped memory for tpu_custom_call.1']
    #allocation8 [shape = 'u8[32768]{0}', space=vmem, size = 0x8000, scoped, tag = 'input window, operand 1, single buffered']
    #allocation9 [shape = 's32[1]{0}', space=sflag, size = 0x4, scoped, tag = 'scoped memory for tpu_custom_call.1']
    #allocation10 [shape = 'u8[8192]{0}', space=vmem, size = 0x2000, scoped, tag = 'input window, operand 2, single buffered']
    #allocation11 [shape = 'u8[8192]{0}', space=vmem, size = 0x2000, scoped, tag = 'input window, operand 4, single buffered']
    #allocation12 [shape = 's32[1]{0}', space=sflag, size = 0x4, scoped, tag = 'scoped memory for tpu_custom_call.1']
    #allocation13 [shape = 'u8[4096]{0}', space=vmem, size = 0x1000, scoped, tag = 'output window, operand 0, single buffered']
    %11 = vsyncpa [#allocation6], 0
    %12 = vsyncpa [#allocation9], 0
    %13 = vsyncpa [#allocation12], 0
    %14 = vsyncpa [#allocation7], 0
    // Predicated region
    $region2: #{tpu_custom_call.1} parent=1 // pred_check
      _
    $region3: #{tpu_custom_call.1} parent=1 // pred_check_branch
      %16 = sbr.rel (0) target = $region5
    $region4: #{tpu_custom_call.1} parent=1 // pred_region
      %s18 = ssub.s32 512, 512
      %19 = vsyncadd [#allocation6], %s18
      %s20 = sshll.u32 [#allocation5], 4
      %s21 = int_to_ptr.vmem [resolvable:$true] %s20
      %26 = dma.hbm_to_vmem [thread:$0]  %s0, 512, %s21, [#allocation6], 64, 64, 4
    $region5: #{tpu_custom_call.1} parent=1 // pred_fallthru
      _
    // Predicated region
    $region6: #{tpu_custom_call.1} parent=1 // pred_check
      _
    $region7: #{tpu_custom_call.1} parent=1 // pred_check_branch
      %28 = sbr.rel (0) target = $region9
    $region8: #{tpu_custom_call.1} parent=1 // pred_region
      %s30 = ssub.s32 1024, 1024
      %31 = vsyncadd [#allocation9], %s30
      %s32 = sshll.u32 [#allocation8], 4
      %s33 = int_to_ptr.vmem [resolvable:$true] %s32
      %38 = dma.hbm_to_vmem [thread:$0]  %s1, 1024, %s33, [#allocation9], 64, 64, 4
    $region9: #{tpu_custom_call.1} parent=1 // pred_fallthru
      _
    // Predicated region
    $region10: #{tpu_custom_call.1} parent=1 // pred_check
      _
    $region11: #{tpu_custom_call.1} parent=1 // pred_check_branch
      %40 = sbr.rel (0) target = $region13
    $region12: #{tpu_custom_call.1} parent=1 // pred_region
      %s42 = ssub.s32 256, 256
      %43 = vsyncadd [#allocation9], %s42
      %s44 = sshll.u32 [#allocation10], 4
      %s45 = int_to_ptr.vmem [resolvable:$true] %s44
      %50 = dma.hbm_to_vmem [thread:$0]  %s2, 256, %s45, [#allocation9], 64, 64, 4
    $region13: #{tpu_custom_call.1} parent=1 // pred_fallthru
      _
    // Predicated region
    $region14: #{tpu_custom_call.1} parent=1 // pred_check
      _
    $region15: #{tpu_custom_call.1} parent=1 // pred_check_branch
      %52 = sbr.rel (0) target = $region17
    $region16: #{tpu_custom_call.1} parent=1 // pred_region
      _
    $region17: #{tpu_custom_call.1} parent=1 // pred_fallthru
      _
    // Predicated region
    $region18: #{tpu_custom_call.1} parent=1 // pred_check
      _
    $region19: #{tpu_custom_call.1} parent=1 // pred_check_branch
      %54 = sbr.rel (0) target = $region21
    $region20: #{tpu_custom_call.1} parent=1 // pred_region
      %s56 = ssub.s32 256, 256
      %57 = vsyncadd [#allocation12], %s56
      %s58 = sshll.u32 [#allocation11], 4
      %s59 = int_to_ptr.vmem [resolvable:$true] %s58
      %64 = dma.hbm_to_vmem [thread:$0]  %s4, 256, %s59, [#allocation12], 64, 64, 4
    $region21: #{tpu_custom_call.1} parent=1 // pred_fallthru
      _
    // Predicated region
    $region22: #{tpu_custom_call.1} parent=1 // pred_check
      _
    $region23: #{tpu_custom_call.1} parent=1 // pred_check_branch
      %66 = sbr.rel (0) target = $region25
    $region24: #{tpu_custom_call.1} parent=1 // pred_region
      _
    $region25: #{tpu_custom_call.1} parent=1 // pred_fallthru
      _
    // Predicated region
    $region26: #{tpu_custom_call.1} parent=1 // pred_check
      _
    $region27: #{tpu_custom_call.1} parent=1 // pred_check_branch
      %68 = sbr.rel (0) target = $region29
    $region28: #{tpu_custom_call.1} parent=1 // pred_region
      %69 = dma.done [#allocation6], 512
    $region29: #{tpu_custom_call.1} parent=1 // pred_fallthru
      _
    // Predicated region
    $region30: #{tpu_custom_call.1} parent=1 // pred_check
      _
    $region31: #{tpu_custom_call.1} parent=1 // pred_check_branch
      %71 = sbr.rel (0) target = $region33
    $region32: #{tpu_custom_call.1} parent=1 // pred_region
      %72 = dma.done [#allocation9], 1024
    $region33: #{tpu_custom_call.1} parent=1 // pred_fallthru
      _
    // Predicated region
    $region34: #{tpu_custom_call.1} parent=1 // pred_check
      _
    $region35: #{tpu_custom_call.1} parent=1 // pred_check_branch
      %74 = sbr.rel (0) target = $region37
    $region36: #{tpu_custom_call.1} parent=1 // pred_region
      %75 = dma.done [#allocation9], 256
    $region37: #{tpu_custom_call.1} parent=1 // pred_fallthru
      _
    // Predicated region
    $region38: #{tpu_custom_call.1} parent=1 // pred_check
      _
    $region39: #{tpu_custom_call.1} parent=1 // pred_check_branch
      %77 = sbr.rel (0) target = $region41
    $region40: #{tpu_custom_call.1} parent=1 // pred_region
      %78 = dma.done [#allocation12], 256
    $region41: #{tpu_custom_call.1} parent=1 // pred_fallthru
      _
    %p80 = scmp.eq.s32.totalorder 0, 0
    // Predicated region
    $region42: #{tpu_custom_call.1} parent=1 // pred_check
      %p81 = pneg %p80
    $region43: #{tpu_custom_call.1} parent=1 // pred_check_branch
      %83 = sbr.rel (%p81) target = $region45
    $region44: #{tpu_custom_call.1} parent=1 // pred_region
      %vm84 = vcmask 261120
      %85 = vst.msk [vmem:[#allocation3] sm:$0xff] %vm84, 0.0
      %86 = vst.msk [vmem:[#allocation4] sm:$0xff] %vm84, 0.0
    $region45: #{tpu_custom_call.1} parent=1 // pred_fallthru
      _
    %v87 = vld [vmem:[#allocation5] sm:$0xf]
    %v88 = vld [vmem:[#allocation5 + $0x4] sm:$0xf]
    %v89 = vld [vmem:[#allocation5 + $0x8] sm:$0xf]
    %v90 = vld [vmem:[#allocation5 + $0xc] sm:$0xf]
    %v91 = vld [vmem:[#allocation5 + $0x10] sm:$0xf]
    %v92 = vld [vmem:[#allocation5 + $0x14] sm:$0xf]
    %v93 = vld [vmem:[#allocation5 + $0x18] sm:$0xf]
    %v94 = vld [vmem:[#allocation5 + $0x1c] sm:$0xf]
    %v95 = vld [vmem:[#allocation8] sm:$0xf]
    %v96 = vld [vmem:[#allocation8 + $0x4] sm:$0xf]
    %v97 = vld [vmem:[#allocation8 + $0x8] sm:$0xf]
    %v98 = vld [vmem:[#allocation8 + $0xc] sm:$0xf]
    %v99 = vld [vmem:[#allocation8 + $0x10] sm:$0xf]
    %v100 = vld [vmem:[#allocation8 + $0x14] sm:$0xf]
    %v101 = vld [vmem:[#allocation8 + $0x18] sm:$0xf]
    %v102 = vld [vmem:[#allocation8 + $0x1c] sm:$0xf]
    %v103 = vld [vmem:[#allocation8 + $0x20] sm:$0xf]
    %v104 = vld [vmem:[#allocation8 + $0x24] sm:$0xf]
    %v105 = vld [vmem:[#allocation8 + $0x28] sm:$0xf]
    %v106 = vld [vmem:[#allocation8 + $0x2c] sm:$0xf]
    %v107 = vld [vmem:[#allocation8 + $0x30] sm:$0xf]
    %v108 = vld [vmem:[#allocation8 + $0x34] sm:$0xf]
    %v109 = vld [vmem:[#allocation8 + $0x38] sm:$0xf]
    %v110 = vld [vmem:[#allocation8 + $0x3c] sm:$0xf]
    %v111 = vld [vmem:[%s3] sm:$0x1]
    %v113 = vlaneseq
    %v114 = vshrl.u32 %v113, 7
    %v115 = vsub.s32 0, %v114
    %v116 = vrot.slane %v111, %v115
    %v126 = vunpack.c.l.b16 %v87
    %v127 = vunpack.c.l.b16 %v88
    %v128 = vunpack.c.l.b16 %v89
    %v129 = vunpack.c.l.b16 %v90
    %v130 = vunpack.c.l.b16 %v91
    %v131 = vunpack.c.l.b16 %v92
    %v132 = vunpack.c.l.b16 %v93
    %v133 = vunpack.c.l.b16 %v94
    %v134 = vpack.c.b16 %v127, %v126
    %v135 = vpack.c.b16 %v129, %v128
    %v136 = vpack.c.b16 %v131, %v130
    %v137 = vpack.c.b16 %v133, %v132
    %v158 = vunpack.c.l.b16 %v95
    %v159 = vunpack.c.l.b16 %v96
    %v160 = vunpack.c.l.b16 %v97
    %v161 = vunpack.c.l.b16 %v98
    %v162 = vunpack.c.l.b16 %v99
    %v163 = vunpack.c.l.b16 %v100
    %v164 = vunpack.c.l.b16 %v101
    %v165 = vunpack.c.l.b16 %v102
    %v166 = vunpack.c.l.b16 %v103
    %v167 = vunpack.c.l.b16 %v104
    %v168 = vunpack.c.l.b16 %v105
    %v169 = vunpack.c.l.b16 %v106
    %v170 = vunpack.c.l.b16 %v107
    %v171 = vunpack.c.l.b16 %v108
    %v172 = vunpack.c.l.b16 %v109
    %v173 = vunpack.c.l.b16 %v110
    %v174 = vpack.c.b16 %v159, %v158
    %v175 = vpack.c.b16 %v161, %v160
    %v176 = vpack.c.b16 %v163, %v162
    %v177 = vpack.c.b16 %v165, %v164
    %v178 = vpack.c.b16 %v167, %v166
    %v179 = vpack.c.b16 %v169, %v168
    %v180 = vpack.c.b16 %v171, %v170
    %v181 = vpack.c.b16 %v173, %v172
    %190 = vmatprep.subr.bf16.mxu0 0
    %191 = vmatpush1.bf16.msra.mxu0 %v174
    %192 = vmatprep.subr.bf16.mxu0 0
    %193 = vmatpush1.bf16.msra.mxu0 %v175
    %194 = vmatprep.subr.bf16.mxu0 0
    %195 = vmatpush1.bf16.msra.mxu0 %v176
    %196 = vmatprep.subr.bf16.mxu0 0
    %197 = vmatpush1.bf16.msra.mxu0 %v177
    %198 = vmatprep.subr.bf16.mxu0 0
    %199 = vmatpush1.bf16.msra.mxu0 %v178
    %200 = vmatprep.subr.bf16.mxu0 0
    %201 = vmatpush1.bf16.msra.mxu0 %v179
    %202 = vmatprep.subr.bf16.mxu0 0
    %203 = vmatpush1.bf16.msra.mxu0 %v180
    %204 = vmatprep.subr.bf16.mxu0 0
    %205 = vmatpush1.bf16.msra.mxu0 %v181
    %206 = vmatprep.subr.bf16.mxu0 0
    %207 = vmatpush1.bf16.msra.mxu0 0
    %208 = vmatprep.subr.bf16.mxu0 0
    %209 = vmatpush1.bf16.msra.mxu0 0
    %210 = vmatprep.subr.bf16.mxu0 0
    %211 = vmatpush1.bf16.msra.mxu0 0
    %212 = vmatprep.subr.bf16.mxu0 0
    %213 = vmatpush1.bf16.msra.mxu0 0
    %214 = vmatprep.subr.bf16.mxu0 0
    %215 = vmatpush1.bf16.msra.mxu0 0
    %216 = vmatprep.subr.bf16.mxu0 0
    %217 = vmatpush1.bf16.msra.mxu0 0
    %218 = vmatprep.subr.bf16.mxu0 0
    %219 = vmatpush1.bf16.msra.mxu0 0
    %220 = vmatprep.subr.bf16.mxu0 0
    %221 = vmatpush1.bf16.msra.mxu0 0
    %222 = vmatprep.mubr.bf16.mxu0 0
    %223 = vmatmul.mubr.bf16.gmra.mrb[0].mxu0 %v134
    %v224 = vpop.f32.mrb[0].mxu0
    %v225 = vadd.f32 %v116, %v224
    %v226 = vpop.f32.mrb[0].mxu0
    %v227 = vpop.f32.mrb[0].mxu0
    %v228 = vadd.f32 %v116, %v227
    %v229 = vpop.f32.mrb[0].mxu0
    %230 = vmatprep.mubr.bf16.mxu0 0
    %231 = vmatmul.mubr.bf16.gmra.mrb[0].mxu0 %v135
    %v232 = vpop.f32.mrb[0].mxu0
    %v233 = vadd.f32 %v116, %v232
    %v234 = vpop.f32.mrb[0].mxu0
    %v235 = vpop.f32.mrb[0].mxu0
    %v236 = vadd.f32 %v116, %v235
    %v237 = vpop.f32.mrb[0].mxu0
    %238 = vmatprep.mubr.bf16.mxu0 0
    %239 = vmatmul.mubr.bf16.gmra.mrb[0].mxu0 %v136
    %v240 = vpop.f32.mrb[0].mxu0
    %v241 = vadd.f32 %v116, %v240
    %v242 = vpop.f32.mrb[0].mxu0
    %v243 = vpop.f32.mrb[0].mxu0
    %v244 = vadd.f32 %v116, %v243
    %v245 = vpop.f32.mrb[0].mxu0
    %246 = vmatprep.mubr.bf16.mxu0 0
    %247 = vmatmul.mubr.bf16.gmra.mrb[0].mxu0 %v137
    %v248 = vpop.f32.mrb[0].mxu0
    %v249 = vadd.f32 %v116, %v248
    %v250 = vpop.f32.mrb[0].mxu0
    %v251 = vpop.f32.mrb[0].mxu0
    %v252 = vadd.f32 %v116, %v251
    %v253 = vpop.f32.mrb[0].mxu0
    %254 = vdwg.mxu0
    %255 = vst [vmem:[#allocation2] sm:$0xff] %v225
    %256 = vst [vmem:[#allocation2 + $0x8] sm:$0xff] %v228
    %257 = vst [vmem:[#allocation2 + $0x10] sm:$0xff] %v233
    %258 = vst [vmem:[#allocation2 + $0x18] sm:$0xff] %v236
    %259 = vst [vmem:[#allocation2 + $0x20] sm:$0xff] %v241
    %260 = vst [vmem:[#allocation2 + $0x28] sm:$0xff] %v244
    %261 = vst [vmem:[#allocation2 + $0x30] sm:$0xff] %v249
    %262 = vst [vmem:[#allocation2 + $0x38] sm:$0xff] %v252
    %v263 = vld [vmem:[#allocation3] sm:$0xff]
    %v264 = vld [vmem:[#allocation4] sm:$0xff]
    %v265 = vld [vmem:[#allocation2] sm:$0xff]
    %v266 = vpack.c.bf16 %v263, %v263
    %v267 = vld [vmem:[#allocation10] sm:$0xf]
    %v268 = vld [vmem:[#allocation10 + $0x4] sm:$0xf]
    %v269 = vld [vmem:[#allocation10 + $0x8] sm:$0xf]
    %v270 = vld [vmem:[#allocation10 + $0xc] sm:$0xf]
    %v275 = vunpack.c.l.b16 %v267
    %v276 = vunpack.c.l.b16 %v268
    %v277 = vunpack.c.l.b16 %v269
    %v278 = vunpack.c.l.b16 %v270
    %v279 = vpack.c.b16 %v276, %v275
    %v280 = vpack.c.b16 %v278, %v277
    %vm283 = vcmask 261120
    %v285 = vsel %vm283, %v266, 0
    %287 = vmatprep.subr.bf16.mxu0 0
    %288 = vmatpush1.bf16.msra.mxu0 %v279
    %289 = vmatprep.subr.bf16.mxu0 0
    %290 = vmatpush1.bf16.msra.mxu0 %v280
    %291 = vmatprep.subr.bf16.mxu0 0
    %292 = vmatpush1.bf16.msra.mxu0 0
    %293 = vmatprep.subr.bf16.mxu0 0
    %294 = vmatpush1.bf16.msra.mxu0 0
    %295 = vmatprep.subr.bf16.mxu0 0
    %296 = vmatpush1.bf16.msra.mxu0 0
    %297 = vmatprep.subr.bf16.mxu0 0
    %298 = vmatpush1.bf16.msra.mxu0 0
    %299 = vmatprep.subr.bf16.mxu0 0
    %300 = vmatpush1.bf16.msra.mxu0 0
    %301 = vmatprep.subr.bf16.mxu0 0
    %302 = vmatpush1.bf16.msra.mxu0 0
    %303 = vmatprep.subr.bf16.mxu0 0
    %304 = vmatpush1.bf16.msra.mxu0 0
    %305 = vmatprep.subr.bf16.mxu0 0
    %306 = vmatpush1.bf16.msra.mxu0 0
    %307 = vmatprep.subr.bf16.mxu0 0
    %308 = vmatpush1.bf16.msra.mxu0 0
    %309 = vmatprep.subr.bf16.mxu0 0
    %310 = vmatpush1.bf16.msra.mxu0 0
    %311 = vmatprep.subr.bf16.mxu0 0
    %312 = vmatpush1.bf16.msra.mxu0 0
    %313 = vmatprep.subr.bf16.mxu0 0
    %314 = vmatpush1.bf16.msra.mxu0 0
    %315 = vmatprep.subr.bf16.mxu0 0
    %316 = vmatpush1.bf16.msra.mxu0 0
    %317 = vmatprep.subr.bf16.mxu0 0
    %318 = vmatpush1.bf16.msra.mxu0 0
    %319 = vmatprep.mubr.bf16.mxu0 0
    %320 = vmatmul.mubr.bf16.gmra.mrb[0].mxu0 %v285
    %v321 = vpop.f32.mrb[0].mxu0
    %v322 = vadd.f32 0.0, %v321
    %v323 = vpop.f32.mrb[0].mxu0
    %v324 = vpop.f32.mrb[0].mxu0
    %v325 = vpop.f32.mrb[0].mxu0
    %326 = vdwg.mxu0
    %v327 = vadd.f32 %v265, %v322
    %v328 = vxor.u32 %v327, 2147483648
    %v329 = vmul.f32 %v328, 1.442695
    %v330 = vpow.pop %v329
    %v331 = vadd.f32 %v330, 1.0
    %v332 = vrcp.pop %v331
    %v333 = vmul.f32 1.0, %v332
    %v334 = vtanh.pop %v327
    %336 = vrot.lane.b32.xlu0 %v264, 32
    %v337 = vpop.permute.xlu0 %336
    %v339 = vmul.f32 %v333, %v337
    %341 = vrot.lane.b32.xlu0 %v334, 64
    %v342 = vpop.permute.xlu0 %341
    %v344 = vmul.f32 %v333, %v342
    %346 = vrot.lane.b32.xlu0 %v344, 32
    %v347 = vpop.permute.xlu0 %346
    %v349 = vadd.f32 %v339, %v347
    %v350 = vtanh.pop %v349
    %352 = vrot.lane.b32.xlu0 %v350, 64
    %v353 = vpop.permute.xlu0 %352
    %v355 = vmul.f32 %v333, %v353
    %s356 = scalar_lea.vmem [#allocation2], 8
    %v357 = vld [vmem:[%s356] sm:$0xff]
    %v358 = vpack.c.bf16 %v355, %v355
    %360 = vrot.lane.b32.xlu0 %v358, 32
    %v361 = vpop.permute.xlu0 %360
    %v363 = vsel %vm283, %v361, 0
    %365 = vmatprep.subr.bf16.mxu0 0
    %366 = vmatpush1.bf16.msra.mxu0 %v279
    %367 = vmatprep.subr.bf16.mxu0 0
    %368 = vmatpush1.bf16.msra.mxu0 %v280
    %369 = vmatprep.subr.bf16.mxu0 0
    %370 = vmatpush1.bf16.msra.mxu0 0
    %371 = vmatprep.subr.bf16.mxu0 0
    %372 = vmatpush1.bf16.msra.mxu0 0
    %373 = vmatprep.subr.bf16.mxu0 0
    %374 = vmatpush1.bf16.msra.mxu0 0
    %375 = vmatprep.subr.bf16.mxu0 0
    %376 = vmatpush1.bf16.msra.mxu0 0
    %377 = vmatprep.subr.bf16.mxu0 0
    %378 = vmatpush1.bf16.msra.mxu0 0
    %379 = vmatprep.subr.bf16.mxu0 0
    %380 = vmatpush1.bf16.msra.mxu0 0
    %381 = vmatprep.subr.bf16.mxu0 0
    %382 = vmatpush1.bf16.msra.mxu0 0
    %383 = vmatprep.subr.bf16.mxu0 0
    %384 = vmatpush1.bf16.msra.mxu0 0
    %385 = vmatprep.subr.bf16.mxu0 0
    %386 = vmatpush1.bf16.msra.mxu0 0
    %387 = vmatprep.subr.bf16.mxu0 0
    %388 = vmatpush1.bf16.msra.mxu0 0
    %389 = vmatprep.subr.bf16.mxu0 0
    %390 = vmatpush1.bf16.msra.mxu0 0
    %391 = vmatprep.subr.bf16.mxu0 0
    %392 = vmatpush1.bf16.msra.mxu0 0
    %393 = vmatprep.subr.bf16.mxu0 0
    %394 = vmatpush1.bf16.msra.mxu0 0
    %395 = vmatprep.subr.bf16.mxu0 0
    %396 = vmatpush1.bf16.msra.mxu0 0
    %397 = vmatprep.mubr.bf16.mxu0 0
    %398 = vmatmul.mubr.bf16.gmra.mrb[0].mxu0 %v363
    %v399 = vpop.f32.mrb[0].mxu0
    %v400 = vadd.f32 0.0, %v399
    %v401 = vpop.f32.mrb[0].mxu0
    %v402 = vpop.f32.mrb[0].mxu0
    %v403 = vpop.f32.mrb[0].mxu0
    %404 = vdwg.mxu0
    %v405 = vadd.f32 %v357, %v400
    %v406 = vxor.u32 %v405, 2147483648
    %v407 = vmul.f32 %v406, 1.442695
    %v408 = vpow.pop %v407
    %v409 = vadd.f32 %v408, 1.0
    %v410 = vrcp.pop %v409
    %v411 = vmul.f32 1.0, %v410
    %v412 = vtanh.pop %v405
    %v413 = vmul.f32 %v411, %v349
    %415 = vrot.lane.b32.xlu0 %v412, 64
    %v416 = vpop.permute.xlu0 %415
    %v418 = vmul.f32 %v411, %v416
    %420 = vrot.lane.b32.xlu0 %v418, 32
    %v421 = vpop.permute.xlu0 %420
    %v423 = vadd.f32 %v413, %v421
    %v424 = vtanh.pop %v423
    %426 = vrot.lane.b32.xlu0 %v424, 64
    %v427 = vpop.permute.xlu0 %426
    %v429 = vmul.f32 %v411, %v427
    %s430 = scalar_lea.vmem [#allocation2], 16
    %v431 = vld [vmem:[%s430] sm:$0xff]
    %v432 = vpack.c.bf16 %v429, %v429
    %434 = vrot.lane.b32.xlu0 %v432, 32
    %v435 = vpop.permute.xlu0 %434
    %v437 = vsel %vm283, %v435, 0
    %439 = vmatprep.subr.bf16.mxu0 0
    %440 = vmatpush1.bf16.msra.mxu0 %v279
    %441 = vmatprep.subr.bf16.mxu0 0
    %442 = vmatpush1.bf16.msra.mxu0 %v280
    %443 = vmatprep.subr.bf16.mxu0 0
    %444 = vmatpush1.bf16.msra.mxu0 0
    %445 = vmatprep.subr.bf16.mxu0 0
    %446 = vmatpush1.bf16.msra.mxu0 0
    %447 = vmatprep.subr.bf16.mxu0 0
    %448 = vmatpush1.bf16.msra.mxu0 0
    %449 = vmatprep.subr.bf16.mxu0 0
    %450 = vmatpush1.bf16.msra.mxu0 0
    %451 = vmatprep.subr.bf16.mxu0 0
    %452 = vmatpush1.bf16.msra.mxu0 0
    %453 = vmatprep.subr.bf16.mxu0 0
    %454 = vmatpush1.bf16.msra.mxu0 0
    %455 = vmatprep.subr.bf16.mxu0 0
    %456 = vmatpush1.bf16.msra.mxu0 0
    %457 = vmatprep.subr.bf16.mxu0 0
    %458 = vmatpush1.bf16.msra.mxu0 0
    %459 = vmatprep.subr.bf16.mxu0 0
    %460 = vmatpush1.bf16.msra.mxu0 0
    %461 = vmatprep.subr.bf16.mxu0 0
    %462 = vmatpush1.bf16.msra.mxu0 0
    %463 = vmatprep.subr.bf16.mxu0 0
    %464 = vmatpush1.bf16.msra.mxu0 0
    %465 = vmatprep.subr.bf16.mxu0 0
    %466 = vmatpush1.bf16.msra.mxu0 0
    %467 = vmatprep.subr.bf16.mxu0 0
    %468 = vmatpush1.bf16.msra.mxu0 0
    %469 = vmatprep.subr.bf16.mxu0 0
    %470 = vmatpush1.bf16.msra.mxu0 0
    %471 = vmatprep.mubr.bf16.mxu0 0
    %472 = vmatmul.mubr.bf16.gmra.mrb[0].mxu0 %v437
    %v473 = vpop.f32.mrb[0].mxu0
    %v474 = vadd.f32 0.0, %v473
    %v475 = vpop.f32.mrb[0].mxu0
    %v476 = vpop.f32.mrb[0].mxu0
    %v477 = vpop.f32.mrb[0].mxu0
    %478 = vdwg.mxu0
    %v479 = vadd.f32 %v431, %v474
    %v480 = vxor.u32 %v479, 2147483648
    %v481 = vmul.f32 %v480, 1.442695
    %v482 = vpow.pop %v481
    %v483 = vadd.f32 %v482, 1.0
    %v484 = vrcp.pop %v483
    %v485 = vmul.f32 1.0, %v484
    %v486 = vtanh.pop %v479
    %v487 = vmul.f32 %v485, %v423
    %489 = vrot.lane.b32.xlu0 %v486, 64
    %v490 = vpop.permute.xlu0 %489
    %v492 = vmul.f32 %v485, %v490
    %494 = vrot.lane.b32.xlu0 %v492, 32
    %v495 = vpop.permute.xlu0 %494
    %v497 = vadd.f32 %v487, %v495
    %v498 = vtanh.pop %v497
    %500 = vrot.lane.b32.xlu0 %v498, 64
    %v501 = vpop.permute.xlu0 %500
    %v503 = vmul.f32 %v485, %v501
    %s504 = scalar_lea.vmem [#allocation2], 24
    %v505 = vld [vmem:[%s504] sm:$0xff]
    %v506 = vpack.c.bf16 %v503, %v503
    %508 = vrot.lane.b32.xlu0 %v506, 32
    %v509 = vpop.permute.xlu0 %508
    %v511 = vsel %vm283, %v509, 0
    %513 = vmatprep.subr.bf16.mxu0 0
    %514 = vmatpush1.bf16.msra.mxu0 %v279
    %515 = vmatprep.subr.bf16.mxu0 0
    %516 = vmatpush1.bf16.msra.mxu0 %v280
    %517 = vmatprep.subr.bf16.mxu0 0
    %518 = vmatpush1.bf16.msra.mxu0 0
    %519 = vmatprep.subr.bf16.mxu0 0
    %520 = vmatpush1.bf16.msra.mxu0 0
    %521 = vmatprep.subr.bf16.mxu0 0
    %522 = vmatpush1.bf16.msra.mxu0 0
    %523 = vmatprep.subr.bf16.mxu0 0
    %524 = vmatpush1.bf16.msra.mxu0 0
    %525 = vmatprep.subr.bf16.mxu0 0
    %526 = vmatpush1.bf16.msra.mxu0 0
    %527 = vmatprep.subr.bf16.mxu0 0
    %528 = vmatpush1.bf16.msra.mxu0 0
    %529 = vmatprep.subr.bf16.mxu0 0
    %530 = vmatpush1.bf16.msra.mxu0 0
    %531 = vmatprep.subr.bf16.mxu0 0
    %532 = vmatpush1.bf16.msra.mxu0 0
    %533 = vmatprep.subr.bf16.mxu0 0
    %534 = vmatpush1.bf16.msra.mxu0 0
    %535 = vmatprep.subr.bf16.mxu0 0
    %536 = vmatpush1.bf16.msra.mxu0 0
    %537 = vmatprep.subr.bf16.mxu0 0
    %538 = vmatpush1.bf16.msra.mxu0 0
    %539 = vmatprep.subr.bf16.mxu0 0
    %540 = vmatpush1.bf16.msra.mxu0 0
    %541 = vmatprep.subr.bf16.mxu0 0
    %542 = vmatpush1.bf16.msra.mxu0 0
    %543 = vmatprep.subr.bf16.mxu0 0
    %544 = vmatpush1.bf16.msra.mxu0 0
    %545 = vmatprep.mubr.bf16.mxu0 0
    %546 = vmatmul.mubr.bf16.gmra.mrb[0].mxu0 %v511
    %v547 = vpop.f32.mrb[0].mxu0
    %v548 = vadd.f32 0.0, %v547
    %v549 = vpop.f32.mrb[0].mxu0
    %v550 = vpop.f32.mrb[0].mxu0
    %v551 = vpop.f32.mrb[0].mxu0
    %552 = vdwg.mxu0
    %v553 = vadd.f32 %v505, %v548
    %v554 = vxor.u32 %v553, 2147483648
    %v555 = vmul.f32 %v554, 1.442695
    %v556 = vpow.pop %v555
    %v557 = vadd.f32 %v556, 1.0
    %v558 = vrcp.pop %v557
    %v559 = vmul.f32 1.0, %v558
    %v560 = vtanh.pop %v553
    %v561 = vmul.f32 %v559, %v497
    %563 = vrot.lane.b32.xlu0 %v560, 64
    %v564 = vpop.permute.xlu0 %563
    %v566 = vmul.f32 %v559, %v564
    %568 = vrot.lane.b32.xlu0 %v566, 32
    %v569 = vpop.permute.xlu0 %568
    %v571 = vadd.f32 %v561, %v569
    %v572 = vtanh.pop %v571
    %574 = vrot.lane.b32.xlu0 %v572, 64
    %v575 = vpop.permute.xlu0 %574
    %v577 = vmul.f32 %v559, %v575
    %s578 = scalar_lea.vmem [#allocation2], 32
    %v579 = vld [vmem:[%s578] sm:$0xff]
    %v580 = vpack.c.bf16 %v577, %v577
    %582 = vrot.lane.b32.xlu0 %v580, 32
    %v583 = vpop.permute.xlu0 %582
    %v585 = vsel %vm283, %v583, 0
    %587 = vmatprep.subr.bf16.mxu0 0
    %588 = vmatpush1.bf16.msra.mxu0 %v279
    %589 = vmatprep.subr.bf16.mxu0 0
    %590 = vmatpush1.bf16.msra.mxu0 %v280
    %591 = vmatprep.subr.bf16.mxu0 0
    %592 = vmatpush1.bf16.msra.mxu0 0
    %593 = vmatprep.subr.bf16.mxu0 0
    %594 = vmatpush1.bf16.msra.mxu0 0
    %595 = vmatprep.subr.bf16.mxu0 0
    %596 = vmatpush1.bf16.msra.mxu0 0
    %597 = vmatprep.subr.bf16.mxu0 0
    %598 = vmatpush1.bf16.msra.mxu0 0
    %599 = vmatprep.subr.bf16.mxu0 0
    %600 = vmatpush1.bf16.msra.mxu0 0
    %601 = vmatprep.subr.bf16.mxu0 0
    %602 = vmatpush1.bf16.msra.mxu0 0
    %603 = vmatprep.subr.bf16.mxu0 0
    %604 = vmatpush1.bf16.msra.mxu0 0
    %605 = vmatprep.subr.bf16.mxu0 0
    %606 = vmatpush1.bf16.msra.mxu0 0
    %607 = vmatprep.subr.bf16.mxu0 0
    %608 = vmatpush1.bf16.msra.mxu0 0
    %609 = vmatprep.subr.bf16.mxu0 0
    %610 = vmatpush1.bf16.msra.mxu0 0
    %611 = vmatprep.subr.bf16.mxu0 0
    %612 = vmatpush1.bf16.msra.mxu0 0
    %613 = vmatprep.subr.bf16.mxu0 0
    %614 = vmatpush1.bf16.msra.mxu0 0
    %615 = vmatprep.subr.bf16.mxu0 0
    %616 = vmatpush1.bf16.msra.mxu0 0
    %617 = vmatprep.subr.bf16.mxu0 0
    %618 = vmatpush1.bf16.msra.mxu0 0
    %619 = vmatprep.mubr.bf16.mxu0 0
    %620 = vmatmul.mubr.bf16.gmra.mrb[0].mxu0 %v585
    %v621 = vpop.f32.mrb[0].mxu0
    %v622 = vadd.f32 0.0, %v621
    %v623 = vpop.f32.mrb[0].mxu0
    %v624 = vpop.f32.mrb[0].mxu0
    %v625 = vpop.f32.mrb[0].mxu0
    %626 = vdwg.mxu0
    %v627 = vadd.f32 %v579, %v622
    %v628 = vxor.u32 %v627, 2147483648
    %v629 = vmul.f32 %v628, 1.442695
    %v630 = vpow.pop %v629
    %v631 = vadd.f32 %v630, 1.0
    %v632 = vrcp.pop %v631
    %v633 = vmul.f32 1.0, %v632
    %v634 = vtanh.pop %v627
    %v635 = vmul.f32 %v633, %v571
    %637 = vrot.lane.b32.xlu0 %v634, 64
    %v638 = vpop.permute.xlu0 %637
    %v640 = vmul.f32 %v633, %v638
    %642 = vrot.lane.b32.xlu0 %v640, 32
    %v643 = vpop.permute.xlu0 %642
    %v645 = vadd.f32 %v635, %v643
    %v646 = vtanh.pop %v645
    %648 = vrot.lane.b32.xlu0 %v646, 64
    %v649 = vpop.permute.xlu0 %648
    %v651 = vmul.f32 %v633, %v649
    %s652 = scalar_lea.vmem [#allocation2], 40
    %v653 = vld [vmem:[%s652] sm:$0xff]
    %v654 = vpack.c.bf16 %v651, %v651
    %656 = vrot.lane.b32.xlu0 %v654, 32
    %v657 = vpop.permute.xlu0 %656
    %v659 = vsel %vm283, %v657, 0
    %661 = vmatprep.subr.bf16.mxu0 0
    %662 = vmatpush1.bf16.msra.mxu0 %v279
    %663 = vmatprep.subr.bf16.mxu0 0
    %664 = vmatpush1.bf16.msra.mxu0 %v280
    %665 = vmatprep.subr.bf16.mxu0 0
    %666 = vmatpush1.bf16.msra.mxu0 0
    %667 = vmatprep.subr.bf16.mxu0 0
    %668 = vmatpush1.bf16.msra.mxu0 0
    %669 = vmatprep.subr.bf16.mxu0 0
    %670 = vmatpush1.bf16.msra.mxu0 0
    %671 = vmatprep.subr.bf16.mxu0 0
    %672 = vmatpush1.bf16.msra.mxu0 0
    %673 = vmatprep.subr.bf16.mxu0 0
    %674 = vmatpush1.bf16.msra.mxu0 0
    %675 = vmatprep.subr.bf16.mxu0 0
    %676 = vmatpush1.bf16.msra.mxu0 0
    %677 = vmatprep.subr.bf16.mxu0 0
    %678 = vmatpush1.bf16.msra.mxu0 0
    %679 = vmatprep.subr.bf16.mxu0 0
    %680 = vmatpush1.bf16.msra.mxu0 0
    %681 = vmatprep.subr.bf16.mxu0 0
    %682 = vmatpush1.bf16.msra.mxu0 0
    %683 = vmatprep.subr.bf16.mxu0 0
    %684 = vmatpush1.bf16.msra.mxu0 0
    %685 = vmatprep.subr.bf16.mxu0 0
    %686 = vmatpush1.bf16.msra.mxu0 0
    %687 = vmatprep.subr.bf16.mxu0 0
    %688 = vmatpush1.bf16.msra.mxu0 0
    %689 = vmatprep.subr.bf16.mxu0 0
    %690 = vmatpush1.bf16.msra.mxu0 0
    %691 = vmatprep.subr.bf16.mxu0 0
    %692 = vmatpush1.bf16.msra.mxu0 0
    %693 = vmatprep.mubr.bf16.mxu0 0
    %694 = vmatmul.mubr.bf16.gmra.mrb[0].mxu0 %v659
    %v695 = vpop.f32.mrb[0].mxu0
    %v696 = vadd.f32 0.0, %v695
    %v697 = vpop.f32.mrb[0].mxu0
    %v698 = vpop.f32.mrb[0].mxu0
    %v699 = vpop.f32.mrb[0].mxu0
    %700 = vdwg.mxu0
    %v701 = vadd.f32 %v653, %v696
    %v702 = vxor.u32 %v701, 2147483648
    %v703 = vmul.f32 %v702, 1.442695
    %v704 = vpow.pop %v703
    %v705 = vadd.f32 %v704, 1.0
    %v706 = vrcp.pop %v705
    %v707 = vmul.f32 1.0, %v706
    %v708 = vtanh.pop %v701
    %v709 = vmul.f32 %v707, %v645
    %711 = vrot.lane.b32.xlu0 %v708, 64
    %v712 = vpop.permute.xlu0 %711
    %v714 = vmul.f32 %v707, %v712
    %716 = vrot.lane.b32.xlu0 %v714, 32
    %v717 = vpop.permute.xlu0 %716
    %v719 = vadd.f32 %v709, %v717
    %v720 = vtanh.pop %v719
    %722 = vrot.lane.b32.xlu0 %v720, 64
    %v723 = vpop.permute.xlu0 %722
    %v725 = vmul.f32 %v707, %v723
    %s726 = scalar_lea.vmem [#allocation2], 48
    %v727 = vld [vmem:[%s726] sm:$0xff]
    %v728 = vpack.c.bf16 %v725, %v725
    %730 = vrot.lane.b32.xlu0 %v728, 32
    %v731 = vpop.permute.xlu0 %730
    %v733 = vsel %vm283, %v731, 0
    %735 = vmatprep.subr.bf16.mxu0 0
    %736 = vmatpush1.bf16.msra.mxu0 %v279
    %737 = vmatprep.subr.bf16.mxu0 0
    %738 = vmatpush1.bf16.msra.mxu0 %v280
    %739 = vmatprep.subr.bf16.mxu0 0
    %740 = vmatpush1.bf16.msra.mxu0 0
    %741 = vmatprep.subr.bf16.mxu0 0
    %742 = vmatpush1.bf16.msra.mxu0 0
    %743 = vmatprep.subr.bf16.mxu0 0
    %744 = vmatpush1.bf16.msra.mxu0 0
    %745 = vmatprep.subr.bf16.mxu0 0
    %746 = vmatpush1.bf16.msra.mxu0 0
    %747 = vmatprep.subr.bf16.mxu0 0
    %748 = vmatpush1.bf16.msra.mxu0 0
    %749 = vmatprep.subr.bf16.mxu0 0
    %750 = vmatpush1.bf16.msra.mxu0 0
    %751 = vmatprep.subr.bf16.mxu0 0
    %752 = vmatpush1.bf16.msra.mxu0 0
    %753 = vmatprep.subr.bf16.mxu0 0
    %754 = vmatpush1.bf16.msra.mxu0 0
    %755 = vmatprep.subr.bf16.mxu0 0
    %756 = vmatpush1.bf16.msra.mxu0 0
    %757 = vmatprep.subr.bf16.mxu0 0
    %758 = vmatpush1.bf16.msra.mxu0 0
    %759 = vmatprep.subr.bf16.mxu0 0
    %760 = vmatpush1.bf16.msra.mxu0 0
    %761 = vmatprep.subr.bf16.mxu0 0
    %762 = vmatpush1.bf16.msra.mxu0 0
    %763 = vmatprep.subr.bf16.mxu0 0
    %764 = vmatpush1.bf16.msra.mxu0 0
    %765 = vmatprep.subr.bf16.mxu0 0
    %766 = vmatpush1.bf16.msra.mxu0 0
    %767 = vmatprep.mubr.bf16.mxu0 0
    %768 = vmatmul.mubr.bf16.gmra.mrb[0].mxu0 %v733
    %v769 = vpop.f32.mrb[0].mxu0
    %v770 = vadd.f32 0.0, %v769
    %v771 = vpop.f32.mrb[0].mxu0
    %v772 = vpop.f32.mrb[0].mxu0
    %v773 = vpop.f32.mrb[0].mxu0
    %774 = vdwg.mxu0
    %v775 = vadd.f32 %v727, %v770
    %v776 = vxor.u32 %v775, 2147483648
    %v777 = vmul.f32 %v776, 1.442695
    %v778 = vpow.pop %v777
    %v779 = vadd.f32 %v778, 1.0
    %v780 = vrcp.pop %v779
    %v781 = vmul.f32 1.0, %v780
    %v782 = vtanh.pop %v775
    %v783 = vmul.f32 %v781, %v719
    %785 = vrot.lane.b32.xlu0 %v782, 64
    %v786 = vpop.permute.xlu0 %785
    %v788 = vmul.f32 %v781, %v786
    %790 = vrot.lane.b32.xlu0 %v788, 32
    %v791 = vpop.permute.xlu0 %790
    %v793 = vadd.f32 %v783, %v791
    %v794 = vtanh.pop %v793
    %796 = vrot.lane.b32.xlu0 %v794, 64
    %v797 = vpop.permute.xlu0 %796
    %v799 = vmul.f32 %v781, %v797
    %s800 = scalar_lea.vmem [#allocation2], 56
    %v801 = vld [vmem:[%s800] sm:$0xff]
    %v802 = vpack.c.bf16 %v799, %v799
    %804 = vrot.lane.b32.xlu0 %v802, 32
    %v805 = vpop.permute.xlu0 %804
    %v807 = vsel %vm283, %v805, 0
    %809 = vmatprep.subr.bf16.mxu0 0
    %810 = vmatpush1.bf16.msra.mxu0 %v279
    %811 = vmatprep.subr.bf16.mxu0 0
    %812 = vmatpush1.bf16.msra.mxu0 %v280
    %813 = vmatprep.subr.bf16.mxu0 0
    %814 = vmatpush1.bf16.msra.mxu0 0
    %815 = vmatprep.subr.bf16.mxu0 0
    %816 = vmatpush1.bf16.msra.mxu0 0
    %817 = vmatprep.subr.bf16.mxu0 0
    %818 = vmatpush1.bf16.msra.mxu0 0
    %819 = vmatprep.subr.bf16.mxu0 0
    %820 = vmatpush1.bf16.msra.mxu0 0
    %821 = vmatprep.subr.bf16.mxu0 0
    %822 = vmatpush1.bf16.msra.mxu0 0
    %823 = vmatprep.subr.bf16.mxu0 0
    %824 = vmatpush1.bf16.msra.mxu0 0
    %825 = vmatprep.subr.bf16.mxu0 0
    %826 = vmatpush1.bf16.msra.mxu0 0
    %827 = vmatprep.subr.bf16.mxu0 0
    %828 = vmatpush1.bf16.msra.mxu0 0
    %829 = vmatprep.subr.bf16.mxu0 0
    %830 = vmatpush1.bf16.msra.mxu0 0
    %831 = vmatprep.subr.bf16.mxu0 0
    %832 = vmatpush1.bf16.msra.mxu0 0
    %833 = vmatprep.subr.bf16.mxu0 0
    %834 = vmatpush1.bf16.msra.mxu0 0
    %835 = vmatprep.subr.bf16.mxu0 0
    %836 = vmatpush1.bf16.msra.mxu0 0
    %837 = vmatprep.subr.bf16.mxu0 0
    %838 = vmatpush1.bf16.msra.mxu0 0
    %839 = vmatprep.subr.bf16.mxu0 0
    %840 = vmatpush1.bf16.msra.mxu0 0
    %841 = vmatprep.mubr.bf16.mxu0 0
    %842 = vmatmul.mubr.bf16.gmra.mrb[0].mxu0 %v807
    %v843 = vpop.f32.mrb[0].mxu0
    %v844 = vadd.f32 0.0, %v843
    %v845 = vpop.f32.mrb[0].mxu0
    %v846 = vpop.f32.mrb[0].mxu0
    %v847 = vpop.f32.mrb[0].mxu0
    %848 = vdwg.mxu0
    %v849 = vadd.f32 %v801, %v844
    %v850 = vxor.u32 %v849, 2147483648
    %v851 = vmul.f32 %v850, 1.442695
    %v852 = vpow.pop %v851
    %v853 = vadd.f32 %v852, 1.0
    %v854 = vrcp.pop %v853
    %v855 = vmul.f32 1.0, %v854
    %v856 = vtanh.pop %v849
    %v857 = vmul.f32 %v855, %v793
    %859 = vrot.lane.b32.xlu0 %v856, 64
    %v860 = vpop.permute.xlu0 %859
    %v862 = vmul.f32 %v855, %v860
    %864 = vrot.lane.b32.xlu0 %v862, 32
    %v865 = vpop.permute.xlu0 %864
    %v867 = vadd.f32 %v857, %v865
    %v868 = vtanh.pop %v867
    %870 = vrot.lane.b32.xlu0 %v868, 64
    %v871 = vpop.permute.xlu0 %870
    %v873 = vmul.f32 %v855, %v871
    %875 = vrot.lane.b32.xlu0 %v873, 32
    %v876 = vpop.permute.xlu0 %875
    %878 = vst.msk [vmem:[#allocation3] sm:$0xff] %vm283, %v876
    %880 = vrot.lane.b32.xlu0 %v867, 96
    %v881 = vpop.permute.xlu0 %880
    %883 = vst.msk [vmem:[#allocation4] sm:$0xff] %vm283, %v881
    // Predicated region
    $region46: #{tpu_custom_call.1} parent=1 // pred_check
      %p884 = pneg %p80
    $region47: #{tpu_custom_call.1} parent=1 // pred_check_branch
      %886 = sbr.rel (%p884) target = $region49
    $region48: #{tpu_custom_call.1} parent=1 // pred_region
      %v887 = vpack.c.bf16 %v873, %v873
      %v888 = vld [vmem:[#allocation11] sm:$0xf]
      %v889 = vld [vmem:[#allocation11 + $0x4] sm:$0xf]
      %v890 = vld [vmem:[#allocation11 + $0x8] sm:$0xf]
      %v891 = vld [vmem:[#allocation11 + $0xc] sm:$0xf]
      %v892 = vld [vmem:[%s5] sm:$0x1]
      %v894 = vlaneseq
      %v895 = vshrl.u32 %v894, 7
      %v896 = vsub.s32 0, %v895
      %v897 = vrot.slane %v892, %v896
      %900 = vrot.lane.b32.xlu0 %v887, 32
      %v901 = vpop.permute.xlu0 %900
      %v906 = vunpack.c.l.b16 %v888
      %v907 = vunpack.c.l.b16 %v889
      %v908 = vunpack.c.l.b16 %v890
      %v909 = vunpack.c.l.b16 %v891
      %v910 = vpack.c.b16 %v907, %v906
      %v911 = vpack.c.b16 %v909, %v908
      %v915 = vsel %vm283, %v901, 0
      %917 = vmatprep.subr.bf16.mxu0 0
      %918 = vmatpush1.bf16.msra.mxu0 %v910
      %919 = vmatprep.subr.bf16.mxu0 0
      %920 = vmatpush1.bf16.msra.mxu0 %v911
      %921 = vmatprep.subr.bf16.mxu0 0
      %922 = vmatpush1.bf16.msra.mxu0 0
      %923 = vmatprep.subr.bf16.mxu0 0
      %924 = vmatpush1.bf16.msra.mxu0 0
      %925 = vmatprep.subr.bf16.mxu0 0
      %926 = vmatpush1.bf16.msra.mxu0 0
      %927 = vmatprep.subr.bf16.mxu0 0
      %928 = vmatpush1.bf16.msra.mxu0 0
      %929 = vmatprep.subr.bf16.mxu0 0
      %930 = vmatpush1.bf16.msra.mxu0 0
      %931 = vmatprep.subr.bf16.mxu0 0
      %932 = vmatpush1.bf16.msra.mxu0 0
      %933 = vmatprep.subr.bf16.mxu0 0
      %934 = vmatpush1.bf16.msra.mxu0 0
      %935 = vmatprep.subr.bf16.mxu0 0
      %936 = vmatpush1.bf16.msra.mxu0 0
      %937 = vmatprep.subr.bf16.mxu0 0
      %938 = vmatpush1.bf16.msra.mxu0 0
      %939 = vmatprep.subr.bf16.mxu0 0
      %940 = vmatpush1.bf16.msra.mxu0 0
      %941 = vmatprep.subr.bf16.mxu0 0
      %942 = vmatpush1.bf16.msra.mxu0 0
      %943 = vmatprep.subr.bf16.mxu0 0
      %944 = vmatpush1.bf16.msra.mxu0 0
      %945 = vmatprep.subr.bf16.mxu0 0
      %946 = vmatpush1.bf16.msra.mxu0 0
      %947 = vmatprep.subr.bf16.mxu0 0
      %948 = vmatpush1.bf16.msra.mxu0 0
      %949 = vmatprep.mubr.bf16.mxu0 0
      %950 = vmatmul.mubr.bf16.gmra.mrb[0].mxu0 %v915
      %v951 = vpop.f32.mrb[0].mxu0
      %v952 = vadd.f32 %v897, %v951
      %v953 = vpop.f32.mrb[0].mxu0
      %v954 = vpop.f32.mrb[0].mxu0
      %v955 = vpop.f32.mrb[0].mxu0
      %956 = vdwg.mxu0
      %957 = vst [vmem:[#allocation13] sm:$0xff] %v952
    $region49: #{tpu_custom_call.1} parent=1 // pred_fallthru
      _
    // Predicated region
    $region50: #{tpu_custom_call.1} parent=1 // pred_check
      _
    $region51: #{tpu_custom_call.1} parent=1 // pred_check_branch
      %959 = sbr.rel (0) target = $region53
    $region52: #{tpu_custom_call.1} parent=1 // pred_region
      %s961 = ssub.s32 128, 128
      %962 = vsyncadd [#allocation7], %s961
      %s964 = sshll.u32 [#allocation13], 4
      %s965 = int_to_ptr.vmem [resolvable:$true] %s964
      %967 = dma.vmem_to_hbm [thread:$0]  %s965, 128, %s6, [#allocation7]
    $region53: #{tpu_custom_call.1} parent=1 // pred_fallthru
      _
    // Predicated region
    $region54: #{tpu_custom_call.1} parent=1 // pred_check
      _
    $region55: #{tpu_custom_call.1} parent=1 // pred_check_branch
      %969 = sbr.rel (0) target = $region57
    $region56: #{tpu_custom_call.1} parent=1 // pred_region
      %970 = dma.done [#allocation7], 128
    $region57: #{tpu_custom_call.1} parent=1 // pred_fallthru
      _
    %971 = vsyncpa [#allocation6], 1
    %972 = vsyncpa [#allocation9], 1
    %973 = vsyncpa [#allocation12], 1
    %974 = vsyncpa [#allocation7], 1

// kernel: tpu_custom_call.1
$region0: #{tpu_custom_call.1}
  #allocation0 [shape = 'u32[]', space=smem, size = 0x4, offset = 0x4, fixed_abs, tag = 'smem constant byte address 0x4 - core index']
  #allocation1 [shape = 'u32[144,128]{1,0:T(1,128)}', space=vmem, size = 0x12000, scoped, tag = 'internal scratch']
  #allocation2 [shape = 'f32[8,8,128]{2,1,0:T(8,128)}', space=vmem, size = 0x8000, scoped, tag = 'scratch operand']
  #allocation3 [shape = 'f32[8,32]{1,0:T(8,128)}', space=vmem, size = 0x1000, scoped, tag = 'scratch operand']
  #allocation4 [shape = 'f32[8,32]{1,0:T(8,128)}', space=vmem, size = 0x1000, scoped, tag = 'scratch operand']
  %s0 = inlined_call_operand.hbm [shape: bf16[8,8,128], index: 0, kind: input, shape index: {}]
  %s1 = inlined_call_operand.hbm [shape: bf16[128,128], index: 1, kind: input, shape index: {}]
  %s2 = inlined_call_operand.hbm [shape: bf16[32,128], index: 2, kind: input, shape index: {}]
  %s3 = inlined_call_operand.vmem [shape: f32[1,128], index: 3, kind: input, shape index: {}]
  %s4 = inlined_call_operand.hbm [shape: bf16[32,128], index: 4, kind: input, shape index: {}]
  %s5 = inlined_call_operand.vmem [shape: f32[1,128], index: 5, kind: input, shape index: {}]
  %s6 = inlined_call_operand.hbm [shape: f32[8,128], index: 6, kind: output, shape index: {}]
  %s7 = sld [smem:[#allocation0]]
  $region58: #{tpu_custom_call.1} parent=0
    _
  %s9 = ssub.s32 1, %s7
  %s10 = scalar_select 0, %s9, %s7
  $region1: #{tpu_custom_call.1} parent=0
    #allocation5 [shape = 'u8[16384]{0}', space=vmem, size = 0x4000, scoped, tag = 'input window, operand 0, single buffered']
    #allocation6 [shape = 's32[1]{0}', space=sflag, size = 0x4, scoped, tag = 'scoped memory for tpu_custom_call.1']
    #allocation7 [shape = 's32[1]{0}', space=sflag, size = 0x4, scoped, tag = 'scoped memory for tpu_custom_call.1']
    #allocation8 [shape = 'u8[32768]{0}', space=vmem, size = 0x8000, scoped, tag = 'input window, operand 1, single buffered']
    #allocation9 [shape = 's32[1]{0}', space=sflag, size = 0x4, scoped, tag = 'scoped memory for tpu_custom_call.1']
    #allocation10 [shape = 'u8[8192]{0}', space=vmem, size = 0x2000, scoped, tag = 'input window, operand 2, single buffered']
    #allocation11 [shape = 'u8[8192]{0}', space=vmem, size = 0x2000, scoped, tag = 'input window, operand 4, single buffered']
    #allocation12 [shape = 's32[1]{0}', space=sflag, size = 0x4, scoped, tag = 'scoped memory for tpu_custom_call.1']
    #allocation13 [shape = 'u8[4096]{0}', space=vmem, size = 0x1000, scoped, tag = 'output window, operand 0, single buffered']
    %11 = vsyncpa [#allocation6], 0
    %12 = vsyncpa [#allocation9], 0
    %13 = vsyncpa [#allocation12], 0
    %14 = vsyncpa [#allocation7], 0
    // Predicated region
    $region2: #{tpu_custom_call.1} parent=1 // pred_check
      _
    $region3: #{tpu_custom_call.1} parent=1 // pred_check_branch
      %16 = sbr.rel (0) target = $region5
    $region4: #{tpu_custom_call.1} parent=1 // pred_region
      %s18 = ssub.s32 512, 512
      %19 = vsyncadd [#allocation6], %s18
      %s20 = sshll.u32 [#allocation5], 4
      %s21 = int_to_ptr.vmem [resolvable:$true] %s20
      %26 = dma.hbm_to_vmem [thread:$0]  %s0, 512, %s21, [#allocation6], 64, 64, 4
    $region5: #{tpu_custom_call.1} parent=1 // pred_fallthru
      _
    // Predicated region
    $region6: #{tpu_custom_call.1} parent=1 // pred_check
      _
    $region7: #{tpu_custom_call.1} parent=1 // pred_check_branch
      %28 = sbr.rel (0) target = $region9
    $region8: #{tpu_custom_call.1} parent=1 // pred_region
      %s30 = ssub.s32 1024, 1024
      %31 = vsyncadd [#allocation9], %s30
      %s32 = sshll.u32 [#allocation8], 4
      %s33 = int_to_ptr.vmem [resolvable:$true] %s32
      %38 = dma.hbm_to_vmem [thread:$0]  %s1, 1024, %s33, [#allocation9], 64, 64, 4
    $region9: #{tpu_custom_call.1} parent=1 // pred_fallthru
      _
    // Predicated region
    $region10: #{tpu_custom_call.1} parent=1 // pred_check
      _
    $region11: #{tpu_custom_call.1} parent=1 // pred_check_branch
      %40 = sbr.rel (0) target = $region13
    $region12: #{tpu_custom_call.1} parent=1 // pred_region
      %s42 = ssub.s32 256, 256
      %43 = vsyncadd [#allocation9], %s42
      %s44 = sshll.u32 [#allocation10], 4
      %s45 = int_to_ptr.vmem [resolvable:$true] %s44
      %50 = dma.hbm_to_vmem [thread:$0]  %s2, 256, %s45, [#allocation9], 64, 64, 4
    $region13: #{tpu_custom_call.1} parent=1 // pred_fallthru
      _
    // Predicated region
    $region14: #{tpu_custom_call.1} parent=1 // pred_check
      _
    $region15: #{tpu_custom_call.1} parent=1 // pred_check_branch
      %52 = sbr.rel (0) target = $region17
    $region16: #{tpu_custom_call.1} parent=1 // pred_region
      _
    $region17: #{tpu_custom_call.1} parent=1 // pred_fallthru
      _
    // Predicated region
    $region18: #{tpu_custom_call.1} parent=1 // pred_check
      _
    $region19: #{tpu_custom_call.1} parent=1 // pred_check_branch
      %54 = sbr.rel (0) target = $region21
    $region20: #{tpu_custom_call.1} parent=1 // pred_region
      %s56 = ssub.s32 256, 256
      %57 = vsyncadd [#allocation12], %s56
      %s58 = sshll.u32 [#allocation11], 4
      %s59 = int_to_ptr.vmem [resolvable:$true] %s58
      %64 = dma.hbm_to_vmem [thread:$0]  %s4, 256, %s59, [#allocation12], 64, 64, 4
    $region21: #{tpu_custom_call.1} parent=1 // pred_fallthru
      _
    // Predicated region
    $region22: #{tpu_custom_call.1} parent=1 // pred_check
      _
    $region23: #{tpu_custom_call.1} parent=1 // pred_check_branch
      %66 = sbr.rel (0) target = $region25
    $region24: #{tpu_custom_call.1} parent=1 // pred_region
      _
    $region25: #{tpu_custom_call.1} parent=1 // pred_fallthru
      _
    // Predicated region
    $region26: #{tpu_custom_call.1} parent=1 // pred_check
      _
    $region27: #{tpu_custom_call.1} parent=1 // pred_check_branch
      %68 = sbr.rel (0) target = $region29
    $region28: #{tpu_custom_call.1} parent=1 // pred_region
      %69 = dma.done [#allocation6], 512
    $region29: #{tpu_custom_call.1} parent=1 // pred_fallthru
      _
    // Predicated region
    $region30: #{tpu_custom_call.1} parent=1 // pred_check
      _
    $region31: #{tpu_custom_call.1} parent=1 // pred_check_branch
      %71 = sbr.rel (0) target = $region33
    $region32: #{tpu_custom_call.1} parent=1 // pred_region
      %72 = dma.done [#allocation9], 1024
    $region33: #{tpu_custom_call.1} parent=1 // pred_fallthru
      _
    // Predicated region
    $region34: #{tpu_custom_call.1} parent=1 // pred_check
      _
    $region35: #{tpu_custom_call.1} parent=1 // pred_check_branch
      %74 = sbr.rel (0) target = $region37
    $region36: #{tpu_custom_call.1} parent=1 // pred_region
      %75 = dma.done [#allocation9], 256
    $region37: #{tpu_custom_call.1} parent=1 // pred_fallthru
      _
    // Predicated region
    $region38: #{tpu_custom_call.1} parent=1 // pred_check
      _
    $region39: #{tpu_custom_call.1} parent=1 // pred_check_branch
      %77 = sbr.rel (0) target = $region41
    $region40: #{tpu_custom_call.1} parent=1 // pred_region
      %78 = dma.done [#allocation12], 256
    $region41: #{tpu_custom_call.1} parent=1 // pred_fallthru
      _
    %p80 = scmp.eq.s32.totalorder 0, 0
    // Predicated region
    $region42: #{tpu_custom_call.1} parent=1 // pred_check
      %p81 = pneg %p80
    $region43: #{tpu_custom_call.1} parent=1 // pred_check_branch
      %83 = sbr.rel (%p81) target = $region45
    $region44: #{tpu_custom_call.1} parent=1 // pred_region
      %vm84 = vcmask 261120
      %85 = vst.msk [vmem:[#allocation3] sm:$0xff] %vm84, 0.0
      %86 = vst.msk [vmem:[#allocation4] sm:$0xff] %vm84, 0.0
    $region45: #{tpu_custom_call.1} parent=1 // pred_fallthru
      _
    %v87 = vld [vmem:[#allocation5] sm:$0xf]
    %v88 = vld [vmem:[#allocation5 + $0x4] sm:$0xf]
    %v89 = vld [vmem:[#allocation5 + $0x8] sm:$0xf]
    %v90 = vld [vmem:[#allocation5 + $0xc] sm:$0xf]
    %v91 = vld [vmem:[#allocation5 + $0x10] sm:$0xf]
    %v92 = vld [vmem:[#allocation5 + $0x14] sm:$0xf]
    %v93 = vld [vmem:[#allocation5 + $0x18] sm:$0xf]
    %v94 = vld [vmem:[#allocation5 + $0x1c] sm:$0xf]
    %v95 = vld [vmem:[#allocation8] sm:$0xf]
    %v96 = vld [vmem:[#allocation8 + $0x4] sm:$0xf]
    %v97 = vld [vmem:[#allocation8 + $0x8] sm:$0xf]
    %v98 = vld [vmem:[#allocation8 + $0xc] sm:$0xf]
    %v99 = vld [vmem:[#allocation8 + $0x10] sm:$0xf]
    %v100 = vld [vmem:[#allocation8 + $0x14] sm:$0xf]
    %v101 = vld [vmem:[#allocation8 + $0x18] sm:$0xf]
    %v102 = vld [vmem:[#allocation8 + $0x1c] sm:$0xf]
    %v103 = vld [vmem:[#allocation8 + $0x20] sm:$0xf]
    %v104 = vld [vmem:[#allocation8 + $0x24] sm:$0xf]
    %v105 = vld [vmem:[#allocation8 + $0x28] sm:$0xf]
    %v106 = vld [vmem:[#allocation8 + $0x2c] sm:$0xf]
    %v107 = vld [vmem:[#allocation8 + $0x30] sm:$0xf]
    %v108 = vld [vmem:[#allocation8 + $0x34] sm:$0xf]
    %v109 = vld [vmem:[#allocation8 + $0x38] sm:$0xf]
    %v110 = vld [vmem:[#allocation8 + $0x3c] sm:$0xf]
    %v111 = vld [vmem:[%s3] sm:$0x1]
    %v113 = vlaneseq
    %v114 = vshrl.u32 %v113, 7
    %v115 = vsub.s32 0, %v114
    %v116 = vrot.slane %v111, %v115
    %v126 = vunpack.c.l.b16 %v87
    %v127 = vunpack.c.l.b16 %v88
    %v128 = vunpack.c.l.b16 %v89
    %v129 = vunpack.c.l.b16 %v90
    %v130 = vunpack.c.l.b16 %v91
    %v131 = vunpack.c.l.b16 %v92
    %v132 = vunpack.c.l.b16 %v93
    %v133 = vunpack.c.l.b16 %v94
    %v134 = vpack.c.b16 %v127, %v126
    %v135 = vpack.c.b16 %v129, %v128
    %v136 = vpack.c.b16 %v131, %v130
    %v137 = vpack.c.b16 %v133, %v132
    %v158 = vunpack.c.l.b16 %v95
    %v159 = vunpack.c.l.b16 %v96
    %v160 = vunpack.c.l.b16 %v97
    %v161 = vunpack.c.l.b16 %v98
    %v162 = vunpack.c.l.b16 %v99
    %v163 = vunpack.c.l.b16 %v100
    %v164 = vunpack.c.l.b16 %v101
    %v165 = vunpack.c.l.b16 %v102
    %v166 = vunpack.c.l.b16 %v103
    %v167 = vunpack.c.l.b16 %v104
    %v168 = vunpack.c.l.b16 %v105
    %v169 = vunpack.c.l.b16 %v106
    %v170 = vunpack.c.l.b16 %v107
    %v171 = vunpack.c.l.b16 %v108
    %v172 = vunpack.c.l.b16 %v109
    %v173 = vunpack.c.l.b16 %v110
    %v174 = vpack.c.b16 %v159, %v158
    %v175 = vpack.c.b16 %v161, %v160
    %v176 = vpack.c.b16 %v163, %v162
    %v177 = vpack.c.b16 %v165, %v164
    %v178 = vpack.c.b16 %v167, %v166
    %v179 = vpack.c.b16 %v169, %v168
    %v180 = vpack.c.b16 %v171, %v170
    %v181 = vpack.c.b16 %v173, %v172
    %190 = vmatprep.subr.bf16.mxu0 0
    %191 = vmatpush1.bf16.msra.mxu0 %v174
    %192 = vmatprep.subr.bf16.mxu0 0
    %193 = vmatpush1.bf16.msra.mxu0 %v175
    %194 = vmatprep.subr.bf16.mxu0 0
    %195 = vmatpush1.bf16.msra.mxu0 %v176
    %196 = vmatprep.subr.bf16.mxu0 0
    %197 = vmatpush1.bf16.msra.mxu0 %v177
    %198 = vmatprep.subr.bf16.mxu0 0
    %199 = vmatpush1.bf16.msra.mxu0 %v178
    %200 = vmatprep.subr.bf16.mxu0 0
    %201 = vmatpush1.bf16.msra.mxu0 %v179
    %202 = vmatprep.subr.bf16.mxu0 0
    %203 = vmatpush1.bf16.msra.mxu0 %v180
    %204 = vmatprep.subr.bf16.mxu0 0
    %205 = vmatpush1.bf16.msra.mxu0 %v181
    %206 = vmatprep.subr.bf16.mxu0 0
    %207 = vmatpush1.bf16.msra.mxu0 0
    %208 = vmatprep.subr.bf16.mxu0 0
    %209 = vmatpush1.bf16.msra.mxu0 0
    %210 = vmatprep.subr.bf16.mxu0 0
    %211 = vmatpush1.bf16.msra.mxu0 0
    %212 = vmatprep.subr.bf16.mxu0 0
    %213 = vmatpush1.bf16.msra.mxu0 0
    %214 = vmatprep.subr.bf16.mxu0 0
    %215 = vmatpush1.bf16.msra.mxu0 0
    %216 = vmatprep.subr.bf16.mxu0 0
    %217 = vmatpush1.bf16.msra.mxu0 0
    %218 = vmatprep.subr.bf16.mxu0 0
    %219 = vmatpush1.bf16.msra.mxu0 0
    %220 = vmatprep.subr.bf16.mxu0 0
    %221 = vmatpush1.bf16.msra.mxu0 0
    %222 = vmatprep.mubr.bf16.mxu0 0
    %223 = vmatmul.mubr.bf16.gmra.mrb[0].mxu0 %v134
    %v224 = vpop.f32.mrb[0].mxu0
    %v225 = vadd.f32 %v116, %v224
    %v226 = vpop.f32.mrb[0].mxu0
    %v227 = vpop.f32.mrb[0].mxu0
    %v228 = vadd.f32 %v116, %v227
    %v229 = vpop.f32.mrb[0].mxu0
    %230 = vmatprep.mubr.bf16.mxu0 0
    %231 = vmatmul.mubr.bf16.gmra.mrb[0].mxu0 %v135
    %v232 = vpop.f32.mrb[0].mxu0
    %v233 = vadd.f32 %v116, %v232
    %v234 = vpop.f32.mrb[0].mxu0
    %v235 = vpop.f32.mrb[0].mxu0
    %v236 = vadd.f32 %v116, %v235
    %v237 = vpop.f32.mrb[0].mxu0
    %238 = vmatprep.mubr.bf16.mxu0 0
    %239 = vmatmul.mubr.bf16.gmra.mrb[0].mxu0 %v136
    %v240 = vpop.f32.mrb[0].mxu0
    %v241 = vadd.f32 %v116, %v240
    %v242 = vpop.f32.mrb[0].mxu0
    %v243 = vpop.f32.mrb[0].mxu0
    %v244 = vadd.f32 %v116, %v243
    %v245 = vpop.f32.mrb[0].mxu0
    %246 = vmatprep.mubr.bf16.mxu0 0
    %247 = vmatmul.mubr.bf16.gmra.mrb[0].mxu0 %v137
    %v248 = vpop.f32.mrb[0].mxu0
    %v249 = vadd.f32 %v116, %v248
    %v250 = vpop.f32.mrb[0].mxu0
    %v251 = vpop.f32.mrb[0].mxu0
    %v252 = vadd.f32 %v116, %v251
    %v253 = vpop.f32.mrb[0].mxu0
    %254 = vdwg.mxu0
    %255 = vst [vmem:[#allocation2] sm:$0xff] %v225
    %256 = vst [vmem:[#allocation2 + $0x8] sm:$0xff] %v228
    %257 = vst [vmem:[#allocation2 + $0x10] sm:$0xff] %v233
    %258 = vst [vmem:[#allocation2 + $0x18] sm:$0xff] %v236
    %259 = vst [vmem:[#allocation2 + $0x20] sm:$0xff] %v241
    %260 = vst [vmem:[#allocation2 + $0x28] sm:$0xff] %v244
    %261 = vst [vmem:[#allocation2 + $0x30] sm:$0xff] %v249
    %262 = vst [vmem:[#allocation2 + $0x38] sm:$0xff] %v252
    %v263 = vld [vmem:[#allocation3] sm:$0xff]
    %v264 = vld [vmem:[#allocation4] sm:$0xff]
    %v265 = vld [vmem:[#allocation2] sm:$0xff]
    %v266 = vpack.c.bf16 %v263, %v263
    %v267 = vld [vmem:[#allocation10] sm:$0xf]
    %v268 = vld [vmem:[#allocation10 + $0x4] sm:$0xf]
    %v269 = vld [vmem:[#allocation10 + $0x8] sm:$0xf]
    %v270 = vld [vmem:[#allocation10 + $0xc] sm:$0xf]
    %v275 = vunpack.c.l.b16 %v267
    %v276 = vunpack.c.l.b16 %v268
    %v277 = vunpack.c.l.b16 %v269
    %v278 = vunpack.c.l.b16 %v270
    %v279 = vpack.c.b16 %v276, %v275
    %v280 = vpack.c.b16 %v278, %v277
    %vm283 = vcmask 261120
    %v285 = vsel %vm283, %v266, 0
    %287 = vmatprep.subr.bf16.mxu0 0
    %288 = vmatpush1.bf16.msra.mxu0 %v279
    %289 = vmatprep.subr.bf16.mxu0 0
    %290 = vmatpush1.bf16.msra.mxu0 %v280
    %291 = vmatprep.subr.bf16.mxu0 0
    %292 = vmatpush1.bf16.msra.mxu0 0
    %293 = vmatprep.subr.bf16.mxu0 0
    %294 = vmatpush1.bf16.msra.mxu0 0
    %295 = vmatprep.subr.bf16.mxu0 0
    %296 = vmatpush1.bf16.msra.mxu0 0
    %297 = vmatprep.subr.bf16.mxu0 0
    %298 = vmatpush1.bf16.msra.mxu0 0
    %299 = vmatprep.subr.bf16.mxu0 0
    %300 = vmatpush1.bf16.msra.mxu0 0
    %301 = vmatprep.subr.bf16.mxu0 0
    %302 = vmatpush1.bf16.msra.mxu0 0
    %303 = vmatprep.subr.bf16.mxu0 0
    %304 = vmatpush1.bf16.msra.mxu0 0
    %305 = vmatprep.subr.bf16.mxu0 0
    %306 = vmatpush1.bf16.msra.mxu0 0
    %307 = vmatprep.subr.bf16.mxu0 0
    %308 = vmatpush1.bf16.msra.mxu0 0
    %309 = vmatprep.subr.bf16.mxu0 0
    %310 = vmatpush1.bf16.msra.mxu0 0
    %311 = vmatprep.subr.bf16.mxu0 0
    %312 = vmatpush1.bf16.msra.mxu0 0
    %313 = vmatprep.subr.bf16.mxu0 0
    %314 = vmatpush1.bf16.msra.mxu0 0
    %315 = vmatprep.subr.bf16.mxu0 0
    %316 = vmatpush1.bf16.msra.mxu0 0
    %317 = vmatprep.subr.bf16.mxu0 0
    %318 = vmatpush1.bf16.msra.mxu0 0
    %319 = vmatprep.mubr.bf16.mxu0 0
    %320 = vmatmul.mubr.bf16.gmra.mrb[0].mxu0 %v285
    %v321 = vpop.f32.mrb[0].mxu0
    %v322 = vadd.f32 0.0, %v321
    %v323 = vpop.f32.mrb[0].mxu0
    %v324 = vpop.f32.mrb[0].mxu0
    %v325 = vpop.f32.mrb[0].mxu0
    %326 = vdwg.mxu0
    %v327 = vadd.f32 %v265, %v322
    %v328 = vxor.u32 %v327, 2147483648
    %v329 = vmul.f32 %v328, 1.442695
    %v330 = vpow.pop %v329
    %v331 = vadd.f32 %v330, 1.0
    %v332 = vrcp.pop %v331
    %v333 = vmul.f32 1.0, %v332
    %v334 = vtanh.pop %v327
    %336 = vrot.lane.b32.xlu0 %v264, 32
    %v337 = vpop.permute.xlu0 %336
    %v339 = vmul.f32 %v333, %v337
    %341 = vrot.lane.b32.xlu0 %v334, 64
    %v342 = vpop.permute.xlu0 %341
    %v344 = vmul.f32 %v333, %v342
    %346 = vrot.lane.b32.xlu0 %v344, 32
    %v347 = vpop.permute.xlu0 %346
    %v349 = vadd.f32 %v339, %v347
    %v350 = vtanh.pop %v349
    %352 = vrot.lane.b32.xlu0 %v350, 64
    %v353 = vpop.permute.xlu0 %352
    %v355 = vmul.f32 %v333, %v353
    %s356 = scalar_lea.vmem [#allocation2], 8
    %v357 = vld [vmem:[%s356] sm:$0xff]
    %v358 = vpack.c.bf16 %v355, %v355
    %360 = vrot.lane.b32.xlu0 %v358, 32
    %v361 = vpop.permute.xlu0 %360
    %v363 = vsel %vm283, %v361, 0
    %365 = vmatprep.subr.bf16.mxu0 0
    %366 = vmatpush1.bf16.msra.mxu0 %v279
    %367 = vmatprep.subr.bf16.mxu0 0
    %368 = vmatpush1.bf16.msra.mxu0 %v280
    %369 = vmatprep.subr.bf16.mxu0 0
    %370 = vmatpush1.bf16.msra.mxu0 0
    %371 = vmatprep.subr.bf16.mxu0 0
    %372 = vmatpush1.bf16.msra.mxu0 0
    %373 = vmatprep.subr.bf16.mxu0 0
    %374 = vmatpush1.bf16.msra.mxu0 0
    %375 = vmatprep.subr.bf16.mxu0 0
    %376 = vmatpush1.bf16.msra.mxu0 0
    %377 = vmatprep.subr.bf16.mxu0 0
    %378 = vmatpush1.bf16.msra.mxu0 0
    %379 = vmatprep.subr.bf16.mxu0 0
    %380 = vmatpush1.bf16.msra.mxu0 0
    %381 = vmatprep.subr.bf16.mxu0 0
    %382 = vmatpush1.bf16.msra.mxu0 0
    %383 = vmatprep.subr.bf16.mxu0 0
    %384 = vmatpush1.bf16.msra.mxu0 0
    %385 = vmatprep.subr.bf16.mxu0 0
    %386 = vmatpush1.bf16.msra.mxu0 0
    %387 = vmatprep.subr.bf16.mxu0 0
    %388 = vmatpush1.bf16.msra.mxu0 0
    %389 = vmatprep.subr.bf16.mxu0 0
    %390 = vmatpush1.bf16.msra.mxu0 0
    %391 = vmatprep.subr.bf16.mxu0 0
    %392 = vmatpush1.bf16.msra.mxu0 0
    %393 = vmatprep.subr.bf16.mxu0 0
    %394 = vmatpush1.bf16.msra.mxu0 0
    %395 = vmatprep.subr.bf16.mxu0 0
    %396 = vmatpush1.bf16.msra.mxu0 0
    %397 = vmatprep.mubr.bf16.mxu0 0
    %398 = vmatmul.mubr.bf16.gmra.mrb[0].mxu0 %v363
    %v399 = vpop.f32.mrb[0].mxu0
    %v400 = vadd.f32 0.0, %v399
    %v401 = vpop.f32.mrb[0].mxu0
    %v402 = vpop.f32.mrb[0].mxu0
    %v403 = vpop.f32.mrb[0].mxu0
    %404 = vdwg.mxu0
    %v405 = vadd.f32 %v357, %v400
    %v406 = vxor.u32 %v405, 2147483648
    %v407 = vmul.f32 %v406, 1.442695
    %v408 = vpow.pop %v407
    %v409 = vadd.f32 %v408, 1.0
    %v410 = vrcp.pop %v409
    %v411 = vmul.f32 1.0, %v410
    %v412 = vtanh.pop %v405
    %v413 = vmul.f32 %v411, %v349
    %415 = vrot.lane.b32.xlu0 %v412, 64
    %v416 = vpop.permute.xlu0 %415
    %v418 = vmul.f32 %v411, %v416
    %420 = vrot.lane.b32.xlu0 %v418, 32
    %v421 = vpop.permute.xlu0 %420
    %v423 = vadd.f32 %v413, %v421
    %v424 = vtanh.pop %v423
    %426 = vrot.lane.b32.xlu0 %v424, 64
    %v427 = vpop.permute.xlu0 %426
    %v429 = vmul.f32 %v411, %v427
    %s430 = scalar_lea.vmem [#allocation2], 16
    %v431 = vld [vmem:[%s430] sm:$0xff]
    %v432 = vpack.c.bf16 %v429, %v429
    %434 = vrot.lane.b32.xlu0 %v432, 32
    %v435 = vpop.permute.xlu0 %434
    %v437 = vsel %vm283, %v435, 0
    %439 = vmatprep.subr.bf16.mxu0 0
    %440 = vmatpush1.bf16.msra.mxu0 %v279
    %441 = vmatprep.subr.bf16.mxu0 0
    %442 = vmatpush1.bf16.msra.mxu0 %v280
    %443 = vmatprep.subr.bf16.mxu0 0
    %444 = vmatpush1.bf16.msra.mxu0 0
    %445 = vmatprep.subr.bf16.mxu0 0
    %446 = vmatpush1.bf16.msra.mxu0 0
    %447 = vmatprep.subr.bf16.mxu0 0
    %448 = vmatpush1.bf16.msra.mxu0 0
    %449 = vmatprep.subr.bf16.mxu0 0
    %450 = vmatpush1.bf16.msra.mxu0 0
    %451 = vmatprep.subr.bf16.mxu0 0
    %452 = vmatpush1.bf16.msra.mxu0 0
    %453 = vmatprep.subr.bf16.mxu0 0
    %454 = vmatpush1.bf16.msra.mxu0 0
    %455 = vmatprep.subr.bf16.mxu0 0
    %456 = vmatpush1.bf16.msra.mxu0 0
    %457 = vmatprep.subr.bf16.mxu0 0
    %458 = vmatpush1.bf16.msra.mxu0 0
    %459 = vmatprep.subr.bf16.mxu0 0
    %460 = vmatpush1.bf16.msra.mxu0 0
    %461 = vmatprep.subr.bf16.mxu0 0
    %462 = vmatpush1.bf16.msra.mxu0 0
    %463 = vmatprep.subr.bf16.mxu0 0
    %464 = vmatpush1.bf16.msra.mxu0 0
    %465 = vmatprep.subr.bf16.mxu0 0
    %466 = vmatpush1.bf16.msra.mxu0 0
    %467 = vmatprep.subr.bf16.mxu0 0
    %468 = vmatpush1.bf16.msra.mxu0 0
    %469 = vmatprep.subr.bf16.mxu0 0
    %470 = vmatpush1.bf16.msra.mxu0 0
    %471 = vmatprep.mubr.bf16.mxu0 0
    %472 = vmatmul.mubr.bf16.gmra.mrb[0].mxu0 %v437
    %v473 = vpop.f32.mrb[0].mxu0
    %v474 = vadd.f32 0.0, %v473
    %v475 = vpop.f32.mrb[0].mxu0
    %v476 = vpop.f32.mrb[0].mxu0
    %v477 = vpop.f32.mrb[0].mxu0
    %478 = vdwg.mxu0
    %v479 = vadd.f32 %v431, %v474
    %v480 = vxor.u32 %v479, 2147483648
    %v481 = vmul.f32 %v480, 1.442695
    %v482 = vpow.pop %v481
    %v483 = vadd.f32 %v482, 1.0
    %v484 = vrcp.pop %v483
    %v485 = vmul.f32 1.0, %v484
    %v486 = vtanh.pop %v479
    %v487 = vmul.f32 %v485, %v423
    %489 = vrot.lane.b32.xlu0 %v486, 64
    %v490 = vpop.permute.xlu0 %489
    %v492 = vmul.f32 %v485, %v490
    %494 = vrot.lane.b32.xlu0 %v492, 32
    %v495 = vpop.permute.xlu0 %494
    %v497 = vadd.f32 %v487, %v495
    %v498 = vtanh.pop %v497
    %500 = vrot.lane.b32.xlu0 %v498, 64
    %v501 = vpop.permute.xlu0 %500
    %v503 = vmul.f32 %v485, %v501
    %s504 = scalar_lea.vmem [#allocation2], 24
    %v505 = vld [vmem:[%s504] sm:$0xff]
    %v506 = vpack.c.bf16 %v503, %v503
    %508 = vrot.lane.b32.xlu0 %v506, 32
    %v509 = vpop.permute.xlu0 %508
    %v511 = vsel %vm283, %v509, 0
    %513 = vmatprep.subr.bf16.mxu0 0
    %514 = vmatpush1.bf16.msra.mxu0 %v279
    %515 = vmatprep.subr.bf16.mxu0 0
    %516 = vmatpush1.bf16.msra.mxu0 %v280
    %517 = vmatprep.subr.bf16.mxu0 0
    %518 = vmatpush1.bf16.msra.mxu0 0
    %519 = vmatprep.subr.bf16.mxu0 0
    %520 = vmatpush1.bf16.msra.mxu0 0
    %521 = vmatprep.subr.bf16.mxu0 0
    %522 = vmatpush1.bf16.msra.mxu0 0
    %523 = vmatprep.subr.bf16.mxu0 0
    %524 = vmatpush1.bf16.msra.mxu0 0
    %525 = vmatprep.subr.bf16.mxu0 0
    %526 = vmatpush1.bf16.msra.mxu0 0
    %527 = vmatprep.subr.bf16.mxu0 0
    %528 = vmatpush1.bf16.msra.mxu0 0
    %529 = vmatprep.subr.bf16.mxu0 0
    %530 = vmatpush1.bf16.msra.mxu0 0
    %531 = vmatprep.subr.bf16.mxu0 0
    %532 = vmatpush1.bf16.msra.mxu0 0
    %533 = vmatprep.subr.bf16.mxu0 0
    %534 = vmatpush1.bf16.msra.mxu0 0
    %535 = vmatprep.subr.bf16.mxu0 0
    %536 = vmatpush1.bf16.msra.mxu0 0
    %537 = vmatprep.subr.bf16.mxu0 0
    %538 = vmatpush1.bf16.msra.mxu0 0
    %539 = vmatprep.subr.bf16.mxu0 0
    %540 = vmatpush1.bf16.msra.mxu0 0
    %541 = vmatprep.subr.bf16.mxu0 0
    %542 = vmatpush1.bf16.msra.mxu0 0
    %543 = vmatprep.subr.bf16.mxu0 0
    %544 = vmatpush1.bf16.msra.mxu0 0
    %545 = vmatprep.mubr.bf16.mxu0 0
    %546 = vmatmul.mubr.bf16.gmra.mrb[0].mxu0 %v511
    %v547 = vpop.f32.mrb[0].mxu0
    %v548 = vadd.f32 0.0, %v547
    %v549 = vpop.f32.mrb[0].mxu0
    %v550 = vpop.f32.mrb[0].mxu0
    %v551 = vpop.f32.mrb[0].mxu0
    %552 = vdwg.mxu0
    %v553 = vadd.f32 %v505, %v548
    %v554 = vxor.u32 %v553, 2147483648
    %v555 = vmul.f32 %v554, 1.442695
    %v556 = vpow.pop %v555
    %v557 = vadd.f32 %v556, 1.0
    %v558 = vrcp.pop %v557
    %v559 = vmul.f32 1.0, %v558
    %v560 = vtanh.pop %v553
    %v561 = vmul.f32 %v559, %v497
    %563 = vrot.lane.b32.xlu0 %v560, 64
    %v564 = vpop.permute.xlu0 %563
    %v566 = vmul.f32 %v559, %v564
    %568 = vrot.lane.b32.xlu0 %v566, 32
    %v569 = vpop.permute.xlu0 %568
    %v571 = vadd.f32 %v561, %v569
    %v572 = vtanh.pop %v571
    %574 = vrot.lane.b32.xlu0 %v572, 64
    %v575 = vpop.permute.xlu0 %574
    %v577 = vmul.f32 %v559, %v575
    %s578 = scalar_lea.vmem [#allocation2], 32
    %v579 = vld [vmem:[%s578] sm:$0xff]
    %v580 = vpack.c.bf16 %v577, %v577
    %582 = vrot.lane.b32.xlu0 %v580, 32
    %v583 = vpop.permute.xlu0 %582
    %v585 = vsel %vm283, %v583, 0
    %587 = vmatprep.subr.bf16.mxu0 0
    %588 = vmatpush1.bf16.msra.mxu0 %v279
    %589 = vmatprep.subr.bf16.mxu0 0
    %590 = vmatpush1.bf16.msra.mxu0 %v280
    %591 = vmatprep.subr.bf16.mxu0 0
    %592 = vmatpush1.bf16.msra.mxu0 0
    %593 = vmatprep.subr.bf16.mxu0 0
    %594 = vmatpush1.bf16.msra.mxu0 0
    %595 = vmatprep.subr.bf16.mxu0 0
    %596 = vmatpush1.bf16.msra.mxu0 0
    %597 = vmatprep.subr.bf16.mxu0 0
    %598 = vmatpush1.bf16.msra.mxu0 0
    %599 = vmatprep.subr.bf16.mxu0 0
    %600 = vmatpush1.bf16.msra.mxu0 0
    %601 = vmatprep.subr.bf16.mxu0 0
    %602 = vmatpush1.bf16.msra.mxu0 0
    %603 = vmatprep.subr.bf16.mxu0 0
    %604 = vmatpush1.bf16.msra.mxu0 0
    %605 = vmatprep.subr.bf16.mxu0 0
    %606 = vmatpush1.bf16.msra.mxu0 0
    %607 = vmatprep.subr.bf16.mxu0 0
    %608 = vmatpush1.bf16.msra.mxu0 0
    %609 = vmatprep.subr.bf16.mxu0 0
    %610 = vmatpush1.bf16.msra.mxu0 0
    %611 = vmatprep.subr.bf16.mxu0 0
    %612 = vmatpush1.bf16.msra.mxu0 0
    %613 = vmatprep.subr.bf16.mxu0 0
    %614 = vmatpush1.bf16.msra.mxu0 0
    %615 = vmatprep.subr.bf16.mxu0 0
    %616 = vmatpush1.bf16.msra.mxu0 0
    %617 = vmatprep.subr.bf16.mxu0 0
    %618 = vmatpush1.bf16.msra.mxu0 0
    %619 = vmatprep.mubr.bf16.mxu0 0
    %620 = vmatmul.mubr.bf16.gmra.mrb[0].mxu0 %v585
    %v621 = vpop.f32.mrb[0].mxu0
    %v622 = vadd.f32 0.0, %v621
    %v623 = vpop.f32.mrb[0].mxu0
    %v624 = vpop.f32.mrb[0].mxu0
    %v625 = vpop.f32.mrb[0].mxu0
    %626 = vdwg.mxu0
    %v627 = vadd.f32 %v579, %v622
    %v628 = vxor.u32 %v627, 2147483648
    %v629 = vmul.f32 %v628, 1.442695
    %v630 = vpow.pop %v629
    %v631 = vadd.f32 %v630, 1.0
    %v632 = vrcp.pop %v631
    %v633 = vmul.f32 1.0, %v632
    %v634 = vtanh.pop %v627
    %v635 = vmul.f32 %v633, %v571
    %637 = vrot.lane.b32.xlu0 %v634, 64
    %v638 = vpop.permute.xlu0 %637
    %v640 = vmul.f32 %v633, %v638
    %642 = vrot.lane.b32.xlu0 %v640, 32
    %v643 = vpop.permute.xlu0 %642
    %v645 = vadd.f32 %v635, %v643
    %v646 = vtanh.pop %v645
    %648 = vrot.lane.b32.xlu0 %v646, 64
    %v649 = vpop.permute.xlu0 %648
    %v651 = vmul.f32 %v633, %v649
    %s652 = scalar_lea.vmem [#allocation2], 40
    %v653 = vld [vmem:[%s652] sm:$0xff]
    %v654 = vpack.c.bf16 %v651, %v651
    %656 = vrot.lane.b32.xlu0 %v654, 32
    %v657 = vpop.permute.xlu0 %656
    %v659 = vsel %vm283, %v657, 0
    %661 = vmatprep.subr.bf16.mxu0 0
    %662 = vmatpush1.bf16.msra.mxu0 %v279
    %663 = vmatprep.subr.bf16.mxu0 0
    %664 = vmatpush1.bf16.msra.mxu0 %v280
    %665 = vmatprep.subr.bf16.mxu0 0
    %666 = vmatpush1.bf16.msra.mxu0 0
    %667 = vmatprep.subr.bf16.mxu0 0
    %668 = vmatpush1.bf16.msra.mxu0 0
    %669 = vmatprep.subr.bf16.mxu0 0
    %670 = vmatpush1.bf16.msra.mxu0 0
    %671 = vmatprep.subr.bf16.mxu0 0
    %672 = vmatpush1.bf16.msra.mxu0 0
    %673 = vmatprep.subr.bf16.mxu0 0
    %674 = vmatpush1.bf16.msra.mxu0 0
    %675 = vmatprep.subr.bf16.mxu0 0
    %676 = vmatpush1.bf16.msra.mxu0 0
    %677 = vmatprep.subr.bf16.mxu0 0
    %678 = vmatpush1.bf16.msra.mxu0 0
    %679 = vmatprep.subr.bf16.mxu0 0
    %680 = vmatpush1.bf16.msra.mxu0 0
    %681 = vmatprep.subr.bf16.mxu0 0
    %682 = vmatpush1.bf16.msra.mxu0 0
    %683 = vmatprep.subr.bf16.mxu0 0
    %684 = vmatpush1.bf16.msra.mxu0 0
    %685 = vmatprep.subr.bf16.mxu0 0
    %686 = vmatpush1.bf16.msra.mxu0 0
    %687 = vmatprep.subr.bf16.mxu0 0
    %688 = vmatpush1.bf16.msra.mxu0 0
    %689 = vmatprep.subr.bf16.mxu0 0
    %690 = vmatpush1.bf16.msra.mxu0 0
    %691 = vmatprep.subr.bf16.mxu0 0
    %692 = vmatpush1.bf16.msra.mxu0 0
    %693 = vmatprep.mubr.bf16.mxu0 0
    %694 = vmatmul.mubr.bf16.gmra.mrb[0].mxu0 %v659
    %v695 = vpop.f32.mrb[0].mxu0
    %v696 = vadd.f32 0.0, %v695
    %v697 = vpop.f32.mrb[0].mxu0
    %v698 = vpop.f32.mrb[0].mxu0
    %v699 = vpop.f32.mrb[0].mxu0
    %700 = vdwg.mxu0
    %v701 = vadd.f32 %v653, %v696
    %v702 = vxor.u32 %v701, 2147483648
    %v703 = vmul.f32 %v702, 1.442695
    %v704 = vpow.pop %v703
    %v705 = vadd.f32 %v704, 1.0
    %v706 = vrcp.pop %v705
    %v707 = vmul.f32 1.0, %v706
    %v708 = vtanh.pop %v701
    %v709 = vmul.f32 %v707, %v645
    %711 = vrot.lane.b32.xlu0 %v708, 64
    %v712 = vpop.permute.xlu0 %711
    %v714 = vmul.f32 %v707, %v712
    %716 = vrot.lane.b32.xlu0 %v714, 32
    %v717 = vpop.permute.xlu0 %716
    %v719 = vadd.f32 %v709, %v717
    %v720 = vtanh.pop %v719
    %722 = vrot.lane.b32.xlu0 %v720, 64
    %v723 = vpop.permute.xlu0 %722
    %v725 = vmul.f32 %v707, %v723
    %s726 = scalar_lea.vmem [#allocation2], 48
    %v727 = vld [vmem:[%s726] sm:$0xff]
    %v728 = vpack.c.bf16 %v725, %v725
    %730 = vrot.lane.b32.xlu0 %v728, 32
    %v731 = vpop.permute.xlu0 %730
    %v733 = vsel %vm283, %v731, 0
    %735 = vmatprep.subr.bf16.mxu0 0
    %736 = vmatpush1.bf16.msra.mxu0 %v279
    %737 = vmatprep.subr.bf16.mxu0 0
    %738 = vmatpush1.bf16.msra.mxu0 %v280
    %739 = vmatprep.subr.bf16.mxu0 0
    %740 = vmatpush1.bf16.msra.mxu0 0
    %741 = vmatprep.subr.bf16.mxu0 0
    %742 = vmatpush1.bf16.msra.mxu0 0
    %743 = vmatprep.subr.bf16.mxu0 0
    %744 = vmatpush1.bf16.msra.mxu0 0
    %745 = vmatprep.subr.bf16.mxu0 0
    %746 = vmatpush1.bf16.msra.mxu0 0
    %747 = vmatprep.subr.bf16.mxu0 0
    %748 = vmatpush1.bf16.msra.mxu0 0
    %749 = vmatprep.subr.bf16.mxu0 0
    %750 = vmatpush1.bf16.msra.mxu0 0
    %751 = vmatprep.subr.bf16.mxu0 0
    %752 = vmatpush1.bf16.msra.mxu0 0
    %753 = vmatprep.subr.bf16.mxu0 0
    %754 = vmatpush1.bf16.msra.mxu0 0
    %755 = vmatprep.subr.bf16.mxu0 0
    %756 = vmatpush1.bf16.msra.mxu0 0
    %757 = vmatprep.subr.bf16.mxu0 0
    %758 = vmatpush1.bf16.msra.mxu0 0
    %759 = vmatprep.subr.bf16.mxu0 0
    %760 = vmatpush1.bf16.msra.mxu0 0
    %761 = vmatprep.subr.bf16.mxu0 0
    %762 = vmatpush1.bf16.msra.mxu0 0
    %763 = vmatprep.subr.bf16.mxu0 0
    %764 = vmatpush1.bf16.msra.mxu0 0
    %765 = vmatprep.subr.bf16.mxu0 0
    %766 = vmatpush1.bf16.msra.mxu0 0
    %767 = vmatprep.mubr.bf16.mxu0 0
    %768 = vmatmul.mubr.bf16.gmra.mrb[0].mxu0 %v733
    %v769 = vpop.f32.mrb[0].mxu0
    %v770 = vadd.f32 0.0, %v769
    %v771 = vpop.f32.mrb[0].mxu0
    %v772 = vpop.f32.mrb[0].mxu0
    %v773 = vpop.f32.mrb[0].mxu0
    %774 = vdwg.mxu0
    %v775 = vadd.f32 %v727, %v770
    %v776 = vxor.u32 %v775, 2147483648
    %v777 = vmul.f32 %v776, 1.442695
    %v778 = vpow.pop %v777
    %v779 = vadd.f32 %v778, 1.0
    %v780 = vrcp.pop %v779
    %v781 = vmul.f32 1.0, %v780
    %v782 = vtanh.pop %v775
    %v783 = vmul.f32 %v781, %v719
    %785 = vrot.lane.b32.xlu0 %v782, 64
    %v786 = vpop.permute.xlu0 %785
    %v788 = vmul.f32 %v781, %v786
    %790 = vrot.lane.b32.xlu0 %v788, 32
    %v791 = vpop.permute.xlu0 %790
    %v793 = vadd.f32 %v783, %v791
    %v794 = vtanh.pop %v793
    %796 = vrot.lane.b32.xlu0 %v794, 64
    %v797 = vpop.permute.xlu0 %796
    %v799 = vmul.f32 %v781, %v797
    %s800 = scalar_lea.vmem [#allocation2], 56
    %v801 = vld [vmem:[%s800] sm:$0xff]
    %v802 = vpack.c.bf16 %v799, %v799
    %804 = vrot.lane.b32.xlu0 %v802, 32
    %v805 = vpop.permute.xlu0 %804
    %v807 = vsel %vm283, %v805, 0
    %809 = vmatprep.subr.bf16.mxu0 0
    %810 = vmatpush1.bf16.msra.mxu0 %v279
    %811 = vmatprep.subr.bf16.mxu0 0
    %812 = vmatpush1.bf16.msra.mxu0 %v280
    %813 = vmatprep.subr.bf16.mxu0 0
    %814 = vmatpush1.bf16.msra.mxu0 0
    %815 = vmatprep.subr.bf16.mxu0 0
    %816 = vmatpush1.bf16.msra.mxu0 0
    %817 = vmatprep.subr.bf16.mxu0 0
    %818 = vmatpush1.bf16.msra.mxu0 0
    %819 = vmatprep.subr.bf16.mxu0 0
    %820 = vmatpush1.bf16.msra.mxu0 0
    %821 = vmatprep.subr.bf16.mxu0 0
    %822 = vmatpush1.bf16.msra.mxu0 0
    %823 = vmatprep.subr.bf16.mxu0 0
    %824 = vmatpush1.bf16.msra.mxu0 0
    %825 = vmatprep.subr.bf16.mxu0 0
    %826 = vmatpush1.bf16.msra.mxu0 0
    %827 = vmatprep.subr.bf16.mxu0 0
    %828 = vmatpush1.bf16.msra.mxu0 0
    %829 = vmatprep.subr.bf16.mxu0 0
    %830 = vmatpush1.bf16.msra.mxu0 0
    %831 = vmatprep.subr.bf16.mxu0 0
    %832 = vmatpush1.bf16.msra.mxu0 0
    %833 = vmatprep.subr.bf16.mxu0 0
    %834 = vmatpush1.bf16.msra.mxu0 0
    %835 = vmatprep.subr.bf16.mxu0 0
    %836 = vmatpush1.bf16.msra.mxu0 0
    %837 = vmatprep.subr.bf16.mxu0 0
    %838 = vmatpush1.bf16.msra.mxu0 0
    %839 = vmatprep.subr.bf16.mxu0 0
    %840 = vmatpush1.bf16.msra.mxu0 0
    %841 = vmatprep.mubr.bf16.mxu0 0
    %842 = vmatmul.mubr.bf16.gmra.mrb[0].mxu0 %v807
    %v843 = vpop.f32.mrb[0].mxu0
    %v844 = vadd.f32 0.0, %v843
    %v845 = vpop.f32.mrb[0].mxu0
    %v846 = vpop.f32.mrb[0].mxu0
    %v847 = vpop.f32.mrb[0].mxu0
    %848 = vdwg.mxu0
    %v849 = vadd.f32 %v801, %v844
    %v850 = vxor.u32 %v849, 2147483648
    %v851 = vmul.f32 %v850, 1.442695
    %v852 = vpow.pop %v851
    %v853 = vadd.f32 %v852, 1.0
    %v854 = vrcp.pop %v853
    %v855 = vmul.f32 1.0, %v854
    %v856 = vtanh.pop %v849
    %v857 = vmul.f32 %v855, %v793
    %859 = vrot.lane.b32.xlu0 %v856, 64
    %v860 = vpop.permute.xlu0 %859
    %v862 = vmul.f32 %v855, %v860
    %864 = vrot.lane.b32.xlu0 %v862, 32
    %v865 = vpop.permute.xlu0 %864
    %v867 = vadd.f32 %v857, %v865
    %v868 = vtanh.pop %v867
    %870 = vrot.lane.b32.xlu0 %v868, 64
    %v871 = vpop.permute.xlu0 %870
    %v873 = vmul.f32 %v855, %v871
    %875 = vrot.lane.b32.xlu0 %v873, 32
    %v876 = vpop.permute.xlu0 %875
    %878 = vst.msk [vmem:[#allocation3] sm:$0xff] %vm283, %v876
    %880 = vrot.lane.b32.xlu0 %v867, 96
    %v881 = vpop.permute.xlu0 %880
    %883 = vst.msk [vmem:[#allocation4] sm:$0xff] %vm283, %v881
    // Predicated region
    $region46: #{tpu_custom_call.1} parent=1 // pred_check
      %p884 = pneg %p80
    $region47: #{tpu_custom_call.1} parent=1 // pred_check_branch
      %886 = sbr.rel (%p884) target = $region49
    $region48: #{tpu_custom_call.1} parent=1 // pred_region
      %v887 = vpack.c.bf16 %v873, %v873
      %v888 = vld [vmem:[#allocation11] sm:$0xf]
      %v889 = vld [vmem:[#allocation11 + $0x4] sm:$0xf]
      %v890 = vld [vmem:[#allocation11 + $0x8] sm:$0xf]
      %v891 = vld [vmem:[#allocation11 + $0xc] sm:$0xf]
      %v892 = vld [vmem:[%s5] sm:$0x1]
      %v894 = vlaneseq
      %v895 = vshrl.u32 %v894, 7
      %v896 = vsub.s32 0, %v895
      %v897 = vrot.slane %v892, %v896
      %900 = vrot.lane.b32.xlu0 %v887, 32
      %v901 = vpop.permute.xlu0 %900
      %v906 = vunpack.c.l.b16 %v888
      %v907 = vunpack.c.l.b16 %v889
      %v908 = vunpack.c.l.b16 %v890
      %v909 = vunpack.c.l.b16 %v891
      %v910 = vpack.c.b16 %v907, %v906
      %v911 = vpack.c.b16 %v909, %v908
      %v915 = vsel %vm283, %v901, 0
      %917 = vmatprep.subr.bf16.mxu0 0
      %918 = vmatpush1.bf16.msra.mxu0 %v910
      %919 = vmatprep.subr.bf16.mxu0 0
      %920 = vmatpush1.bf16.msra.mxu0 %v911
      %921 = vmatprep.subr.bf16.mxu0 0
      %922 = vmatpush1.bf16.msra.mxu0 0
      %923 = vmatprep.subr.bf16.mxu0 0
      %924 = vmatpush1.bf16.msra.mxu0 0
      %925 = vmatprep.subr.bf16.mxu0 0
      %926 = vmatpush1.bf16.msra.mxu0 0
      %927 = vmatprep.subr.bf16.mxu0 0
      %928 = vmatpush1.bf16.msra.mxu0 0
      %929 = vmatprep.subr.bf16.mxu0 0
      %930 = vmatpush1.bf16.msra.mxu0 0
      %931 = vmatprep.subr.bf16.mxu0 0
      %932 = vmatpush1.bf16.msra.mxu0 0
      %933 = vmatprep.subr.bf16.mxu0 0
      %934 = vmatpush1.bf16.msra.mxu0 0
      %935 = vmatprep.subr.bf16.mxu0 0
      %936 = vmatpush1.bf16.msra.mxu0 0
      %937 = vmatprep.subr.bf16.mxu0 0
      %938 = vmatpush1.bf16.msra.mxu0 0
      %939 = vmatprep.subr.bf16.mxu0 0
      %940 = vmatpush1.bf16.msra.mxu0 0
      %941 = vmatprep.subr.bf16.mxu0 0
      %942 = vmatpush1.bf16.msra.mxu0 0
      %943 = vmatprep.subr.bf16.mxu0 0
      %944 = vmatpush1.bf16.msra.mxu0 0
      %945 = vmatprep.subr.bf16.mxu0 0
      %946 = vmatpush1.bf16.msra.mxu0 0
      %947 = vmatprep.subr.bf16.mxu0 0
      %948 = vmatpush1.bf16.msra.mxu0 0
      %949 = vmatprep.mubr.bf16.mxu0 0
      %950 = vmatmul.mubr.bf16.gmra.mrb[0].mxu0 %v915
      %v951 = vpop.f32.mrb[0].mxu0
      %v952 = vadd.f32 %v897, %v951
      %v953 = vpop.f32.mrb[0].mxu0
      %v954 = vpop.f32.mrb[0].mxu0
      %v955 = vpop.f32.mrb[0].mxu0
      %956 = vdwg.mxu0
      %957 = vst [vmem:[#allocation13] sm:$0xff] %v952
    $region49: #{tpu_custom_call.1} parent=1 // pred_fallthru
      _
    // Predicated region
    $region50: #{tpu_custom_call.1} parent=1 // pred_check
      _
    $region51: #{tpu_custom_call.1} parent=1 // pred_check_branch
      %959 = sbr.rel (0) target = $region53
    $region52: #{tpu_custom_call.1} parent=1 // pred_region
      %s961 = ssub.s32 128, 128
      %962 = vsyncadd [#allocation7], %s961
      %s964 = sshll.u32 [#allocation13], 4
      %s965 = int_to_ptr.vmem [resolvable:$true] %s964
      %967 = dma.vmem_to_hbm [thread:$0]  %s965, 128, %s6, [#allocation7]
    $region53: #{tpu_custom_call.1} parent=1 // pred_fallthru
      _
    // Predicated region
    $region54: #{tpu_custom_call.1} parent=1 // pred_check
      _
    $region55: #{tpu_custom_call.1} parent=1 // pred_check_branch
      %969 = sbr.rel (0) target = $region57
    $region56: #{tpu_custom_call.1} parent=1 // pred_region
      %970 = dma.done [#allocation7], 128
    $region57: #{tpu_custom_call.1} parent=1 // pred_fallthru
      _
    %971 = vsyncpa [#allocation6], 1
    %972 = vsyncpa [#allocation9], 1
    %973 = vsyncpa [#allocation12], 1
    %974 = vsyncpa [#allocation7], 1

</llo_original>
